<compile_context>
chip_gen: v5e
topology: v5e:2x2
jax: 0.10.0
libtpu: 0.0.40
codegen_flags: <defaults>
</compile_context>

<pallas_src>
import jax
import jax.numpy as jnp
import numpy as np
from jax import lax
from jax.experimental import pallas as pl
from jax.experimental.pallas import tpu as pltpu


def _round_up(x, m):
    return (x + m - 1) // m * m


def _make_basic_block_kernel(Wp, Q, Cop):
    """Wp = padded width, Q = H*Wp (conv2 output rows), Cop = padded out-channels."""

    def kernel(xp_ref, wc_ref, b1_ref, bc_ref, w2_ref, mask_ref, o_ref, y1s_ref):
        # ---- conv1 (all 9 taps fused into K) + scaled 1x1 residual: one MXU pass ----
        r = jnp.dot(xp_ref[...], wc_ref[...], preferred_element_type=jnp.float32)
        pre1 = r[:, :Cop]            # conv1 pre-activation on the padded grid (PP, Cop)
        resid = r[:Q, Cop:]          # scaling_factor * downsample(x) (bias folded later)

        # bias + ReLU, then zero everything outside the true image (halo + overcompute
        # columns + tail rows).  Single full store => scratch fully rewritten each step.
        y1 = jnp.maximum(pre1 + b1_ref[...], 0.0) * mask_ref[...]
        y1s_ref[...] = y1.astype(jnp.bfloat16)

        # ---- conv2: 9 contiguous tap slices of the flat zero-halo scratch,
        #      concatenated along K -> one MXU pass with K = 9*Cop ------------------
        taps = [y1s_ref[pl.ds(kh * Wp + kw, Q), :]
                for kh in range(3) for kw in range(3)]
        acc2 = jnp.dot(jnp.concatenate(taps, axis=-1), w2_ref[...],
                       preferred_element_type=jnp.float32)

        # ---- + residual + (b2 + sf*bd), final ReLU, lane-dense store ---------------
        o_ref[...] = jnp.maximum(acc2 + resid + bc_ref[...], 0.0)

    return kernel


def basic_block_forward(x_nchw, params, scaling_factor=1.0):
    """Pallas BasicBlock forward. Input/Output are NCHW like the PyTorch module."""
    N, Cin, H, W = x_nchw.shape
    Cout = params["w1"].shape[0]
    LANE = 128
    Hp, Wp = H + 2, W + 2
    P = Hp * Wp                          # flattened padded-grid positions
    PP = _round_up(P + 2, 8)             # +tail so conv2's last tap slice stays in-bounds
    Q = H * Wp                           # conv2 output rows (overcompute on 2 pad cols)
    K1 = _round_up(9 * Cin, LANE)        # densely packed conv1 im2col depth
    Cop = _round_up(Cout, LANE)          # lane-dense padded output channels
    sf = jnp.float32(scaling_factor)

    # ---- im2col of x over the padded output grid, densely packed along K ----------
    x_nhwc = jnp.transpose(x_nchw, (0, 2, 3, 1)).astype(jnp.float32)
    xpp = jnp.pad(x_nhwc, ((0, 0), (2, 2), (2, 2), (0, 0)))
    taps = [xpp[:, kh:kh + Hp, kw:kw + Wp, :]
            for kh in range(3) for kw in range(3)]
    patches = jnp.concatenate(taps, axis=-1).reshape(N, P, 9 * Cin)
    patches = jnp.pad(patches, ((0, 0), (0, PP - P), (0, K1 - 9 * Cin))
                      ).astype(jnp.bfloat16)

    # ---- combined conv1 | residual RHS: (K1, 2*Cop) --------------------------------
    w1p = jnp.transpose(params["w1"], (2, 3, 1, 0)).reshape(9 * Cin, Cout)
    wd_m = params["wd"].reshape(Cout, Cin).T * sf          # scaling_factor folded in
    wc = jnp.zeros((K1, 2 * Cop), jnp.float32)
    wc = wc.at[:9 * Cin, :Cout].set(w1p)
    # tap (kh=2, kw=2) of patch row q = h*Wp + w is exactly x[h, w] -> 1x1 residual conv
    wc = wc.at[8 * Cin:9 * Cin, Cop:Cop + Cout].set(wd_m)
    wc = wc.astype(jnp.bfloat16)

    # ---- conv2 RHS packed as (9*Cop, Cop) ------------------------------------------
    w2t = jnp.transpose(params["w2"], (2, 3, 1, 0)).reshape(9, Cout, Cout)
    w2p = jnp.zeros((9, Cop, Cop), jnp.float32).at[:, :Cout, :Cout].set(w2t)
    w2p = w2p.reshape(9 * Cop, Cop).astype(jnp.bfloat16)

    # ---- biases: b1; b2 + sf*bd folded into one vector -----------------------------
    b1 = jnp.pad(params["b1"], (0, Cop - Cout)).reshape(1, Cop).astype(jnp.float32)
    bc = jnp.pad(params["b2"] + sf * params["bd"], (0, Cop - Cout)
                 ).reshape(1, Cop).astype(jnp.float32)

    # ---- interior mask over the padded grid (zeros halo, overcompute cols, tail) ---
    pidx = np.arange(PP)
    hh, ww = pidx // Wp, pidx % Wp
    mask = ((hh >= 1) & (hh <= H) & (ww >= 1) & (ww <= W)).astype(np.float32)
    mask = jnp.asarray(mask).reshape(PP, 1)

    kernel = _make_basic_block_kernel(Wp, Q, Cop)

    def full_spec(shape):
        nd = len(shape)
        return pl.BlockSpec(shape, lambda n, _nd=nd: (0,) * _nd)

    out_flat = pl.pallas_call(
        kernel,
        out_shape=jax.ShapeDtypeStruct((N, Q, Cop), jnp.float32),
        grid_spec=pltpu.PrefetchScalarGridSpec(
            num_scalar_prefetch=0,
            grid=(N,),
            in_specs=[
                pl.BlockSpec((None, PP, K1), lambda n: (n, 0, 0)),  # per-image im2col
                full_spec((K1, 2 * Cop)),     # wc: conv1 | scaled residual weights
                full_spec((1, Cop)),          # b1
                full_spec((1, Cop)),          # bc = b2 + sf*bd
                full_spec((9 * Cop, Cop)),    # w2 packed along K
                full_spec((PP, 1)),           # interior mask
            ],
            out_specs=pl.BlockSpec((None, Q, Cop), lambda n: (n, 0, 0)),
            scratch_shapes=[pltpu.VMEM((PP, Cop), jnp.bfloat16)],   # flat zero-halo y1
        ),
        compiler_params=pltpu.CompilerParams(
            dimension_semantics=("parallel",),           # batch axis -> dual TC on v7x
            vmem_limit_bytes=32 * 1024 * 1024),
    )(patches, wc, b1, bc, w2p, mask)

    # padded lane-dense layout -> slice valid columns/channels -> NCHW (cheap XLA ops)
    out = out_flat.reshape(N, H, Wp, Cop)[:, :, :W, :Cout]
    return jnp.transpose(out, (0, 3, 1, 2))


def _torch_like_reference(x, params, scaling_factor):
    """Pure-JAX reference mirroring the PyTorch forward (NCHW / OIHW)."""
    def conv2d(inp, w, b, stride, pad):
        dn = lax.conv_dimension_numbers(inp.shape, w.shape, ("NCHW", "OIHW", "NCHW"))
        y = lax.conv_general_dilated(inp, w, (stride, stride),
                                     ((pad, pad), (pad, pad)),
                                     dimension_numbers=dn,
                                     precision=lax.Precision.HIGHEST)
        return y + b[None, :, None, None]

    out = jax.nn.relu(conv2d(x, params["w1"], params["b1"], 1, 1))    # conv1 + ReLU
    out = conv2d(out, params["w2"], params["b2"], 1, 1)               # conv2
    res = conv2d(x, params["wd"], params["bd"], 1, 0)                 # downsample
    return jax.nn.relu(out + scaling_factor * res)


if __name__ == "__main__":
    N, Cin, Cout, H, W = 2, 4, 8, 16, 16
    scaling_factor = 0.5

    key = jax.random.PRNGKey(0)
    k = jax.random.split(key, 7)
    # Deterministic, kaiming/xavier-flavored synthetic init (no checkpoint load).
    params = {
        "w1": jax.random.normal(k[0], (Cout, Cin, 3, 3), jnp.float32)
              * (2.0 / (Cin * 9)) ** 0.5,
        "b1": jax.random.normal(k[1], (Cout,), jnp.float32) * 0.05,
        "w2": jax.random.normal(k[2], (Cout, Cout, 3, 3), jnp.float32)
              * (2.0 / (Cout * 9 + Cout * 9)) ** 0.5,
        "b2": jax.random.normal(k[3], (Cout,), jnp.float32) * 0.05,
        "wd": jax.random.normal(k[4], (Cout, Cin, 1, 1), jnp.float32)
              * (2.0 / (Cin + Cout)) ** 0.5,
        "bd": jax.random.normal(k[5], (Cout,), jnp.float32) * 0.05,
    }
    x = jax.random.normal(k[6], (N, Cin, H, W), jnp.float32)

    run = jax.jit(lambda xx: basic_block_forward(xx, params, scaling_factor))
    out = jax.block_until_ready(run(x))
    ref = _torch_like_reference(x, params, scaling_factor)

    assert out.shape == ref.shape, (out.shape, ref.shape)
    # bf16 MXU operands + f32 accumulation: observed error is O(1e-2) at these scales.
    max_err = float(jnp.max(jnp.abs(out - ref)))
    assert jnp.allclose(out, ref, atol=5e-2, rtol=5e-2), max_err
    print("KERNEL_OK")
</pallas_src>

<mosaic_0001>
module attributes {stable_mosaic.version = 11 : i64} {
  func.func @kernel(%arg0: i32, %arg1: memref<1x328x128xbf16, #tpu.memory_space<vmem>>, %arg2: memref<128x256xbf16, #tpu.memory_space<vmem>>, %arg3: memref<1x128xf32, #tpu.memory_space<vmem>>, %arg4: memref<1x128xf32, #tpu.memory_space<vmem>>, %arg5: memref<1152x128xbf16, #tpu.memory_space<vmem>>, %arg6: memref<328x1xf32, #tpu.memory_space<vmem>>, %arg7: memref<1x288x128xf32, #tpu.memory_space<vmem>>, %arg8: memref<328x128xbf16, #tpu.memory_space<vmem>>) attributes {dimension_semantics = [#tpu.dimension_semantics<parallel>], iteration_bounds = array<i64: 2>, scalar_prefetch = 0 : i64, scratch_operands = 1 : i64, tpu.core_type = #tpu.core_type<tc>, window_params = [{transform_indices = @transform_0, window_bounds = array<i64: 1, 328, 128>}, {pipeline_mode = #tpu.pipeline_mode<synchronous>, transform_indices = @transform_1, window_bounds = array<i64: 128, 256>}, {pipeline_mode = #tpu.pipeline_mode<synchronous>, transform_indices = @transform_2, window_bounds = array<i64: 1, 128>}, {pipeline_mode = #tpu.pipeline_mode<synchronous>, transform_indices = @transform_3, window_bounds = array<i64: 1, 128>}, {pipeline_mode = #tpu.pipeline_mode<synchronous>, transform_indices = @transform_4, window_bounds = array<i64: 1152, 128>}, {pipeline_mode = #tpu.pipeline_mode<synchronous>, transform_indices = @transform_5, window_bounds = array<i64: 328, 1>}, {transform_indices = @transform_6, window_bounds = array<i64: 1, 288, 128>}]} {
    %c0 = arith.constant 0 : index
    %c0_0 = arith.constant 0 : index
    %c0_1 = arith.constant 0 : index
    %0 = vector.load %arg1[%c0, %c0_0, %c0_1] : memref<1x328x128xbf16, #tpu.memory_space<vmem>>, vector<1x328x128xbf16>
    %1 = vector.shape_cast %0 : vector<1x328x128xbf16> to vector<328x128xbf16>
    %c0_2 = arith.constant 0 : index
    %c0_3 = arith.constant 0 : index
    %2 = vector.load %arg2[%c0_2, %c0_3] : memref<128x256xbf16, #tpu.memory_space<vmem>>, vector<128x256xbf16>
    %cst = arith.constant dense<0.000000e+00> : vector<328x256xf32>
    %3 = tpu.matmul %1, %2, %cst {dimension_numbers = #tpu.dot_dimension_numbers<[1], [0], [0], [1], [0, 0, 1, 1], [], []>} : vector<328x128xbf16>, vector<128x256xbf16>, vector<328x256xf32> -> vector<328x256xf32>
    %4 = vector.extract_strided_slice %3 {offsets = [0, 0], sizes = [328, 128], strides = [1, 1]} : vector<328x256xf32> to vector<328x128xf32>
    %5 = vector.extract_strided_slice %3 {offsets = [0, 128], sizes = [288, 128], strides = [1, 1]} : vector<328x256xf32> to vector<288x128xf32>
    %c0_4 = arith.constant 0 : index
    %c0_5 = arith.constant 0 : index
    %6 = vector.load %arg3[%c0_4, %c0_5] : memref<1x128xf32, #tpu.memory_space<vmem>>, vector<1x128xf32>
    %7 = vector.broadcast %6 : vector<1x128xf32> to vector<328x128xf32>
    %8 = arith.addf %4, %7 : vector<328x128xf32>
    %cst_6 = arith.constant 0.000000e+00 : f32
    %9 = vector.broadcast %cst_6 : f32 to vector<328x128xf32>
    %10 = arith.maximumf %8, %9 : vector<328x128xf32>
    %c0_7 = arith.constant 0 : index
    %c0_8 = arith.constant 0 : index
    %11 = vector.load %arg6[%c0_7, %c0_8] : memref<328x1xf32, #tpu.memory_space<vmem>>, vector<328x1xf32>
    %12 = vector.broadcast %11 : vector<328x1xf32> to vector<328x128xf32>
    %13 = arith.mulf %10, %12 : vector<328x128xf32>
    %14 = arith.truncf %13 : vector<328x128xf32> to vector<328x128xbf16>
    %c0_9 = arith.constant 0 : index
    %c0_10 = arith.constant 0 : index
    %15 = vector.load %arg8[%c0_9, %c0_10] : memref<328x128xbf16, #tpu.memory_space<vmem>>, vector<328x128xbf16>
    tpu.vector_store %arg8[%c0_9, %c0_10], %14 {strides = array<i32>} : memref<328x128xbf16, #tpu.memory_space<vmem>>, vector<328x128xbf16>,
    %c0_11 = arith.constant 0 : index
    %c0_12 = arith.constant 0 : index
    %16 = vector.load %arg8[%c0_11, %c0_12] : memref<328x128xbf16, #tpu.memory_space<vmem>>, vector<288x128xbf16>
    %c1 = arith.constant 1 : index
    %c0_13 = arith.constant 0 : index
    %17 = vector.load %arg8[%c1, %c0_13] : memref<328x128xbf16, #tpu.memory_space<vmem>>, vector<288x128xbf16>
    %c2 = arith.constant 2 : index
    %c0_14 = arith.constant 0 : index
    %18 = vector.load %arg8[%c2, %c0_14] : memref<328x128xbf16, #tpu.memory_space<vmem>>, vector<288x128xbf16>
    %c18 = arith.constant 18 : index
    %c0_15 = arith.constant 0 : index
    %19 = vector.load %arg8[%c18, %c0_15] : memref<328x128xbf16, #tpu.memory_space<vmem>>, vector<288x128xbf16>
    %c19 = arith.constant 19 : index
    %c0_16 = arith.constant 0 : index
    %20 = vector.load %arg8[%c19, %c0_16] : memref<328x128xbf16, #tpu.memory_space<vmem>>, vector<288x128xbf16>
    %c20 = arith.constant 20 : index
    %c0_17 = arith.constant 0 : index
    %21 = vector.load %arg8[%c20, %c0_17] : memref<328x128xbf16, #tpu.memory_space<vmem>>, vector<288x128xbf16>
    %c36 = arith.constant 36 : index
    %c0_18 = arith.constant 0 : index
    %22 = vector.load %arg8[%c36, %c0_18] : memref<328x128xbf16, #tpu.memory_space<vmem>>, vector<288x128xbf16>
    %c37 = arith.constant 37 : index
    %c0_19 = arith.constant 0 : index
    %23 = vector.load %arg8[%c37, %c0_19] : memref<328x128xbf16, #tpu.memory_space<vmem>>, vector<288x128xbf16>
    %c38 = arith.constant 38 : index
    %c0_20 = arith.constant 0 : index
    %24 = vector.load %arg8[%c38, %c0_20] : memref<328x128xbf16, #tpu.memory_space<vmem>>, vector<288x128xbf16>
    %25 = tpu.concatenate %16, %17, %18, %19, %20, %21, %22, %23, %24 in 1 : vector<288x128xbf16>, vector<288x128xbf16>, vector<288x128xbf16>, vector<288x128xbf16>, vector<288x128xbf16>, vector<288x128xbf16>, vector<288x128xbf16>, vector<288x128xbf16>, vector<288x128xbf16> -> vector<288x1152xbf16>
    %c0_21 = arith.constant 0 : index
    %c0_22 = arith.constant 0 : index
    %26 = vector.load %arg5[%c0_21, %c0_22] : memref<1152x128xbf16, #tpu.memory_space<vmem>>, vector<1152x128xbf16>
    %cst_23 = arith.constant dense<0.000000e+00> : vector<288x128xf32>
    %27 = tpu.matmul %25, %26, %cst_23 {dimension_numbers = #tpu.dot_dimension_numbers<[1], [0], [0], [1], [0, 0, 1, 1], [], []>} : vector<288x1152xbf16>, vector<1152x128xbf16>, vector<288x128xf32> -> vector<288x128xf32>
    %28 = arith.addf %27, %5 : vector<288x128xf32>
    %c0_24 = arith.constant 0 : index
    %c0_25 = arith.constant 0 : index
    %29 = vector.load %arg4[%c0_24, %c0_25] : memref<1x128xf32, #tpu.memory_space<vmem>>, vector<1x128xf32>
    %30 = vector.broadcast %29 : vector<1x128xf32> to vector<288x128xf32>
    %31 = arith.addf %28, %30 : vector<288x128xf32>
    %cst_26 = arith.constant 0.000000e+00 : f32
    %32 = vector.broadcast %cst_26 : f32 to vector<288x128xf32>
    %33 = arith.maximumf %31, %32 : vector<288x128xf32>
    %c0_27 = arith.constant 0 : index
    %c0_28 = arith.constant 0 : index
    %c0_29 = arith.constant 0 : index
    %34 = vector.load %arg7[%c0_27, %c0_28, %c0_29] : memref<1x288x128xf32, #tpu.memory_space<vmem>>, vector<1x288x128xf32>
    %35 = vector.shape_cast %34 : vector<1x288x128xf32> to vector<288x128xf32>
    %36 = vector.shape_cast %33 : vector<288x128xf32> to vector<1x288x128xf32>
    tpu.vector_store %arg7[%c0_27, %c0_28, %c0_29], %36 {strides = array<i32>} : memref<1x288x128xf32, #tpu.memory_space<vmem>>, vector<1x288x128xf32>,
    return
  }
  func.func @transform_0(%arg0: i32) -> (i32, i32, i32) {
    %c0_i32 = arith.constant 0 : i32
    %c0_i32_0 = arith.constant 0 : i32
    %c0_i32_1 = arith.constant 0 : i32
    return %arg0, %c0_i32, %c0_i32_0 : i32, i32, i32
  }
  func.func @transform_1(%arg0: i32) -> (i32, i32) {
    %c0_i32 = arith.constant 0 : i32
    %c0_i32_0 = arith.constant 0 : i32
    %c0_i32_1 = arith.constant 0 : i32
    return %c0_i32, %c0_i32_0 : i32, i32
  }
  func.func @transform_2(%arg0: i32) -> (i32, i32) {
    %c0_i32 = arith.constant 0 : i32
    %c0_i32_0 = arith.constant 0 : i32
    %c0_i32_1 = arith.constant 0 : i32
    return %c0_i32, %c0_i32_0 : i32, i32
  }
  func.func @transform_3(%arg0: i32) -> (i32, i32) {
    %c0_i32 = arith.constant 0 : i32
    %c0_i32_0 = arith.constant 0 : i32
    %c0_i32_1 = arith.constant 0 : i32
    return %c0_i32, %c0_i32_0 : i32, i32
  }
  func.func @transform_4(%arg0: i32) -> (i32, i32) {
    %c0_i32 = arith.constant 0 : i32
    %c0_i32_0 = arith.constant 0 : i32
    %c0_i32_1 = arith.constant 0 : i32
    return %c0_i32, %c0_i32_0 : i32, i32
  }
  func.func @transform_5(%arg0: i32) -> (i32, i32) {
    %c0_i32 = arith.constant 0 : i32
    %c0_i32_0 = arith.constant 0 : i32
    %c0_i32_1 = arith.constant 0 : i32
    return %c0_i32, %c0_i32_0 : i32, i32
  }
  func.func @transform_6(%arg0: i32) -> (i32, i32, i32) {
    %c0_i32 = arith.constant 0 : i32
    %c0_i32_0 = arith.constant 0 : i32
    %c0_i32_1 = arith.constant 0 : i32
    return %arg0, %c0_i32, %c0_i32_0 : i32, i32, i32
  }
}

</mosaic_0001>

<llo_original>
// kernel: _lambda_.1
$region0: #{_lambda_.1}
  #allocation0 [shape = 'u32[]', space=smem, size = 0x4, offset = 0x4, fixed_abs, tag = 'smem constant byte address 0x4 - core index']
  #allocation1 [shape = 'u32[72,128]{1,0:T(1,128)}', space=vmem, size = 0x9000, scoped, tag = 'internal scratch']
  #allocation2 [shape = 'bf16[328,128]{1,0:T(8,128)(2,1)}', space=vmem, size = 0x14800, scoped, tag = 'scratch operand']
  %s0 = inlined_call_operand.vmem [shape: bf16[2,328,128], index: 0, kind: input, shape index: {}]
  %s1 = inlined_call_operand.vmem [shape: bf16[128,256], index: 1, kind: input, shape index: {}]
  %s2 = inlined_call_operand.vmem [shape: f32[1,128], index: 2, kind: input, shape index: {}]
  %s3 = inlined_call_operand.vmem [shape: f32[1,128], index: 3, kind: input, shape index: {}]
  %s4 = inlined_call_operand.vmem [shape: bf16[1152,128], index: 4, kind: input, shape index: {}]
  %s5 = inlined_call_operand.vmem [shape: f32[328,1], index: 5, kind: input, shape index: {}]
  %s6 = inlined_call_operand.vmem [shape: f32[2,288,128], index: 6, kind: output, shape index: {}]
  %s7 = sld [smem:[#allocation0]]
  $region57: #{_lambda_.1} parent=0
    _
  %s9 = ssub.s32 1, %s7
  %s10 = scalar_select 0, %s9, %s7
  loop: start=0, step=1, limit=4
  $region2: #{_lambda_.1} parent=0 // loop_pre_header
    _
  $region3: #{_lambda_.1} parent=0 // loop_header
    %s12 = sphi 0, %s16
    %p13 = scmp.ge.s32.totalorder %s12, 4
    %s22 = sphi 0, %s24
    %s25 = sphi 0, %s22
    %s26 = sphi 0, %s25
    %s42 = sphi 0, %s26
    %s46 = sphi 0, %s46
    %s48 = sphi 0, %s46
    %s49 = sphi 0, %s48
    %s63 = sphi 0, %s49
    %s67 = sphi 0, %s67
    %s69 = sphi 0, %s67
    %s70 = sphi 0, %s69
    %s84 = sphi 0, %s70
    %s88 = sphi 0, %s88
    %s90 = sphi 0, %s88
    %s91 = sphi 0, %s90
    %s105 = sphi 0, %s91
    %s109 = sphi 0, %s109
    %s111 = sphi 0, %s109
    %s112 = sphi 0, %s111
    %s126 = sphi 0, %s112
    %s130 = sphi 0, %s130
    %s132 = sphi 0, %s130
    %s133 = sphi 0, %s132
    %s147 = sphi 0, %s133
    %s153 = sphi 0, %s155
    %s156 = sphi 0, %s153
    %s157 = sphi 0, %s156
    %s173 = sphi 0, %s157
  $region4: #{_lambda_.1} parent=0 // loop_header_branch
    %15 = sbr.rel (%p13) target = $region8
  $region5: #{_lambda_.1} parent=0 // loop_body
    %s17 = ssub.s32 %s12, 1
    %s18 = ssub.s32 %s12, 2
    %s19 = sadd.s32 %s12, 1
    %s20 = ssub.s32 %s12, %s19
    %p21 = scmp.eq.s32.totalorder %s20, 0
    %s23 = sadd.s32 %s22, 1
    %s24 = scalar_select %p21, %s22, %s23
    %p27 = pneg %p21
    %p28 = scmp.eq.s32.totalorder %s12, 1
    %p29 = por %p27, %p28
    %p30 = scmp.ne.s32.totalorder %s22, %s25
    %p31 = scmp.eq.s32.totalorder %s12, 0
    %p32 = por %p30, %p31
    %p33 = scmp.ne.s32.totalorder %s22, %s25
    %p34 = scmp.eq.s32.totalorder %s17, 1
    %p35 = por %p33, %p34
    %p36 = scmp.ne.s32.totalorder %s25, %s26
    %p37 = scmp.eq.s32.totalorder %s17, 0
    %p38 = por %p36, %p37
    %p39 = scmp.ne.s32.totalorder %s25, %s26
    %p40 = scmp.eq.s32.totalorder %s18, 1
    %p41 = por %p39, %p40
    %p43 = scmp.ne.s32.totalorder %s26, %s42
    %p44 = scmp.eq.s32.totalorder %s18, 0
    %p45 = por %p43, %p44
    %s47 = sadd.s32 %s46, 1
    %p50 = scmp.eq.s32.totalorder %s12, 1
    %p51 = scmp.ne.s32.totalorder %s46, %s48
    %p52 = scmp.eq.s32.totalorder %s12, 0
    %p53 = por %p51, %p52
    %p54 = scmp.ne.s32.totalorder %s46, %s48
    %p55 = scmp.eq.s32.totalorder %s17, 1
    %p56 = por %p54, %p55
    %p57 = scmp.ne.s32.totalorder %s48, %s49
    %p58 = scmp.eq.s32.totalorder %s17, 0
    %p59 = por %p57, %p58
    %p60 = scmp.ne.s32.totalorder %s48, %s49
    %p61 = scmp.eq.s32.totalorder %s18, 1
    %p62 = por %p60, %p61
    %p64 = scmp.ne.s32.totalorder %s49, %s63
    %p65 = scmp.eq.s32.totalorder %s18, 0
    %p66 = por %p64, %p65
    %s68 = sadd.s32 %s67, 1
    %p71 = scmp.eq.s32.totalorder %s12, 1
    %p72 = scmp.ne.s32.totalorder %s67, %s69
    %p73 = scmp.eq.s32.totalorder %s12, 0
    %p74 = por %p72, %p73
    %p75 = scmp.ne.s32.totalorder %s67, %s69
    %p76 = scmp.eq.s32.totalorder %s17, 1
    %p77 = por %p75, %p76
    %p78 = scmp.ne.s32.totalorder %s69, %s70
    %p79 = scmp.eq.s32.totalorder %s17, 0
    %p80 = por %p78, %p79
    %p81 = scmp.ne.s32.totalorder %s69, %s70
    %p82 = scmp.eq.s32.totalorder %s18, 1
    %p83 = por %p81, %p82
    %p85 = scmp.ne.s32.totalorder %s70, %s84
    %p86 = scmp.eq.s32.totalorder %s18, 0
    %p87 = por %p85, %p86
    %s89 = sadd.s32 %s88, 1
    %p92 = scmp.eq.s32.totalorder %s12, 1
    %p93 = scmp.ne.s32.totalorder %s88, %s90
    %p94 = scmp.eq.s32.totalorder %s12, 0
    %p95 = por %p93, %p94
    %p96 = scmp.ne.s32.totalorder %s88, %s90
    %p97 = scmp.eq.s32.totalorder %s17, 1
    %p98 = por %p96, %p97
    %p99 = scmp.ne.s32.totalorder %s90, %s91
    %p100 = scmp.eq.s32.totalorder %s17, 0
    %p101 = por %p99, %p100
    %p102 = scmp.ne.s32.totalorder %s90, %s91
    %p103 = scmp.eq.s32.totalorder %s18, 1
    %p104 = por %p102, %p103
    %p106 = scmp.ne.s32.totalorder %s91, %s105
    %p107 = scmp.eq.s32.totalorder %s18, 0
    %p108 = por %p106, %p107
    %s110 = sadd.s32 %s109, 1
    %p113 = scmp.eq.s32.totalorder %s12, 1
    %p114 = scmp.ne.s32.totalorder %s109, %s111
    %p115 = scmp.eq.s32.totalorder %s12, 0
    %p116 = por %p114, %p115
    %p117 = scmp.ne.s32.totalorder %s109, %s111
    %p118 = scmp.eq.s32.totalorder %s17, 1
    %p119 = por %p117, %p118
    %p120 = scmp.ne.s32.totalorder %s111, %s112
    %p121 = scmp.eq.s32.totalorder %s17, 0
    %p122 = por %p120, %p121
    %p123 = scmp.ne.s32.totalorder %s111, %s112
    %p124 = scmp.eq.s32.totalorder %s18, 1
    %p125 = por %p123, %p124
    %p127 = scmp.ne.s32.totalorder %s112, %s126
    %p128 = scmp.eq.s32.totalorder %s18, 0
    %p129 = por %p127, %p128
    %s131 = sadd.s32 %s130, 1
    %p134 = scmp.eq.s32.totalorder %s12, 1
    %p135 = scmp.ne.s32.totalorder %s130, %s132
    %p136 = scmp.eq.s32.totalorder %s12, 0
    %p137 = por %p135, %p136
    %p138 = scmp.ne.s32.totalorder %s130, %s132
    %p139 = scmp.eq.s32.totalorder %s17, 1
    %p140 = por %p138, %p139
    %p141 = scmp.ne.s32.totalorder %s132, %s133
    %p142 = scmp.eq.s32.totalorder %s17, 0
    %p143 = por %p141, %p142
    %p144 = scmp.ne.s32.totalorder %s132, %s133
    %p145 = scmp.eq.s32.totalorder %s18, 1
    %p146 = por %p144, %p145
    %p148 = scmp.ne.s32.totalorder %s133, %s147
    %p149 = scmp.eq.s32.totalorder %s18, 0
    %p150 = por %p148, %p149
    %s151 = ssub.s32 %s12, %s19
    %p152 = scmp.eq.s32.totalorder %s151, 0
    %s154 = sadd.s32 %s153, 1
    %s155 = scalar_select %p152, %s153, %s154
    %p158 = pneg %p152
    %p159 = scmp.eq.s32.totalorder %s12, 1
    %p160 = por %p158, %p159
    %p161 = scmp.ne.s32.totalorder %s153, %s156
    %p162 = scmp.eq.s32.totalorder %s12, 0
    %p163 = por %p161, %p162
    %p164 = scmp.ne.s32.totalorder %s153, %s156
    %p165 = scmp.eq.s32.totalorder %s17, 1
    %p166 = por %p164, %p165
    %p167 = scmp.ne.s32.totalorder %s156, %s157
    %p168 = scmp.eq.s32.totalorder %s17, 0
    %p169 = por %p167, %p168
    %p170 = scmp.ne.s32.totalorder %s156, %s157
    %p171 = scmp.eq.s32.totalorder %s18, 1
    %p172 = por %p170, %p171
    %p174 = scmp.ne.s32.totalorder %s157, %s173
    %p175 = scmp.eq.s32.totalorder %s18, 0
    %p176 = por %p174, %p175
    %p177 = scmp.le.s32.totalorder 1, %s12
    %p178 = scmp.lt.s32.totalorder %s12, 3
    %p179 = pnand %p177, %p178
    %p180 = pneg %p179
    // Predicated region
    $region9: #{_lambda_.1} parent=5 // pred_check
      _
    $region10: #{_lambda_.1} parent=5 // pred_check_branch
      %182 = sbr.rel (%p179) target = $region12
    $region11: #{_lambda_.1} parent=5 // pred_region
      %s183 = ssub.s32 %s12, 1
      // Predicated region
      $region13: #{_lambda_.1} parent=11 // pred_check
        %p184 = pneg %p59
      $region14: #{_lambda_.1} parent=11 // pred_check_branch
        %186 = sbr.rel (%p184) target = $region16
      $region15: #{_lambda_.1} parent=11 // pred_region
        _
      $region16: #{_lambda_.1} parent=11 // pred_fallthru
        _
      // Predicated region
      $region17: #{_lambda_.1} parent=11 // pred_check
        %p187 = pneg %p80
      $region18: #{_lambda_.1} parent=11 // pred_check_branch
        %189 = sbr.rel (%p187) target = $region20
      $region19: #{_lambda_.1} parent=11 // pred_region
        _
      $region20: #{_lambda_.1} parent=11 // pred_fallthru
        _
      // Predicated region
      $region21: #{_lambda_.1} parent=11 // pred_check
        %p190 = pneg %p101
      $region22: #{_lambda_.1} parent=11 // pred_check_branch
        %192 = sbr.rel (%p190) target = $region24
      $region23: #{_lambda_.1} parent=11 // pred_region
        _
      $region24: #{_lambda_.1} parent=11 // pred_fallthru
        _
      // Predicated region
      $region25: #{_lambda_.1} parent=11 // pred_check
        %p193 = pneg %p122
      $region26: #{_lambda_.1} parent=11 // pred_check_branch
        %195 = sbr.rel (%p193) target = $region28
      $region27: #{_lambda_.1} parent=11 // pred_region
        _
      $region28: #{_lambda_.1} parent=11 // pred_fallthru
        _
      // Predicated region
      $region29: #{_lambda_.1} parent=11 // pred_check
        %p196 = pneg %p143
      $region30: #{_lambda_.1} parent=11 // pred_check_branch
        %198 = sbr.rel (%p196) target = $region32
      $region31: #{_lambda_.1} parent=11 // pred_region
        _
      $region32: #{_lambda_.1} parent=11 // pred_fallthru
        _
    $region12: #{_lambda_.1} parent=5 // pred_fallthru
      _
    %p199 = scmp.lt.s32.totalorder %s12, 2
    // Predicated region
    $region33: #{_lambda_.1} parent=5 // pred_check
      %p200 = pneg %p199
    $region34: #{_lambda_.1} parent=5 // pred_check_branch
      %202 = sbr.rel (%p200) target = $region36
    $region35: #{_lambda_.1} parent=5 // pred_region
      // Predicated region
      $region37: #{_lambda_.1} parent=35 // pred_check
        %p203 = pneg %p32
      $region38: #{_lambda_.1} parent=35 // pred_check_branch
        %205 = sbr.rel (%p203) target = $region40
      $region39: #{_lambda_.1} parent=35 // pred_region
        %p206 = scmp.lt.s32.totalorder %s12, 1
        %s207 = scalar_select %p206, %s12, 1
        %s208 = smul.addr %s207, 41
        %s209 = smul.addr %s208, 4
        %s210 = scalar_lea.vmem %s0, %s209
      $region40: #{_lambda_.1} parent=35 // pred_fallthru
        _
    $region36: #{_lambda_.1} parent=5 // pred_fallthru
      _
    %p211 = scmp.le.s32.totalorder 1, %s12
    %p212 = scmp.lt.s32.totalorder %s12, 3
    %p213 = pnand %p211, %p212
    %p214 = pneg %p213
    // Predicated region
    $region41: #{_lambda_.1} parent=5 // pred_check
      _
    $region42: #{_lambda_.1} parent=5 // pred_check_branch
      %216 = sbr.rel (%p213) target = $region44
    $region43: #{_lambda_.1} parent=5 // pred_region
      %s217 = ssub.s32 %s12, 1
      %p218 = scmp.lt.s32.totalorder %s17, 1
      %s219 = scalar_select %p218, %s17, 1
      %s220 = smul.addr %s219, 41
      %s221 = smul.addr %s220, 4
      %s222 = scalar_lea.vmem %s0, %s221
      %p223 = pneg %p38
      %p224 = pneg %p35
      %p225 = pneg %p59
      %p226 = pneg %p56
      %p227 = pneg %p80
      %p228 = pneg %p77
      %p229 = pneg %p101
      %p230 = pneg %p98
      %p231 = pneg %p122
      %p232 = pneg %p119
      %p233 = pneg %p143
      %p234 = pneg %p140
      %p235 = pneg %p169
      %p236 = pneg %p166
      %p237 = scmp.lt.s32.totalorder %s17, 1
      %s238 = scalar_select %p237, %s17, 1
      %s239 = smul.addr %s238, 36
      %s240 = smul.addr %s239, 8
      %s241 = scalar_lea.vmem %s6, %s240
      %p242 = scmp.lt.s32.totalorder %s17, 1
      %s243 = scalar_select %p242, %s17, 1
      %s244 = smul.addr %s243, 41
      %s245 = smul.addr %s244, 4
      %s246 = scalar_lea.vmem %s0, %s245
      %p247 = scmp.lt.s32.totalorder %s17, 1
      %s248 = scalar_select %p247, %s17, 1
      %s249 = smul.addr %s248, 36
      %s250 = smul.addr %s249, 8
      %s251 = scalar_lea.vmem %s6, %s250
      %v252 = vld [vmem:[%s246] sm:$0xf]
      %v253 = vld [vmem:[%s246 + $0x4] sm:$0xf]
      %v254 = vld [vmem:[%s246 + $0x8] sm:$0xf]
      %v255 = vld [vmem:[%s246 + $0xc] sm:$0xf]
      %v256 = vld [vmem:[%s246 + $0x10] sm:$0xf]
      %v257 = vld [vmem:[%s246 + $0x14] sm:$0xf]
      %v258 = vld [vmem:[%s246 + $0x18] sm:$0xf]
      %v259 = vld [vmem:[%s246 + $0x1c] sm:$0xf]
      %v260 = vld [vmem:[%s246 + $0x20] sm:$0xf]
      %v261 = vld [vmem:[%s246 + $0x24] sm:$0xf]
      %v262 = vld [vmem:[%s246 + $0x28] sm:$0xf]
      %v263 = vld [vmem:[%s246 + $0x2c] sm:$0xf]
      %v264 = vld [vmem:[%s246 + $0x30] sm:$0xf]
      %v265 = vld [vmem:[%s246 + $0x34] sm:$0xf]
      %v266 = vld [vmem:[%s246 + $0x38] sm:$0xf]
      %v267 = vld [vmem:[%s246 + $0x3c] sm:$0xf]
      %v268 = vld [vmem:[%s246 + $0x40] sm:$0xf]
      %v269 = vld [vmem:[%s246 + $0x44] sm:$0xf]
      %v270 = vld [vmem:[%s246 + $0x48] sm:$0xf]
      %v271 = vld [vmem:[%s246 + $0x4c] sm:$0xf]
      %v272 = vld [vmem:[%s246 + $0x50] sm:$0xf]
      %v273 = vld [vmem:[%s246 + $0x54] sm:$0xf]
      %v274 = vld [vmem:[%s246 + $0x58] sm:$0xf]
      %v275 = vld [vmem:[%s246 + $0x5c] sm:$0xf]
      %v276 = vld [vmem:[%s246 + $0x60] sm:$0xf]
      %v277 = vld [vmem:[%s246 + $0x64] sm:$0xf]
      %v278 = vld [vmem:[%s246 + $0x68] sm:$0xf]
      %v279 = vld [vmem:[%s246 + $0x6c] sm:$0xf]
      %v280 = vld [vmem:[%s246 + $0x70] sm:$0xf]
      %v281 = vld [vmem:[%s246 + $0x74] sm:$0xf]
      %v282 = vld [vmem:[%s246 + $0x78] sm:$0xf]
      %v283 = vld [vmem:[%s246 + $0x7c] sm:$0xf]
      %v284 = vld [vmem:[%s246 + $0x80] sm:$0xf]
      %v285 = vld [vmem:[%s246 + $0x84] sm:$0xf]
      %v286 = vld [vmem:[%s246 + $0x88] sm:$0xf]
      %v287 = vld [vmem:[%s246 + $0x8c] sm:$0xf]
      %v288 = vld [vmem:[%s246 + $0x90] sm:$0xf]
      %v289 = vld [vmem:[%s246 + $0x94] sm:$0xf]
      %v290 = vld [vmem:[%s246 + $0x98] sm:$0xf]
      %v291 = vld [vmem:[%s246 + $0x9c] sm:$0xf]
      %v292 = vld [vmem:[%s246 + $0xa0] sm:$0xf]
      %v293 = vld [vmem:[%s1] sm:$0xff]
      %v294 = vld [vmem:[%s1 + $0x8] sm:$0xff]
      %v295 = vld [vmem:[%s1 + $0x10] sm:$0xff]
      %v296 = vld [vmem:[%s1 + $0x18] sm:$0xff]
      %v297 = vld [vmem:[%s1 + $0x20] sm:$0xff]
      %v298 = vld [vmem:[%s1 + $0x28] sm:$0xff]
      %v299 = vld [vmem:[%s1 + $0x30] sm:$0xff]
      %v300 = vld [vmem:[%s1 + $0x38] sm:$0xff]
      %v301 = vld [vmem:[%s1 + $0x40] sm:$0xff]
      %v302 = vld [vmem:[%s1 + $0x48] sm:$0xff]
      %v303 = vld [vmem:[%s1 + $0x50] sm:$0xff]
      %v304 = vld [vmem:[%s1 + $0x58] sm:$0xff]
      %v305 = vld [vmem:[%s1 + $0x60] sm:$0xff]
      %v306 = vld [vmem:[%s1 + $0x68] sm:$0xff]
      %v307 = vld [vmem:[%s1 + $0x70] sm:$0xff]
      %v308 = vld [vmem:[%s1 + $0x78] sm:$0xff]
      %v350 = vunpack.c.l.b16 %v252
      %v351 = vunpack.c.l.b16 %v253
      %v352 = vunpack.c.l.b16 %v254
      %v353 = vunpack.c.l.b16 %v255
      %v354 = vunpack.c.l.b16 %v256
      %v355 = vunpack.c.l.b16 %v257
      %v356 = vunpack.c.l.b16 %v258
      %v357 = vunpack.c.l.b16 %v259
      %v358 = vunpack.c.l.b16 %v260
      %v359 = vunpack.c.l.b16 %v261
      %v360 = vunpack.c.l.b16 %v262
      %v361 = vunpack.c.l.b16 %v263
      %v362 = vunpack.c.l.b16 %v264
      %v363 = vunpack.c.l.b16 %v265
      %v364 = vunpack.c.l.b16 %v266
      %v365 = vunpack.c.l.b16 %v267
      %v366 = vunpack.c.l.b16 %v268
      %v367 = vunpack.c.l.b16 %v269
      %v368 = vunpack.c.l.b16 %v270
      %v369 = vunpack.c.l.b16 %v271
      %v370 = vunpack.c.l.b16 %v272
      %v371 = vunpack.c.l.b16 %v273
      %v372 = vunpack.c.l.b16 %v274
      %v373 = vunpack.c.l.b16 %v275
      %v374 = vunpack.c.l.b16 %v276
      %v375 = vunpack.c.l.b16 %v277
      %v376 = vunpack.c.l.b16 %v278
      %v377 = vunpack.c.l.b16 %v279
      %v378 = vunpack.c.l.b16 %v280
      %v379 = vunpack.c.l.b16 %v281
      %v380 = vunpack.c.l.b16 %v282
      %v381 = vunpack.c.l.b16 %v283
      %v382 = vunpack.c.l.b16 %v284
      %v383 = vunpack.c.l.b16 %v285
      %v384 = vunpack.c.l.b16 %v286
      %v385 = vunpack.c.l.b16 %v287
      %v386 = vunpack.c.l.b16 %v288
      %v387 = vunpack.c.l.b16 %v289
      %v388 = vunpack.c.l.b16 %v290
      %v389 = vunpack.c.l.b16 %v291
      %v390 = vunpack.c.l.b16 %v292
      %v391 = vpack.c.b16 %v351, %v350
      %v392 = vpack.c.b16 %v353, %v352
      %v393 = vpack.c.b16 %v355, %v354
      %v394 = vpack.c.b16 %v357, %v356
      %v395 = vpack.c.b16 %v359, %v358
      %v396 = vpack.c.b16 %v361, %v360
      %v397 = vpack.c.b16 %v363, %v362
      %v398 = vpack.c.b16 %v365, %v364
      %v399 = vpack.c.b16 %v367, %v366
      %v400 = vpack.c.b16 %v369, %v368
      %v401 = vpack.c.b16 %v371, %v370
      %v402 = vpack.c.b16 %v373, %v372
      %v403 = vpack.c.b16 %v375, %v374
      %v404 = vpack.c.b16 %v377, %v376
      %v405 = vpack.c.b16 %v379, %v378
      %v406 = vpack.c.b16 %v381, %v380
      %v407 = vpack.c.b16 %v383, %v382
      %v408 = vpack.c.b16 %v385, %v384
      %v409 = vpack.c.b16 %v387, %v386
      %v410 = vpack.c.b16 %v389, %v388
      %v411 = vpack.c.b16 %v390, %v390
      %v449 = vunpack.c.l.b16 %v293
      %v450 = vunpack.c.h.b16 %v293
      %v451 = vunpack.c.l.b16 %v294
      %v452 = vunpack.c.h.b16 %v294
      %v453 = vunpack.c.l.b16 %v295
      %v454 = vunpack.c.h.b16 %v295
      %v455 = vunpack.c.l.b16 %v296
      %v456 = vunpack.c.h.b16 %v296
      %v457 = vunpack.c.l.b16 %v297
      %v458 = vunpack.c.h.b16 %v297
      %v459 = vunpack.c.l.b16 %v298
      %v460 = vunpack.c.h.b16 %v298
      %v461 = vunpack.c.l.b16 %v299
      %v462 = vunpack.c.h.b16 %v299
      %v463 = vunpack.c.l.b16 %v300
      %v464 = vunpack.c.h.b16 %v300
      %v465 = vunpack.c.l.b16 %v301
      %v466 = vunpack.c.h.b16 %v301
      %v467 = vunpack.c.l.b16 %v302
      %v468 = vunpack.c.h.b16 %v302
      %v469 = vunpack.c.l.b16 %v303
      %v470 = vunpack.c.h.b16 %v303
      %v471 = vunpack.c.l.b16 %v304
      %v472 = vunpack.c.h.b16 %v304
      %v473 = vunpack.c.l.b16 %v305
      %v474 = vunpack.c.h.b16 %v305
      %v475 = vunpack.c.l.b16 %v306
      %v476 = vunpack.c.h.b16 %v306
      %v477 = vunpack.c.l.b16 %v307
      %v478 = vunpack.c.h.b16 %v307
      %v479 = vunpack.c.l.b16 %v308
      %v480 = vunpack.c.h.b16 %v308
      %v481 = vpack.c.b16 %v451, %v449
      %v482 = vpack.c.b16 %v452, %v450
      %v483 = vpack.c.b16 %v455, %v453
      %v484 = vpack.c.b16 %v456, %v454
      %v485 = vpack.c.b16 %v459, %v457
      %v486 = vpack.c.b16 %v460, %v458
      %v487 = vpack.c.b16 %v463, %v461
      %v488 = vpack.c.b16 %v464, %v462
      %v489 = vpack.c.b16 %v467, %v465
      %v490 = vpack.c.b16 %v468, %v466
      %v491 = vpack.c.b16 %v471, %v469
      %v492 = vpack.c.b16 %v472, %v470
      %v493 = vpack.c.b16 %v475, %v473
      %v494 = vpack.c.b16 %v476, %v474
      %v495 = vpack.c.b16 %v479, %v477
      %v496 = vpack.c.b16 %v480, %v478
      %513 = vmatpush.bf16.msra.mxu0 %v495
      %514 = vmatpush.bf16.msra.mxu0 %v493
      %515 = vmatpush.bf16.msra.mxu0 %v491
      %516 = vmatpush.bf16.msra.mxu0 %v489
      %517 = vmatpush.bf16.msra.mxu0 %v487
      %518 = vmatpush.bf16.msra.mxu0 %v485
      %519 = vmatpush.bf16.msra.mxu0 %v483
      %520 = vmatpush.bf16.msra.mxu0 %v481
      %521 = vmatmul.bf16.gmra.mxu0 %v391
      %v522 = vpop.f32.mrf.mxu0
      %v523 = vadd.f32 0.0, %v522
      %v524 = vpop.f32.mrf.mxu0
      %v525 = vadd.f32 0.0, %v524
      %526 = vmatmul.bf16.gmra.mxu0 %v392
      %v527 = vpop.f32.mrf.mxu0
      %v528 = vadd.f32 0.0, %v527
      %v529 = vpop.f32.mrf.mxu0
      %v530 = vadd.f32 0.0, %v529
      %531 = vmatmul.bf16.gmra.mxu0 %v393
      %v532 = vpop.f32.mrf.mxu0
      %v533 = vadd.f32 0.0, %v532
      %v534 = vpop.f32.mrf.mxu0
      %v535 = vadd.f32 0.0, %v534
      %536 = vmatmul.bf16.gmra.mxu0 %v394
      %v537 = vpop.f32.mrf.mxu0
      %v538 = vadd.f32 0.0, %v537
      %v539 = vpop.f32.mrf.mxu0
      %v540 = vadd.f32 0.0, %v539
      %541 = vmatmul.bf16.gmra.mxu0 %v395
      %v542 = vpop.f32.mrf.mxu0
      %v543 = vadd.f32 0.0, %v542
      %v544 = vpop.f32.mrf.mxu0
      %v545 = vadd.f32 0.0, %v544
      %546 = vmatmul.bf16.gmra.mxu0 %v396
      %v547 = vpop.f32.mrf.mxu0
      %v548 = vadd.f32 0.0, %v547
      %v549 = vpop.f32.mrf.mxu0
      %v550 = vadd.f32 0.0, %v549
      %551 = vmatmul.bf16.gmra.mxu0 %v397
      %v552 = vpop.f32.mrf.mxu0
      %v553 = vadd.f32 0.0, %v552
      %v554 = vpop.f32.mrf.mxu0
      %v555 = vadd.f32 0.0, %v554
      %556 = vmatmul.bf16.gmra.mxu0 %v398
      %v557 = vpop.f32.mrf.mxu0
      %v558 = vadd.f32 0.0, %v557
      %v559 = vpop.f32.mrf.mxu0
      %v560 = vadd.f32 0.0, %v559
      %561 = vmatmul.bf16.gmra.mxu0 %v399
      %v562 = vpop.f32.mrf.mxu0
      %v563 = vadd.f32 0.0, %v562
      %v564 = vpop.f32.mrf.mxu0
      %v565 = vadd.f32 0.0, %v564
      %566 = vmatmul.bf16.gmra.mxu0 %v400
      %v567 = vpop.f32.mrf.mxu0
      %v568 = vadd.f32 0.0, %v567
      %v569 = vpop.f32.mrf.mxu0
      %v570 = vadd.f32 0.0, %v569
      %571 = vmatmul.bf16.gmra.mxu0 %v401
      %v572 = vpop.f32.mrf.mxu0
      %v573 = vadd.f32 0.0, %v572
      %v574 = vpop.f32.mrf.mxu0
      %v575 = vadd.f32 0.0, %v574
      %576 = vmatmul.bf16.gmra.mxu0 %v402
      %v577 = vpop.f32.mrf.mxu0
      %v578 = vadd.f32 0.0, %v577
      %v579 = vpop.f32.mrf.mxu0
      %v580 = vadd.f32 0.0, %v579
      %581 = vmatmul.bf16.gmra.mxu0 %v403
      %v582 = vpop.f32.mrf.mxu0
      %v583 = vadd.f32 0.0, %v582
      %v584 = vpop.f32.mrf.mxu0
      %v585 = vadd.f32 0.0, %v584
      %586 = vmatmul.bf16.gmra.mxu0 %v404
      %v587 = vpop.f32.mrf.mxu0
      %v588 = vadd.f32 0.0, %v587
      %v589 = vpop.f32.mrf.mxu0
      %v590 = vadd.f32 0.0, %v589
      %591 = vmatmul.bf16.gmra.mxu0 %v405
      %v592 = vpop.f32.mrf.mxu0
      %v593 = vadd.f32 0.0, %v592
      %v594 = vpop.f32.mrf.mxu0
      %v595 = vadd.f32 0.0, %v594
      %596 = vmatmul.bf16.gmra.mxu0 %v406
      %v597 = vpop.f32.mrf.mxu0
      %v598 = vadd.f32 0.0, %v597
      %v599 = vpop.f32.mrf.mxu0
      %v600 = vadd.f32 0.0, %v599
      %601 = vmatmul.bf16.gmra.mxu0 %v407
      %v602 = vpop.f32.mrf.mxu0
      %v603 = vadd.f32 0.0, %v602
      %v604 = vpop.f32.mrf.mxu0
      %v605 = vadd.f32 0.0, %v604
      %606 = vmatmul.bf16.gmra.mxu0 %v408
      %v607 = vpop.f32.mrf.mxu0
      %v608 = vadd.f32 0.0, %v607
      %v609 = vpop.f32.mrf.mxu0
      %v610 = vadd.f32 0.0, %v609
      %611 = vmatmul.bf16.gmra.mxu0 %v409
      %v612 = vpop.f32.mrf.mxu0
      %v613 = vadd.f32 0.0, %v612
      %v614 = vpop.f32.mrf.mxu0
      %v615 = vadd.f32 0.0, %v614
      %616 = vmatmul.bf16.gmra.mxu0 %v410
      %v617 = vpop.f32.mrf.mxu0
      %v618 = vadd.f32 0.0, %v617
      %v619 = vpop.f32.mrf.mxu0
      %v620 = vadd.f32 0.0, %v619
      %621 = vmatmul.bf16.gmra.mxu0 %v411
      %v622 = vpop.f32.mrf.mxu0
      %v623 = vadd.f32 0.0, %v622
      %v624 = vpop.f32.mrf.mxu0
      %625 = vdwg.mxu0
      %626 = vmatpush.bf16.msra.mxu0 %v496
      %627 = vmatpush.bf16.msra.mxu0 %v494
      %628 = vmatpush.bf16.msra.mxu0 %v492
      %629 = vmatpush.bf16.msra.mxu0 %v490
      %630 = vmatpush.bf16.msra.mxu0 %v488
      %631 = vmatpush.bf16.msra.mxu0 %v486
      %632 = vmatpush.bf16.msra.mxu0 %v484
      %633 = vmatpush.bf16.msra.mxu0 %v482
      %634 = vmatmul.bf16.gmra.mxu0 %v391
      %v635 = vpop.f32.mrf.mxu0
      %v636 = vadd.f32 0.0, %v635
      %v637 = vpop.f32.mrf.mxu0
      %v638 = vadd.f32 0.0, %v637
      %639 = vmatmul.bf16.gmra.mxu0 %v392
      %v640 = vpop.f32.mrf.mxu0
      %v641 = vadd.f32 0.0, %v640
      %v642 = vpop.f32.mrf.mxu0
      %v643 = vadd.f32 0.0, %v642
      %644 = vmatmul.bf16.gmra.mxu0 %v393
      %v645 = vpop.f32.mrf.mxu0
      %v646 = vadd.f32 0.0, %v645
      %v647 = vpop.f32.mrf.mxu0
      %v648 = vadd.f32 0.0, %v647
      %649 = vmatmul.bf16.gmra.mxu0 %v394
      %v650 = vpop.f32.mrf.mxu0
      %v651 = vadd.f32 0.0, %v650
      %v652 = vpop.f32.mrf.mxu0
      %v653 = vadd.f32 0.0, %v652
      %654 = vmatmul.bf16.gmra.mxu0 %v395
      %v655 = vpop.f32.mrf.mxu0
      %v656 = vadd.f32 0.0, %v655
      %v657 = vpop.f32.mrf.mxu0
      %v658 = vadd.f32 0.0, %v657
      %659 = vmatmul.bf16.gmra.mxu0 %v396
      %v660 = vpop.f32.mrf.mxu0
      %v661 = vadd.f32 0.0, %v660
      %v662 = vpop.f32.mrf.mxu0
      %v663 = vadd.f32 0.0, %v662
      %664 = vmatmul.bf16.gmra.mxu0 %v397
      %v665 = vpop.f32.mrf.mxu0
      %v666 = vadd.f32 0.0, %v665
      %v667 = vpop.f32.mrf.mxu0
      %v668 = vadd.f32 0.0, %v667
      %669 = vmatmul.bf16.gmra.mxu0 %v398
      %v670 = vpop.f32.mrf.mxu0
      %v671 = vadd.f32 0.0, %v670
      %v672 = vpop.f32.mrf.mxu0
      %v673 = vadd.f32 0.0, %v672
      %674 = vmatmul.bf16.gmra.mxu0 %v399
      %v675 = vpop.f32.mrf.mxu0
      %v676 = vadd.f32 0.0, %v675
      %v677 = vpop.f32.mrf.mxu0
      %v678 = vadd.f32 0.0, %v677
      %679 = vmatmul.bf16.gmra.mxu0 %v400
      %v680 = vpop.f32.mrf.mxu0
      %v681 = vadd.f32 0.0, %v680
      %v682 = vpop.f32.mrf.mxu0
      %v683 = vadd.f32 0.0, %v682
      %684 = vmatmul.bf16.gmra.mxu0 %v401
      %v685 = vpop.f32.mrf.mxu0
      %v686 = vadd.f32 0.0, %v685
      %v687 = vpop.f32.mrf.mxu0
      %v688 = vadd.f32 0.0, %v687
      %689 = vmatmul.bf16.gmra.mxu0 %v402
      %v690 = vpop.f32.mrf.mxu0
      %v691 = vadd.f32 0.0, %v690
      %v692 = vpop.f32.mrf.mxu0
      %v693 = vadd.f32 0.0, %v692
      %694 = vmatmul.bf16.gmra.mxu0 %v403
      %v695 = vpop.f32.mrf.mxu0
      %v696 = vadd.f32 0.0, %v695
      %v697 = vpop.f32.mrf.mxu0
      %v698 = vadd.f32 0.0, %v697
      %699 = vmatmul.bf16.gmra.mxu0 %v404
      %v700 = vpop.f32.mrf.mxu0
      %v701 = vadd.f32 0.0, %v700
      %v702 = vpop.f32.mrf.mxu0
      %v703 = vadd.f32 0.0, %v702
      %704 = vmatmul.bf16.gmra.mxu0 %v405
      %v705 = vpop.f32.mrf.mxu0
      %v706 = vadd.f32 0.0, %v705
      %v707 = vpop.f32.mrf.mxu0
      %v708 = vadd.f32 0.0, %v707
      %709 = vmatmul.bf16.gmra.mxu0 %v406
      %v710 = vpop.f32.mrf.mxu0
      %v711 = vadd.f32 0.0, %v710
      %v712 = vpop.f32.mrf.mxu0
      %v713 = vadd.f32 0.0, %v712
      %714 = vmatmul.bf16.gmra.mxu0 %v407
      %v715 = vpop.f32.mrf.mxu0
      %v716 = vadd.f32 0.0, %v715
      %v717 = vpop.f32.mrf.mxu0
      %v718 = vadd.f32 0.0, %v717
      %719 = vmatmul.bf16.gmra.mxu0 %v408
      %v720 = vpop.f32.mrf.mxu0
      %v721 = vadd.f32 0.0, %v720
      %v722 = vpop.f32.mrf.mxu0
      %v723 = vadd.f32 0.0, %v722
      %724 = vmatmul.bf16.gmra.mxu0 %v409
      %v725 = vpop.f32.mrf.mxu0
      %v726 = vpop.f32.mrf.mxu0
      %727 = vmatmul.bf16.gmra.mxu0 %v410
      %v728 = vpop.f32.mrf.mxu0
      %v729 = vpop.f32.mrf.mxu0
      %730 = vmatmul.bf16.gmra.mxu0 %v411
      %v731 = vpop.f32.mrf.mxu0
      %v732 = vpop.f32.mrf.mxu0
      %733 = vdwg.mxu0
      %v734 = vld [vmem:[%s2] sm:$0x1]
      %v736 = vperm.slane %v734, 0
      %v738 = vadd.f32 %v523, %v736
      %v739 = vadd.f32 %v525, %v736
      %v740 = vadd.f32 %v528, %v736
      %v741 = vadd.f32 %v530, %v736
      %v742 = vadd.f32 %v533, %v736
      %v743 = vadd.f32 %v535, %v736
      %v744 = vadd.f32 %v538, %v736
      %v745 = vadd.f32 %v540, %v736
      %v746 = vadd.f32 %v543, %v736
      %v747 = vadd.f32 %v545, %v736
      %v748 = vadd.f32 %v548, %v736
      %v749 = vadd.f32 %v550, %v736
      %v750 = vadd.f32 %v553, %v736
      %v751 = vadd.f32 %v555, %v736
      %v752 = vadd.f32 %v558, %v736
      %v753 = vadd.f32 %v560, %v736
      %v754 = vadd.f32 %v563, %v736
      %v755 = vadd.f32 %v565, %v736
      %v756 = vadd.f32 %v568, %v736
      %v757 = vadd.f32 %v570, %v736
      %v758 = vadd.f32 %v573, %v736
      %v759 = vadd.f32 %v575, %v736
      %v760 = vadd.f32 %v578, %v736
      %v761 = vadd.f32 %v580, %v736
      %v762 = vadd.f32 %v583, %v736
      %v763 = vadd.f32 %v585, %v736
      %v764 = vadd.f32 %v588, %v736
      %v765 = vadd.f32 %v590, %v736
      %v766 = vadd.f32 %v593, %v736
      %v767 = vadd.f32 %v595, %v736
      %v768 = vadd.f32 %v598, %v736
      %v769 = vadd.f32 %v600, %v736
      %v770 = vadd.f32 %v603, %v736
      %v771 = vadd.f32 %v605, %v736
      %v772 = vadd.f32 %v608, %v736
      %v773 = vadd.f32 %v610, %v736
      %v774 = vadd.f32 %v613, %v736
      %v775 = vadd.f32 %v615, %v736
      %v776 = vadd.f32 %v618, %v736
      %v777 = vadd.f32 %v620, %v736
      %v778 = vadd.f32 %v623, %v736
      %v779 = vmax.f32 %v738, 0.0
      %v780 = vmax.f32 %v739, 0.0
      %v781 = vmax.f32 %v740, 0.0
      %v782 = vmax.f32 %v741, 0.0
      %v783 = vmax.f32 %v742, 0.0
      %v784 = vmax.f32 %v743, 0.0
      %v785 = vmax.f32 %v744, 0.0
      %v786 = vmax.f32 %v745, 0.0
      %v787 = vmax.f32 %v746, 0.0
      %v788 = vmax.f32 %v747, 0.0
      %v789 = vmax.f32 %v748, 0.0
      %v790 = vmax.f32 %v749, 0.0
      %v791 = vmax.f32 %v750, 0.0
      %v792 = vmax.f32 %v751, 0.0
      %v793 = vmax.f32 %v752, 0.0
      %v794 = vmax.f32 %v753, 0.0
      %v795 = vmax.f32 %v754, 0.0
      %v796 = vmax.f32 %v755, 0.0
      %v797 = vmax.f32 %v756, 0.0
      %v798 = vmax.f32 %v757, 0.0
      %v799 = vmax.f32 %v758, 0.0
      %v800 = vmax.f32 %v759, 0.0
      %v801 = vmax.f32 %v760, 0.0
      %v802 = vmax.f32 %v761, 0.0
      %v803 = vmax.f32 %v762, 0.0
      %v804 = vmax.f32 %v763, 0.0
      %v805 = vmax.f32 %v764, 0.0
      %v806 = vmax.f32 %v765, 0.0
      %v807 = vmax.f32 %v766, 0.0
      %v808 = vmax.f32 %v767, 0.0
      %v809 = vmax.f32 %v768, 0.0
      %v810 = vmax.f32 %v769, 0.0
      %v811 = vmax.f32 %v770, 0.0
      %v812 = vmax.f32 %v771, 0.0
      %v813 = vmax.f32 %v772, 0.0
      %v814 = vmax.f32 %v773, 0.0
      %v815 = vmax.f32 %v774, 0.0
      %v816 = vmax.f32 %v775, 0.0
      %v817 = vmax.f32 %v776, 0.0
      %v818 = vmax.f32 %v777, 0.0
      %v819 = vmax.f32 %v778, 0.0
      %v820 = vld [vmem:[%s5] sm:$0xff]
      %v821 = vld [vmem:[%s5 + $0x8] sm:$0xff]
      %v822 = vld [vmem:[%s5 + $0x10] sm:$0xff]
      %v823 = vld [vmem:[%s5 + $0x18] sm:$0xff]
      %v824 = vld [vmem:[%s5 + $0x20] sm:$0xff]
      %v825 = vld [vmem:[%s5 + $0x28] sm:$0xff]
      %v826 = vld [vmem:[%s5 + $0x30] sm:$0xff]
      %v827 = vld [vmem:[%s5 + $0x38] sm:$0xff]
      %v828 = vld [vmem:[%s5 + $0x40] sm:$0xff]
      %v829 = vld [vmem:[%s5 + $0x48] sm:$0xff]
      %v830 = vld [vmem:[%s5 + $0x50] sm:$0xff]
      %v831 = vld [vmem:[%s5 + $0x58] sm:$0xff]
      %v832 = vld [vmem:[%s5 + $0x60] sm:$0xff]
      %v833 = vld [vmem:[%s5 + $0x68] sm:$0xff]
      %v834 = vld [vmem:[%s5 + $0x70] sm:$0xff]
      %v835 = vld [vmem:[%s5 + $0x78] sm:$0xff]
      %v836 = vld [vmem:[%s5 + $0x80] sm:$0xff]
      %v837 = vld [vmem:[%s5 + $0x88] sm:$0xff]
      %v838 = vld [vmem:[%s5 + $0x90] sm:$0xff]
      %v839 = vld [vmem:[%s5 + $0x98] sm:$0xff]
      %v840 = vld [vmem:[%s5 + $0xa0] sm:$0xff]
      %v841 = vld [vmem:[%s5 + $0xa8] sm:$0xff]
      %v842 = vld [vmem:[%s5 + $0xb0] sm:$0xff]
      %v843 = vld [vmem:[%s5 + $0xb8] sm:$0xff]
      %v844 = vld [vmem:[%s5 + $0xc0] sm:$0xff]
      %v845 = vld [vmem:[%s5 + $0xc8] sm:$0xff]
      %v846 = vld [vmem:[%s5 + $0xd0] sm:$0xff]
      %v847 = vld [vmem:[%s5 + $0xd8] sm:$0xff]
      %v848 = vld [vmem:[%s5 + $0xe0] sm:$0xff]
      %v849 = vld [vmem:[%s5 + $0xe8] sm:$0xff]
      %v850 = vld [vmem:[%s5 + $0xf0] sm:$0xff]
      %v851 = vld [vmem:[%s5 + $0xf8] sm:$0xff]
      %v852 = vld [vmem:[%s5 + $0x100] sm:$0xff]
      %v853 = vld [vmem:[%s5 + $0x108] sm:$0xff]
      %v854 = vld [vmem:[%s5 + $0x110] sm:$0xff]
      %v855 = vld [vmem:[%s5 + $0x118] sm:$0xff]
      %v856 = vld [vmem:[%s5 + $0x120] sm:$0xff]
      %v857 = vld [vmem:[%s5 + $0x128] sm:$0xff]
      %v858 = vld [vmem:[%s5 + $0x130] sm:$0xff]
      %v859 = vld [vmem:[%s5 + $0x138] sm:$0xff]
      %v860 = vld [vmem:[%s5 + $0x140] sm:$0xff]
      %862 = vset.pattern.permute.xlu0 0
      %863 = vperm.xlu0 %862, %v820
      %v864 = vpop.permute.xlu0 %863
      %867 = vset.pattern.permute.xlu0 0
      %868 = vperm.xlu0 %867, %v821
      %v869 = vpop.permute.xlu0 %868
      %872 = vset.pattern.permute.xlu0 0
      %873 = vperm.xlu0 %872, %v822
      %v874 = vpop.permute.xlu0 %873
      %877 = vset.pattern.permute.xlu0 0
      %878 = vperm.xlu0 %877, %v823
      %v879 = vpop.permute.xlu0 %878
      %882 = vset.pattern.permute.xlu0 0
      %883 = vperm.xlu0 %882, %v824
      %v884 = vpop.permute.xlu0 %883
      %887 = vset.pattern.permute.xlu0 0
      %888 = vperm.xlu0 %887, %v825
      %v889 = vpop.permute.xlu0 %888
      %892 = vset.pattern.permute.xlu0 0
      %893 = vperm.xlu0 %892, %v826
      %v894 = vpop.permute.xlu0 %893
      %897 = vset.pattern.permute.xlu0 0
      %898 = vperm.xlu0 %897, %v827
      %v899 = vpop.permute.xlu0 %898
      %902 = vset.pattern.permute.xlu0 0
      %903 = vperm.xlu0 %902, %v828
      %v904 = vpop.permute.xlu0 %903
      %907 = vset.pattern.permute.xlu0 0
      %908 = vperm.xlu0 %907, %v829
      %v909 = vpop.permute.xlu0 %908
      %912 = vset.pattern.permute.xlu0 0
      %913 = vperm.xlu0 %912, %v830
      %v914 = vpop.permute.xlu0 %913
      %917 = vset.pattern.permute.xlu0 0
      %918 = vperm.xlu0 %917, %v831
      %v919 = vpop.permute.xlu0 %918
      %922 = vset.pattern.permute.xlu0 0
      %923 = vperm.xlu0 %922, %v832
      %v924 = vpop.permute.xlu0 %923
      %927 = vset.pattern.permute.xlu0 0
      %928 = vperm.xlu0 %927, %v833
      %v929 = vpop.permute.xlu0 %928
      %932 = vset.pattern.permute.xlu0 0
      %933 = vperm.xlu0 %932, %v834
      %v934 = vpop.permute.xlu0 %933
      %937 = vset.pattern.permute.xlu0 0
      %938 = vperm.xlu0 %937, %v835
      %v939 = vpop.permute.xlu0 %938
      %942 = vset.pattern.permute.xlu0 0
      %943 = vperm.xlu0 %942, %v836
      %v944 = vpop.permute.xlu0 %943
      %947 = vset.pattern.permute.xlu0 0
      %948 = vperm.xlu0 %947, %v837
      %v949 = vpop.permute.xlu0 %948
      %952 = vset.pattern.permute.xlu0 0
      %953 = vperm.xlu0 %952, %v838
      %v954 = vpop.permute.xlu0 %953
      %957 = vset.pattern.permute.xlu0 0
      %958 = vperm.xlu0 %957, %v839
      %v959 = vpop.permute.xlu0 %958
      %962 = vset.pattern.permute.xlu0 0
      %963 = vperm.xlu0 %962, %v840
      %v964 = vpop.permute.xlu0 %963
      %967 = vset.pattern.permute.xlu0 0
      %968 = vperm.xlu0 %967, %v841
      %v969 = vpop.permute.xlu0 %968
      %972 = vset.pattern.permute.xlu0 0
      %973 = vperm.xlu0 %972, %v842
      %v974 = vpop.permute.xlu0 %973
      %977 = vset.pattern.permute.xlu0 0
      %978 = vperm.xlu0 %977, %v843
      %v979 = vpop.permute.xlu0 %978
      %982 = vset.pattern.permute.xlu0 0
      %983 = vperm.xlu0 %982, %v844
      %v984 = vpop.permute.xlu0 %983
      %987 = vset.pattern.permute.xlu0 0
      %988 = vperm.xlu0 %987, %v845
      %v989 = vpop.permute.xlu0 %988
      %992 = vset.pattern.permute.xlu0 0
      %993 = vperm.xlu0 %992, %v846
      %v994 = vpop.permute.xlu0 %993
      %997 = vset.pattern.permute.xlu0 0
      %998 = vperm.xlu0 %997, %v847
      %v999 = vpop.permute.xlu0 %998
      %1002 = vset.pattern.permute.xlu0 0
      %1003 = vperm.xlu0 %1002, %v848
      %v1004 = vpop.permute.xlu0 %1003
      %1007 = vset.pattern.permute.xlu0 0
      %1008 = vperm.xlu0 %1007, %v849
      %v1009 = vpop.permute.xlu0 %1008
      %1012 = vset.pattern.permute.xlu0 0
      %1013 = vperm.xlu0 %1012, %v850
      %v1014 = vpop.permute.xlu0 %1013
      %1017 = vset.pattern.permute.xlu0 0
      %1018 = vperm.xlu0 %1017, %v851
      %v1019 = vpop.permute.xlu0 %1018
      %1022 = vset.pattern.permute.xlu0 0
      %1023 = vperm.xlu0 %1022, %v852
      %v1024 = vpop.permute.xlu0 %1023
      %1027 = vset.pattern.permute.xlu0 0
      %1028 = vperm.xlu0 %1027, %v853
      %v1029 = vpop.permute.xlu0 %1028
      %1032 = vset.pattern.permute.xlu0 0
      %1033 = vperm.xlu0 %1032, %v854
      %v1034 = vpop.permute.xlu0 %1033
      %1037 = vset.pattern.permute.xlu0 0
      %1038 = vperm.xlu0 %1037, %v855
      %v1039 = vpop.permute.xlu0 %1038
      %1042 = vset.pattern.permute.xlu0 0
      %1043 = vperm.xlu0 %1042, %v856
      %v1044 = vpop.permute.xlu0 %1043
      %1047 = vset.pattern.permute.xlu0 0
      %1048 = vperm.xlu0 %1047, %v857
      %v1049 = vpop.permute.xlu0 %1048
      %1052 = vset.pattern.permute.xlu0 0
      %1053 = vperm.xlu0 %1052, %v858
      %v1054 = vpop.permute.xlu0 %1053
      %1057 = vset.pattern.permute.xlu0 0
      %1058 = vperm.xlu0 %1057, %v859
      %v1059 = vpop.permute.xlu0 %1058
      %1062 = vset.pattern.permute.xlu0 0
      %1063 = vperm.xlu0 %1062, %v860
      %v1064 = vpop.permute.xlu0 %1063
      %v1066 = vmul.f32 %v779, %v864
      %v1067 = vmul.f32 %v780, %v869
      %v1068 = vmul.f32 %v781, %v874
      %v1069 = vmul.f32 %v782, %v879
      %v1070 = vmul.f32 %v783, %v884
      %v1071 = vmul.f32 %v784, %v889
      %v1072 = vmul.f32 %v785, %v894
      %v1073 = vmul.f32 %v786, %v899
      %v1074 = vmul.f32 %v787, %v904
      %v1075 = vmul.f32 %v788, %v909
      %v1076 = vmul.f32 %v789, %v914
      %v1077 = vmul.f32 %v790, %v919
      %v1078 = vmul.f32 %v791, %v924
      %v1079 = vmul.f32 %v792, %v929
      %v1080 = vmul.f32 %v793, %v934
      %v1081 = vmul.f32 %v794, %v939
      %v1082 = vmul.f32 %v795, %v944
      %v1083 = vmul.f32 %v796, %v949
      %v1084 = vmul.f32 %v797, %v954
      %v1085 = vmul.f32 %v798, %v959
      %v1086 = vmul.f32 %v799, %v964
      %v1087 = vmul.f32 %v800, %v969
      %v1088 = vmul.f32 %v801, %v974
      %v1089 = vmul.f32 %v802, %v979
      %v1090 = vmul.f32 %v803, %v984
      %v1091 = vmul.f32 %v804, %v989
      %v1092 = vmul.f32 %v805, %v994
      %v1093 = vmul.f32 %v806, %v999
      %v1094 = vmul.f32 %v807, %v1004
      %v1095 = vmul.f32 %v808, %v1009
      %v1096 = vmul.f32 %v809, %v1014
      %v1097 = vmul.f32 %v810, %v1019
      %v1098 = vmul.f32 %v811, %v1024
      %v1099 = vmul.f32 %v812, %v1029
      %v1100 = vmul.f32 %v813, %v1034
      %v1101 = vmul.f32 %v814, %v1039
      %v1102 = vmul.f32 %v815, %v1044
      %v1103 = vmul.f32 %v816, %v1049
      %v1104 = vmul.f32 %v817, %v1054
      %v1105 = vmul.f32 %v818, %v1059
      %v1106 = vmul.f32 %v819, %v1064
      %v1107 = vpack.c.bf16 %v1066, %v1066
      %v1108 = vpack.c.bf16 %v1067, %v1067
      %v1109 = vpack.c.bf16 %v1068, %v1068
      %v1110 = vpack.c.bf16 %v1069, %v1069
      %v1111 = vpack.c.bf16 %v1070, %v1070
      %v1112 = vpack.c.bf16 %v1071, %v1071
      %v1113 = vpack.c.bf16 %v1072, %v1072
      %v1114 = vpack.c.bf16 %v1073, %v1073
      %v1115 = vpack.c.bf16 %v1074, %v1074
      %v1116 = vpack.c.bf16 %v1075, %v1075
      %v1117 = vpack.c.bf16 %v1076, %v1076
      %v1118 = vpack.c.bf16 %v1077, %v1077
      %v1119 = vpack.c.bf16 %v1078, %v1078
      %v1120 = vpack.c.bf16 %v1079, %v1079
      %v1121 = vpack.c.bf16 %v1080, %v1080
      %v1122 = vpack.c.bf16 %v1081, %v1081
      %v1123 = vpack.c.bf16 %v1082, %v1082
      %v1124 = vpack.c.bf16 %v1083, %v1083
      %v1125 = vpack.c.bf16 %v1084, %v1084
      %v1126 = vpack.c.bf16 %v1085, %v1085
      %v1127 = vpack.c.bf16 %v1086, %v1086
      %v1128 = vpack.c.bf16 %v1087, %v1087
      %v1129 = vpack.c.bf16 %v1088, %v1088
      %v1130 = vpack.c.bf16 %v1089, %v1089
      %v1131 = vpack.c.bf16 %v1090, %v1090
      %v1132 = vpack.c.bf16 %v1091, %v1091
      %v1133 = vpack.c.bf16 %v1092, %v1092
      %v1134 = vpack.c.bf16 %v1093, %v1093
      %v1135 = vpack.c.bf16 %v1094, %v1094
      %v1136 = vpack.c.bf16 %v1095, %v1095
      %v1137 = vpack.c.bf16 %v1096, %v1096
      %v1138 = vpack.c.bf16 %v1097, %v1097
      %v1139 = vpack.c.bf16 %v1098, %v1098
      %v1140 = vpack.c.bf16 %v1099, %v1099
      %v1141 = vpack.c.bf16 %v1100, %v1100
      %v1142 = vpack.c.bf16 %v1101, %v1101
      %v1143 = vpack.c.bf16 %v1102, %v1102
      %v1144 = vpack.c.bf16 %v1103, %v1103
      %v1145 = vpack.c.bf16 %v1104, %v1104
      %v1146 = vpack.c.bf16 %v1105, %v1105
      %v1147 = vpack.c.bf16 %v1106, %v1106
      %1148 = vst [vmem:[#allocation2] sm:$0xf] %v1107
      %1149 = vst [vmem:[#allocation2 + $0x4] sm:$0xf] %v1108
      %1150 = vst [vmem:[#allocation2 + $0x8] sm:$0xf] %v1109
      %1151 = vst [vmem:[#allocation2 + $0xc] sm:$0xf] %v1110
      %1152 = vst [vmem:[#allocation2 + $0x10] sm:$0xf] %v1111
      %1153 = vst [vmem:[#allocation2 + $0x14] sm:$0xf] %v1112
      %1154 = vst [vmem:[#allocation2 + $0x18] sm:$0xf] %v1113
      %1155 = vst [vmem:[#allocation2 + $0x1c] sm:$0xf] %v1114
      %1156 = vst [vmem:[#allocation2 + $0x20] sm:$0xf] %v1115
      %1157 = vst [vmem:[#allocation2 + $0x24] sm:$0xf] %v1116
      %1158 = vst [vmem:[#allocation2 + $0x28] sm:$0xf] %v1117
      %1159 = vst [vmem:[#allocation2 + $0x2c] sm:$0xf] %v1118
      %1160 = vst [vmem:[#allocation2 + $0x30] sm:$0xf] %v1119
      %1161 = vst [vmem:[#allocation2 + $0x34] sm:$0xf] %v1120
      %1162 = vst [vmem:[#allocation2 + $0x38] sm:$0xf] %v1121
      %1163 = vst [vmem:[#allocation2 + $0x3c] sm:$0xf] %v1122
      %1164 = vst [vmem:[#allocation2 + $0x40] sm:$0xf] %v1123
      %1165 = vst [vmem:[#allocation2 + $0x44] sm:$0xf] %v1124
      %1166 = vst [vmem:[#allocation2 + $0x48] sm:$0xf] %v1125
      %1167 = vst [vmem:[#allocation2 + $0x4c] sm:$0xf] %v1126
      %1168 = vst [vmem:[#allocation2 + $0x50] sm:$0xf] %v1127
      %1169 = vst [vmem:[#allocation2 + $0x54] sm:$0xf] %v1128
      %1170 = vst [vmem:[#allocation2 + $0x58] sm:$0xf] %v1129
      %1171 = vst [vmem:[#allocation2 + $0x5c] sm:$0xf] %v1130
      %1172 = vst [vmem:[#allocation2 + $0x60] sm:$0xf] %v1131
      %1173 = vst [vmem:[#allocation2 + $0x64] sm:$0xf] %v1132
      %1174 = vst [vmem:[#allocation2 + $0x68] sm:$0xf] %v1133
      %1175 = vst [vmem:[#allocation2 + $0x6c] sm:$0xf] %v1134
      %1176 = vst [vmem:[#allocation2 + $0x70] sm:$0xf] %v1135
      %1177 = vst [vmem:[#allocation2 + $0x74] sm:$0xf] %v1136
      %1178 = vst [vmem:[#allocation2 + $0x78] sm:$0xf] %v1137
      %1179 = vst [vmem:[#allocation2 + $0x7c] sm:$0xf] %v1138
      %1180 = vst [vmem:[#allocation2 + $0x80] sm:$0xf] %v1139
      %1181 = vst [vmem:[#allocation2 + $0x84] sm:$0xf] %v1140
      %1182 = vst [vmem:[#allocation2 + $0x88] sm:$0xf] %v1141
      %1183 = vst [vmem:[#allocation2 + $0x8c] sm:$0xf] %v1142
      %1184 = vst [vmem:[#allocation2 + $0x90] sm:$0xf] %v1143
      %1185 = vst [vmem:[#allocation2 + $0x94] sm:$0xf] %v1144
      %1186 = vst [vmem:[#allocation2 + $0x98] sm:$0xf] %v1145
      %1187 = vst [vmem:[#allocation2 + $0x9c] sm:$0xf] %v1146
      %1188 = vst [vmem:[#allocation2 + $0xa0] sm:$0xf] %v1147
      %v1189 = vld [vmem:[#allocation2] sm:$0xf]
      %v1190 = vld [vmem:[#allocation2 + $0x4] sm:$0xf]
      %v1191 = vld [vmem:[#allocation2 + $0x8] sm:$0xf]
      %v1192 = vld [vmem:[#allocation2 + $0xc] sm:$0xf]
      %v1193 = vld [vmem:[#allocation2 + $0x10] sm:$0xf]
      %v1194 = vld [vmem:[#allocation2 + $0x14] sm:$0xf]
      %v1195 = vld [vmem:[#allocation2 + $0x18] sm:$0xf]
      %v1196 = vld [vmem:[#allocation2 + $0x1c] sm:$0xf]
      %v1197 = vld [vmem:[#allocation2 + $0x20] sm:$0xf]
      %v1198 = vld [vmem:[#allocation2 + $0x24] sm:$0xf]
      %v1199 = vld [vmem:[#allocation2 + $0x28] sm:$0xf]
      %v1200 = vld [vmem:[#allocation2 + $0x2c] sm:$0xf]
      %v1201 = vld [vmem:[#allocation2 + $0x30] sm:$0xf]
      %v1202 = vld [vmem:[#allocation2 + $0x34] sm:$0xf]
      %v1203 = vld [vmem:[#allocation2 + $0x38] sm:$0xf]
      %v1204 = vld [vmem:[#allocation2 + $0x3c] sm:$0xf]
      %v1205 = vld [vmem:[#allocation2 + $0x40] sm:$0xf]
      %v1206 = vld [vmem:[#allocation2 + $0x44] sm:$0xf]
      %v1207 = vld [vmem:[#allocation2 + $0x48] sm:$0xf]
      %v1208 = vld [vmem:[#allocation2 + $0x4c] sm:$0xf]
      %v1209 = vld [vmem:[#allocation2 + $0x50] sm:$0xf]
      %v1210 = vld [vmem:[#allocation2 + $0x54] sm:$0xf]
      %v1211 = vld [vmem:[#allocation2 + $0x58] sm:$0xf]
      %v1212 = vld [vmem:[#allocation2 + $0x5c] sm:$0xf]
      %v1213 = vld [vmem:[#allocation2 + $0x60] sm:$0xf]
      %v1214 = vld [vmem:[#allocation2 + $0x64] sm:$0xf]
      %v1215 = vld [vmem:[#allocation2 + $0x68] sm:$0xf]
      %v1216 = vld [vmem:[#allocation2 + $0x6c] sm:$0xf]
      %v1217 = vld [vmem:[#allocation2 + $0x70] sm:$0xf]
      %v1218 = vld [vmem:[#allocation2 + $0x74] sm:$0xf]
      %v1219 = vld [vmem:[#allocation2 + $0x78] sm:$0xf]
      %v1220 = vld [vmem:[#allocation2 + $0x7c] sm:$0xf]
      %v1221 = vld [vmem:[#allocation2 + $0x80] sm:$0xf]
      %v1222 = vld [vmem:[#allocation2 + $0x84] sm:$0xf]
      %v1223 = vld [vmem:[#allocation2 + $0x88] sm:$0xf]
      %v1224 = vld [vmem:[#allocation2 + $0x8c] sm:$0xf]
      %v1225 = vld [vmem:[#allocation2 + $0x90] sm:$0x1]
      %v1226 = vld [vmem:[#allocation2] sm:$0xe]
      %v1227 = vld [vmem:[#allocation2 + $0x8] sm:$0xe]
      %v1228 = vld [vmem:[#allocation2 + $0x90] sm:$0xf]
      %v1229 = vld [vmem:[#allocation2 + $0x94] sm:$0xf]
      %v1230 = vld [vmem:[#allocation2 + $0x98] sm:$0x1]
      %v1231 = vld [vmem:[#allocation2 + $0x98] sm:$0x3]
      %v1232 = vld [vmem:[#allocation2 + $0x8] sm:$0xc]
      %v1233 = vld [vmem:[#allocation2 + $0x10] sm:$0xc]
      %v1234 = vld [vmem:[#allocation2 + $0x14] sm:$0xf]
      %v1235 = vld [vmem:[#allocation2 + $0x18] sm:$0xf]
      %v1236 = vld [vmem:[#allocation2 + $0x1c] sm:$0xf]
      %v1237 = vld [vmem:[#allocation2 + $0x20] sm:$0xf]
      %v1238 = vld [vmem:[#allocation2 + $0x24] sm:$0xf]
      %v1239 = vld [vmem:[#allocation2 + $0x28] sm:$0xf]
      %v1240 = vld [vmem:[#allocation2 + $0x2c] sm:$0xf]
      %v1241 = vld [vmem:[#allocation2 + $0x30] sm:$0xf]
      %v1242 = vld [vmem:[#allocation2 + $0x34] sm:$0xf]
      %v1243 = vld [vmem:[#allocation2 + $0x38] sm:$0xf]
      %v1244 = vld [vmem:[#allocation2 + $0x3c] sm:$0xf]
      %v1245 = vld [vmem:[#allocation2 + $0x40] sm:$0xf]
      %v1246 = vld [vmem:[#allocation2 + $0x44] sm:$0xf]
      %v1247 = vld [vmem:[#allocation2 + $0x48] sm:$0xf]
      %v1248 = vld [vmem:[#allocation2 + $0x4c] sm:$0xf]
      %v1249 = vld [vmem:[#allocation2 + $0x50] sm:$0xf]
      %v1250 = vld [vmem:[#allocation2 + $0x54] sm:$0xf]
      %v1251 = vld [vmem:[#allocation2 + $0x58] sm:$0xf]
      %v1252 = vld [vmem:[#allocation2 + $0x5c] sm:$0xf]
      %v1253 = vld [vmem:[#allocation2 + $0x60] sm:$0xf]
      %v1254 = vld [vmem:[#allocation2 + $0x64] sm:$0xf]
      %v1255 = vld [vmem:[#allocation2 + $0x68] sm:$0xf]
      %v1256 = vld [vmem:[#allocation2 + $0x6c] sm:$0xf]
      %v1257 = vld [vmem:[#allocation2 + $0x70] sm:$0xf]
      %v1258 = vld [vmem:[#allocation2 + $0x74] sm:$0xf]
      %v1259 = vld [vmem:[#allocation2 + $0x78] sm:$0xf]
      %v1260 = vld [vmem:[#allocation2 + $0x7c] sm:$0xf]
      %v1261 = vld [vmem:[#allocation2 + $0x80] sm:$0xf]
      %v1262 = vld [vmem:[#allocation2 + $0x84] sm:$0xf]
      %v1263 = vld [vmem:[#allocation2 + $0x88] sm:$0xf]
      %v1264 = vld [vmem:[#allocation2 + $0x8c] sm:$0xf]
      %v1265 = vld [vmem:[#allocation2 + $0x90] sm:$0xf]
      %v1266 = vld [vmem:[#allocation2 + $0x94] sm:$0xf]
      %v1267 = vld [vmem:[#allocation2 + $0x98] sm:$0xf]
      %v1268 = vld [vmem:[#allocation2 + $0x9c] sm:$0xf]
      %v1269 = vld [vmem:[#allocation2 + $0xa0] sm:$0x3]
      %v1270 = vld [vmem:[#allocation2 + $0xa0] sm:$0x7]
      %v1271 = vld [vmem:[#allocation2 + $0x10] sm:$0x8]
      %v1308 = vunpack.c.l.b16 %v1189
      %v1309 = vunpack.c.l.b16 %v1190
      %v1310 = vunpack.c.l.b16 %v1191
      %v1311 = vunpack.c.l.b16 %v1192
      %v1312 = vunpack.c.l.b16 %v1193
      %v1313 = vunpack.c.l.b16 %v1194
      %v1314 = vunpack.c.l.b16 %v1195
      %v1315 = vunpack.c.l.b16 %v1196
      %v1316 = vunpack.c.l.b16 %v1197
      %v1317 = vunpack.c.l.b16 %v1198
      %v1318 = vunpack.c.l.b16 %v1199
      %v1319 = vunpack.c.l.b16 %v1200
      %v1320 = vunpack.c.l.b16 %v1201
      %v1321 = vunpack.c.l.b16 %v1202
      %v1322 = vunpack.c.l.b16 %v1203
      %v1323 = vunpack.c.l.b16 %v1204
      %v1324 = vunpack.c.l.b16 %v1205
      %v1325 = vunpack.c.l.b16 %v1206
      %v1326 = vunpack.c.l.b16 %v1207
      %v1327 = vunpack.c.l.b16 %v1208
      %v1328 = vunpack.c.l.b16 %v1209
      %v1329 = vunpack.c.l.b16 %v1210
      %v1330 = vunpack.c.l.b16 %v1211
      %v1331 = vunpack.c.l.b16 %v1212
      %v1332 = vunpack.c.l.b16 %v1213
      %v1333 = vunpack.c.l.b16 %v1214
      %v1334 = vunpack.c.l.b16 %v1215
      %v1335 = vunpack.c.l.b16 %v1216
      %v1336 = vunpack.c.l.b16 %v1217
      %v1337 = vunpack.c.l.b16 %v1218
      %v1338 = vunpack.c.l.b16 %v1219
      %v1339 = vunpack.c.l.b16 %v1220
      %v1340 = vunpack.c.l.b16 %v1221
      %v1341 = vunpack.c.l.b16 %v1222
      %v1342 = vunpack.c.l.b16 %v1223
      %v1343 = vunpack.c.l.b16 %v1224
      %v1344 = vpack.c.b16 %v1309, %v1308
      %v1345 = vpack.c.b16 %v1311, %v1310
      %v1346 = vpack.c.b16 %v1313, %v1312
      %v1347 = vpack.c.b16 %v1315, %v1314
      %v1348 = vpack.c.b16 %v1317, %v1316
      %v1349 = vpack.c.b16 %v1319, %v1318
      %v1350 = vpack.c.b16 %v1321, %v1320
      %v1351 = vpack.c.b16 %v1323, %v1322
      %v1352 = vpack.c.b16 %v1325, %v1324
      %v1353 = vpack.c.b16 %v1327, %v1326
      %v1354 = vpack.c.b16 %v1329, %v1328
      %v1355 = vpack.c.b16 %v1331, %v1330
      %v1356 = vpack.c.b16 %v1333, %v1332
      %v1357 = vpack.c.b16 %v1335, %v1334
      %v1358 = vpack.c.b16 %v1337, %v1336
      %v1359 = vpack.c.b16 %v1339, %v1338
      %v1360 = vpack.c.b16 %v1341, %v1340
      %v1361 = vpack.c.b16 %v1343, %v1342
      %v1381 = vunpack.c.l.b16 %v1225
      %v1382 = vpack.c.b16 %v1381, %v1381
      %vm1383 = vsmask.f32 7424
      %v1385 = vshrl.u32 %v1344, 16
      %v1387 = vshll.u32 %v1344, 16
      %v1389 = vrot.slane %v1387, 1
      %v1390 = vor.u32 %v1385, %v1389
      %v1392 = vshll.u32 %v1345, 16
      %v1394 = vrot.slane %v1392, 1
      %v1395 = vsel %vm1383, %v1390, %v1394
      %v1396 = vshrl.u32 %v1345, 16
      %v1398 = vor.u32 %v1396, %v1394
      %v1400 = vshll.u32 %v1346, 16
      %v1402 = vrot.slane %v1400, 1
      %v1403 = vsel %vm1383, %v1398, %v1402
      %v1404 = vshrl.u32 %v1346, 16
      %v1406 = vor.u32 %v1404, %v1402
      %v1408 = vshll.u32 %v1347, 16
      %v1410 = vrot.slane %v1408, 1
      %v1411 = vsel %vm1383, %v1406, %v1410
      %v1412 = vshrl.u32 %v1347, 16
      %v1414 = vor.u32 %v1412, %v1410
      %v1416 = vshll.u32 %v1348, 16
      %v1418 = vrot.slane %v1416, 1
      %v1419 = vsel %vm1383, %v1414, %v1418
      %v1420 = vshrl.u32 %v1348, 16
      %v1422 = vor.u32 %v1420, %v1418
      %v1424 = vshll.u32 %v1349, 16
      %v1426 = vrot.slane %v1424, 1
      %v1427 = vsel %vm1383, %v1422, %v1426
      %v1428 = vshrl.u32 %v1349, 16
      %v1430 = vor.u32 %v1428, %v1426
      %v1432 = vshll.u32 %v1350, 16
      %v1434 = vrot.slane %v1432, 1
      %v1435 = vsel %vm1383, %v1430, %v1434
      %v1436 = vshrl.u32 %v1350, 16
      %v1438 = vor.u32 %v1436, %v1434
      %v1440 = vshll.u32 %v1351, 16
      %v1442 = vrot.slane %v1440, 1
      %v1443 = vsel %vm1383, %v1438, %v1442
      %v1444 = vshrl.u32 %v1351, 16
      %v1446 = vor.u32 %v1444, %v1442
      %v1448 = vshll.u32 %v1352, 16
      %v1450 = vrot.slane %v1448, 1
      %v1451 = vsel %vm1383, %v1446, %v1450
      %v1452 = vshrl.u32 %v1352, 16
      %v1454 = vor.u32 %v1452, %v1450
      %v1456 = vshll.u32 %v1353, 16
      %v1458 = vrot.slane %v1456, 1
      %v1459 = vsel %vm1383, %v1454, %v1458
      %v1460 = vshrl.u32 %v1353, 16
      %v1462 = vor.u32 %v1460, %v1458
      %v1464 = vshll.u32 %v1354, 16
      %v1466 = vrot.slane %v1464, 1
      %v1467 = vsel %vm1383, %v1462, %v1466
      %v1468 = vshrl.u32 %v1354, 16
      %v1470 = vor.u32 %v1468, %v1466
      %v1472 = vshll.u32 %v1355, 16
      %v1474 = vrot.slane %v1472, 1
      %v1475 = vsel %vm1383, %v1470, %v1474
      %v1476 = vshrl.u32 %v1355, 16
      %v1478 = vor.u32 %v1476, %v1474
      %v1480 = vshll.u32 %v1356, 16
      %v1482 = vrot.slane %v1480, 1
      %v1483 = vsel %vm1383, %v1478, %v1482
      %v1484 = vshrl.u32 %v1356, 16
      %v1486 = vor.u32 %v1484, %v1482
      %v1488 = vshll.u32 %v1357, 16
      %v1490 = vrot.slane %v1488, 1
      %v1491 = vsel %vm1383, %v1486, %v1490
      %v1492 = vshrl.u32 %v1357, 16
      %v1494 = vor.u32 %v1492, %v1490
      %v1496 = vshll.u32 %v1358, 16
      %v1498 = vrot.slane %v1496, 1
      %v1499 = vsel %vm1383, %v1494, %v1498
      %v1500 = vshrl.u32 %v1358, 16
      %v1502 = vor.u32 %v1500, %v1498
      %v1504 = vshll.u32 %v1359, 16
      %v1506 = vrot.slane %v1504, 1
      %v1507 = vsel %vm1383, %v1502, %v1506
      %v1508 = vshrl.u32 %v1359, 16
      %v1510 = vor.u32 %v1508, %v1506
      %v1512 = vshll.u32 %v1360, 16
      %v1514 = vrot.slane %v1512, 1
      %v1515 = vsel %vm1383, %v1510, %v1514
      %v1516 = vshrl.u32 %v1360, 16
      %v1518 = vor.u32 %v1516, %v1514
      %v1520 = vshll.u32 %v1361, 16
      %v1522 = vrot.slane %v1520, 1
      %v1523 = vsel %vm1383, %v1518, %v1522
      %v1524 = vshrl.u32 %v1361, 16
      %v1526 = vor.u32 %v1524, %v1522
      %v1528 = vshll.u32 %v1382, 16
      %v1530 = vrot.slane %v1528, 1
      %v1531 = vsel %vm1383, %v1526, %v1530
      %v1551 = vunpack.c.l.b16 %v1226
      %v1552 = vpack.c.b16 %v1309, %v1551
      %vm1553 = vcmask 1046528
      %v1554 = vrot.slane %v1552, 1
      %v1555 = vrot.slane %v1345, 1
      %v1556 = vsel %vm1553, %v1554, %v1555
      %v1557 = vrot.slane %v1346, 1
      %v1558 = vsel %vm1553, %v1555, %v1557
      %v1559 = vrot.slane %v1347, 1
      %v1560 = vsel %vm1553, %v1557, %v1559
      %v1561 = vrot.slane %v1348, 1
      %v1562 = vsel %vm1553, %v1559, %v1561
      %v1563 = vrot.slane %v1349, 1
      %v1564 = vsel %vm1553, %v1561, %v1563
      %v1565 = vrot.slane %v1350, 1
      %v1566 = vsel %vm1553, %v1563, %v1565
      %v1567 = vrot.slane %v1351, 1
      %v1568 = vsel %vm1553, %v1565, %v1567
      %v1569 = vrot.slane %v1352, 1
      %v1570 = vsel %vm1553, %v1567, %v1569
      %v1571 = vrot.slane %v1353, 1
      %v1572 = vsel %vm1553, %v1569, %v1571
      %v1573 = vrot.slane %v1354, 1
      %v1574 = vsel %vm1553, %v1571, %v1573
      %v1575 = vrot.slane %v1355, 1
      %v1576 = vsel %vm1553, %v1573, %v1575
      %v1577 = vrot.slane %v1356, 1
      %v1578 = vsel %vm1553, %v1575, %v1577
      %v1579 = vrot.slane %v1357, 1
      %v1580 = vsel %vm1553, %v1577, %v1579
      %v1581 = vrot.slane %v1358, 1
      %v1582 = vsel %vm1553, %v1579, %v1581
      %v1583 = vrot.slane %v1359, 1
      %v1584 = vsel %vm1553, %v1581, %v1583
      %v1585 = vrot.slane %v1360, 1
      %v1586 = vsel %vm1553, %v1583, %v1585
      %v1587 = vrot.slane %v1361, 1
      %v1588 = vsel %vm1553, %v1585, %v1587
      %v1589 = vrot.slane %v1382, 1
      %v1590 = vsel %vm1553, %v1587, %v1589
      %v1613 = vunpack.c.l.b16 %v1227
      %v1614 = vunpack.c.l.b16 %v1228
      %v1615 = vunpack.c.l.b16 %v1229
      %v1616 = vunpack.c.l.b16 %v1230
      %v1617 = vpack.c.b16 %v1311, %v1613
      %v1618 = vpack.c.b16 %v1615, %v1614
      %v1619 = vpack.c.b16 %v1616, %v1616
      %v1620 = vrot.slane %v1617, 1
      %v1621 = vsel %vm1553, %v1620, %v1557
      %v1622 = vrot.slane %v1618, 1
      %v1623 = vsel %vm1553, %v1587, %v1622
      %v1624 = vrot.slane %v1619, 1
      %v1625 = vsel %vm1553, %v1622, %v1624
      %v1630 = vunpack.c.l.b16 %v1231
      %v1631 = vpack.c.b16 %v1630, %v1630
      %vm1632 = vsmask.f32 6400
      %v1634 = vshrl.u32 %v1617, 16
      %v1636 = vrot.slane %v1634, 1
      %v1637 = vshll.u32 %v1617, 16
      %v1639 = vrot.slane %v1637, 2
      %v1640 = vor.u32 %v1636, %v1639
      %v1641 = vrot.slane %v1404, 1
      %v1642 = vrot.slane %v1400, 2
      %v1643 = vor.u32 %v1641, %v1642
      %v1644 = vsel %vm1632, %v1640, %v1643
      %v1645 = vrot.slane %v1412, 1
      %v1646 = vrot.slane %v1408, 2
      %v1647 = vor.u32 %v1645, %v1646
      %v1648 = vsel %vm1632, %v1643, %v1647
      %v1649 = vrot.slane %v1420, 1
      %v1650 = vrot.slane %v1416, 2
      %v1651 = vor.u32 %v1649, %v1650
      %v1652 = vsel %vm1632, %v1647, %v1651
      %v1653 = vrot.slane %v1428, 1
      %v1654 = vrot.slane %v1424, 2
      %v1655 = vor.u32 %v1653, %v1654
      %v1656 = vsel %vm1632, %v1651, %v1655
      %v1657 = vrot.slane %v1436, 1
      %v1658 = vrot.slane %v1432, 2
      %v1659 = vor.u32 %v1657, %v1658
      %v1660 = vsel %vm1632, %v1655, %v1659
      %v1661 = vrot.slane %v1444, 1
      %v1662 = vrot.slane %v1440, 2
      %v1663 = vor.u32 %v1661, %v1662
      %v1664 = vsel %vm1632, %v1659, %v1663
      %v1665 = vrot.slane %v1452, 1
      %v1666 = vrot.slane %v1448, 2
      %v1667 = vor.u32 %v1665, %v1666
      %v1668 = vsel %vm1632, %v1663, %v1667
      %v1669 = vrot.slane %v1460, 1
      %v1670 = vrot.slane %v1456, 2
      %v1671 = vor.u32 %v1669, %v1670
      %v1672 = vsel %vm1632, %v1667, %v1671
      %v1673 = vrot.slane %v1468, 1
      %v1674 = vrot.slane %v1464, 2
      %v1675 = vor.u32 %v1673, %v1674
      %v1676 = vsel %vm1632, %v1671, %v1675
      %v1677 = vrot.slane %v1476, 1
      %v1678 = vrot.slane %v1472, 2
      %v1679 = vor.u32 %v1677, %v1678
      %v1680 = vsel %vm1632, %v1675, %v1679
      %v1681 = vrot.slane %v1484, 1
      %v1682 = vrot.slane %v1480, 2
      %v1683 = vor.u32 %v1681, %v1682
      %v1684 = vsel %vm1632, %v1679, %v1683
      %v1685 = vrot.slane %v1492, 1
      %v1686 = vrot.slane %v1488, 2
      %v1687 = vor.u32 %v1685, %v1686
      %v1688 = vsel %vm1632, %v1683, %v1687
      %v1689 = vrot.slane %v1500, 1
      %v1690 = vrot.slane %v1496, 2
      %v1691 = vor.u32 %v1689, %v1690
      %v1692 = vsel %vm1632, %v1687, %v1691
      %v1693 = vrot.slane %v1508, 1
      %v1694 = vrot.slane %v1504, 2
      %v1695 = vor.u32 %v1693, %v1694
      %v1696 = vsel %vm1632, %v1691, %v1695
      %v1697 = vrot.slane %v1516, 1
      %v1698 = vrot.slane %v1512, 2
      %v1699 = vor.u32 %v1697, %v1698
      %v1700 = vsel %vm1632, %v1695, %v1699
      %v1701 = vrot.slane %v1524, 1
      %v1702 = vrot.slane %v1520, 2
      %v1703 = vor.u32 %v1701, %v1702
      %v1704 = vsel %vm1632, %v1699, %v1703
      %v1706 = vshrl.u32 %v1618, 16
      %v1708 = vrot.slane %v1706, 1
      %v1709 = vshll.u32 %v1618, 16
      %v1711 = vrot.slane %v1709, 2
      %v1712 = vor.u32 %v1708, %v1711
      %v1713 = vsel %vm1632, %v1703, %v1712
      %v1715 = vshrl.u32 %v1631, 16
      %v1717 = vrot.slane %v1715, 1
      %v1718 = vshll.u32 %v1631, 16
      %v1720 = vrot.slane %v1718, 2
      %v1721 = vor.u32 %v1717, %v1720
      %v1722 = vsel %vm1632, %v1712, %v1721
      %v1742 = vunpack.c.l.b16 %v1232
      %v1743 = vpack.c.b16 %v1311, %v1742
      %vm1744 = vcmask 1045504
      %v1745 = vrot.slane %v1743, 2
      %v1746 = vrot.slane %v1346, 2
      %v1747 = vsel %vm1744, %v1745, %v1746
      %v1748 = vrot.slane %v1347, 2
      %v1749 = vsel %vm1744, %v1746, %v1748
      %v1750 = vrot.slane %v1348, 2
      %v1751 = vsel %vm1744, %v1748, %v1750
      %v1752 = vrot.slane %v1349, 2
      %v1753 = vsel %vm1744, %v1750, %v1752
      %v1754 = vrot.slane %v1350, 2
      %v1755 = vsel %vm1744, %v1752, %v1754
      %v1756 = vrot.slane %v1351, 2
      %v1757 = vsel %vm1744, %v1754, %v1756
      %v1758 = vrot.slane %v1352, 2
      %v1759 = vsel %vm1744, %v1756, %v1758
      %v1760 = vrot.slane %v1353, 2
      %v1761 = vsel %vm1744, %v1758, %v1760
      %v1762 = vrot.slane %v1354, 2
      %v1763 = vsel %vm1744, %v1760, %v1762
      %v1764 = vrot.slane %v1355, 2
      %v1765 = vsel %vm1744, %v1762, %v1764
      %v1766 = vrot.slane %v1356, 2
      %v1767 = vsel %vm1744, %v1764, %v1766
      %v1768 = vrot.slane %v1357, 2
      %v1769 = vsel %vm1744, %v1766, %v1768
      %v1770 = vrot.slane %v1358, 2
      %v1771 = vsel %vm1744, %v1768, %v1770
      %v1772 = vrot.slane %v1359, 2
      %v1773 = vsel %vm1744, %v1770, %v1772
      %v1774 = vrot.slane %v1360, 2
      %v1775 = vsel %vm1744, %v1772, %v1774
      %v1776 = vrot.slane %v1361, 2
      %v1777 = vsel %vm1744, %v1774, %v1776
      %v1778 = vrot.slane %v1618, 2
      %v1779 = vsel %vm1744, %v1776, %v1778
      %v1780 = vrot.slane %v1631, 2
      %v1781 = vsel %vm1744, %v1778, %v1780
      %v1837 = vunpack.c.l.b16 %v1233
      %v1838 = vunpack.c.l.b16 %v1234
      %v1839 = vunpack.c.l.b16 %v1235
      %v1840 = vunpack.c.l.b16 %v1236
      %v1841 = vunpack.c.l.b16 %v1237
      %v1842 = vunpack.c.l.b16 %v1238
      %v1843 = vunpack.c.l.b16 %v1239
      %v1844 = vunpack.c.l.b16 %v1240
      %v1845 = vunpack.c.l.b16 %v1241
      %v1846 = vunpack.c.l.b16 %v1242
      %v1847 = vunpack.c.l.b16 %v1243
      %v1848 = vunpack.c.l.b16 %v1244
      %v1849 = vunpack.c.l.b16 %v1245
      %v1850 = vunpack.c.l.b16 %v1246
      %v1851 = vunpack.c.l.b16 %v1247
      %v1852 = vunpack.c.l.b16 %v1248
      %v1853 = vunpack.c.l.b16 %v1249
      %v1854 = vunpack.c.l.b16 %v1250
      %v1855 = vunpack.c.l.b16 %v1251
      %v1856 = vunpack.c.l.b16 %v1252
      %v1857 = vunpack.c.l.b16 %v1253
      %v1858 = vunpack.c.l.b16 %v1254
      %v1859 = vunpack.c.l.b16 %v1255
      %v1860 = vunpack.c.l.b16 %v1256
      %v1861 = vunpack.c.l.b16 %v1257
      %v1862 = vunpack.c.l.b16 %v1258
      %v1863 = vunpack.c.l.b16 %v1259
      %v1864 = vunpack.c.l.b16 %v1260
      %v1865 = vunpack.c.l.b16 %v1261
      %v1866 = vunpack.c.l.b16 %v1262
      %v1867 = vunpack.c.l.b16 %v1263
      %v1868 = vunpack.c.l.b16 %v1264
      %v1869 = vunpack.c.l.b16 %v1265
      %v1870 = vunpack.c.l.b16 %v1266
      %v1871 = vunpack.c.l.b16 %v1267
      %v1872 = vunpack.c.l.b16 %v1268
      %v1873 = vunpack.c.l.b16 %v1269
      %v1874 = vpack.c.b16 %v1838, %v1837
      %v1875 = vpack.c.b16 %v1840, %v1839
      %v1876 = vpack.c.b16 %v1842, %v1841
      %v1877 = vpack.c.b16 %v1844, %v1843
      %v1878 = vpack.c.b16 %v1846, %v1845
      %v1879 = vpack.c.b16 %v1848, %v1847
      %v1880 = vpack.c.b16 %v1850, %v1849
      %v1881 = vpack.c.b16 %v1852, %v1851
      %v1882 = vpack.c.b16 %v1854, %v1853
      %v1883 = vpack.c.b16 %v1856, %v1855
      %v1884 = vpack.c.b16 %v1858, %v1857
      %v1885 = vpack.c.b16 %v1860, %v1859
      %v1886 = vpack.c.b16 %v1862, %v1861
      %v1887 = vpack.c.b16 %v1864, %v1863
      %v1888 = vpack.c.b16 %v1866, %v1865
      %v1889 = vpack.c.b16 %v1868, %v1867
      %v1890 = vpack.c.b16 %v1870, %v1869
      %v1891 = vpack.c.b16 %v1872, %v1871
      %v1892 = vpack.c.b16 %v1873, %v1873
      %v1893 = vrot.slane %v1874, 2
      %v1894 = vrot.slane %v1875, 2
      %v1895 = vsel %vm1744, %v1893, %v1894
      %v1896 = vrot.slane %v1876, 2
      %v1897 = vsel %vm1744, %v1894, %v1896
      %v1898 = vrot.slane %v1877, 2
      %v1899 = vsel %vm1744, %v1896, %v1898
      %v1900 = vrot.slane %v1878, 2
      %v1901 = vsel %vm1744, %v1898, %v1900
      %v1902 = vrot.slane %v1879, 2
      %v1903 = vsel %vm1744, %v1900, %v1902
      %v1904 = vrot.slane %v1880, 2
      %v1905 = vsel %vm1744, %v1902, %v1904
      %v1906 = vrot.slane %v1881, 2
      %v1907 = vsel %vm1744, %v1904, %v1906
      %v1908 = vrot.slane %v1882, 2
      %v1909 = vsel %vm1744, %v1906, %v1908
      %v1910 = vrot.slane %v1883, 2
      %v1911 = vsel %vm1744, %v1908, %v1910
      %v1912 = vrot.slane %v1884, 2
      %v1913 = vsel %vm1744, %v1910, %v1912
      %v1914 = vrot.slane %v1885, 2
      %v1915 = vsel %vm1744, %v1912, %v1914
      %v1916 = vrot.slane %v1886, 2
      %v1917 = vsel %vm1744, %v1914, %v1916
      %v1918 = vrot.slane %v1887, 2
      %v1919 = vsel %vm1744, %v1916, %v1918
      %v1920 = vrot.slane %v1888, 2
      %v1921 = vsel %vm1744, %v1918, %v1920
      %v1922 = vrot.slane %v1889, 2
      %v1923 = vsel %vm1744, %v1920, %v1922
      %v1924 = vrot.slane %v1890, 2
      %v1925 = vsel %vm1744, %v1922, %v1924
      %v1926 = vrot.slane %v1891, 2
      %v1927 = vsel %vm1744, %v1924, %v1926
      %v1928 = vrot.slane %v1892, 2
      %v1929 = vsel %vm1744, %v1926, %v1928
      %v1949 = vunpack.c.l.b16 %v1270
      %v1950 = vpack.c.b16 %v1949, %v1949
      %vm1951 = vsmask.f32 5376
      %v1953 = vshrl.u32 %v1874, 16
      %v1955 = vrot.slane %v1953, 2
      %v1956 = vshll.u32 %v1874, 16
      %v1958 = vrot.slane %v1956, 3
      %v1959 = vor.u32 %v1955, %v1958
      %v1961 = vshrl.u32 %v1875, 16
      %v1963 = vrot.slane %v1961, 2
      %v1964 = vshll.u32 %v1875, 16
      %v1966 = vrot.slane %v1964, 3
      %v1967 = vor.u32 %v1963, %v1966
      %v1968 = vsel %vm1951, %v1959, %v1967
      %v1970 = vshrl.u32 %v1876, 16
      %v1972 = vrot.slane %v1970, 2
      %v1973 = vshll.u32 %v1876, 16
      %v1975 = vrot.slane %v1973, 3
      %v1976 = vor.u32 %v1972, %v1975
      %v1977 = vsel %vm1951, %v1967, %v1976
      %v1979 = vshrl.u32 %v1877, 16
      %v1981 = vrot.slane %v1979, 2
      %v1982 = vshll.u32 %v1877, 16
      %v1984 = vrot.slane %v1982, 3
      %v1985 = vor.u32 %v1981, %v1984
      %v1986 = vsel %vm1951, %v1976, %v1985
      %v1988 = vshrl.u32 %v1878, 16
      %v1990 = vrot.slane %v1988, 2
      %v1991 = vshll.u32 %v1878, 16
      %v1993 = vrot.slane %v1991, 3
      %v1994 = vor.u32 %v1990, %v1993
      %v1995 = vsel %vm1951, %v1985, %v1994
      %v1997 = vshrl.u32 %v1879, 16
      %v1999 = vrot.slane %v1997, 2
      %v2000 = vshll.u32 %v1879, 16
      %v2002 = vrot.slane %v2000, 3
      %v2003 = vor.u32 %v1999, %v2002
      %v2004 = vsel %vm1951, %v1994, %v2003
      %v2006 = vshrl.u32 %v1880, 16
      %v2008 = vrot.slane %v2006, 2
      %v2009 = vshll.u32 %v1880, 16
      %v2011 = vrot.slane %v2009, 3
      %v2012 = vor.u32 %v2008, %v2011
      %v2013 = vsel %vm1951, %v2003, %v2012
      %v2015 = vshrl.u32 %v1881, 16
      %v2017 = vrot.slane %v2015, 2
      %v2018 = vshll.u32 %v1881, 16
      %v2020 = vrot.slane %v2018, 3
      %v2021 = vor.u32 %v2017, %v2020
      %v2022 = vsel %vm1951, %v2012, %v2021
      %v2024 = vshrl.u32 %v1882, 16
      %v2026 = vrot.slane %v2024, 2
      %v2027 = vshll.u32 %v1882, 16
      %v2029 = vrot.slane %v2027, 3
      %v2030 = vor.u32 %v2026, %v2029
      %v2031 = vsel %vm1951, %v2021, %v2030
      %v2033 = vshrl.u32 %v1883, 16
      %v2035 = vrot.slane %v2033, 2
      %v2036 = vshll.u32 %v1883, 16
      %v2038 = vrot.slane %v2036, 3
      %v2039 = vor.u32 %v2035, %v2038
      %v2040 = vsel %vm1951, %v2030, %v2039
      %v2042 = vshrl.u32 %v1884, 16
      %v2044 = vrot.slane %v2042, 2
      %v2045 = vshll.u32 %v1884, 16
      %v2047 = vrot.slane %v2045, 3
      %v2048 = vor.u32 %v2044, %v2047
      %v2049 = vsel %vm1951, %v2039, %v2048
      %v2051 = vshrl.u32 %v1885, 16
      %v2053 = vrot.slane %v2051, 2
      %v2054 = vshll.u32 %v1885, 16
      %v2056 = vrot.slane %v2054, 3
      %v2057 = vor.u32 %v2053, %v2056
      %v2058 = vsel %vm1951, %v2048, %v2057
      %v2060 = vshrl.u32 %v1886, 16
      %v2062 = vrot.slane %v2060, 2
      %v2063 = vshll.u32 %v1886, 16
      %v2065 = vrot.slane %v2063, 3
      %v2066 = vor.u32 %v2062, %v2065
      %v2067 = vsel %vm1951, %v2057, %v2066
      %v2069 = vshrl.u32 %v1887, 16
      %v2071 = vrot.slane %v2069, 2
      %v2072 = vshll.u32 %v1887, 16
      %v2074 = vrot.slane %v2072, 3
      %v2075 = vor.u32 %v2071, %v2074
      %v2076 = vsel %vm1951, %v2066, %v2075
      %v2078 = vshrl.u32 %v1888, 16
      %v2080 = vrot.slane %v2078, 2
      %v2081 = vshll.u32 %v1888, 16
      %v2083 = vrot.slane %v2081, 3
      %v2084 = vor.u32 %v2080, %v2083
      %v2085 = vsel %vm1951, %v2075, %v2084
      %v2087 = vshrl.u32 %v1889, 16
      %v2089 = vrot.slane %v2087, 2
      %v2090 = vshll.u32 %v1889, 16
      %v2092 = vrot.slane %v2090, 3
      %v2093 = vor.u32 %v2089, %v2092
      %v2094 = vsel %vm1951, %v2084, %v2093
      %v2096 = vshrl.u32 %v1890, 16
      %v2098 = vrot.slane %v2096, 2
      %v2099 = vshll.u32 %v1890, 16
      %v2101 = vrot.slane %v2099, 3
      %v2102 = vor.u32 %v2098, %v2101
      %v2103 = vsel %vm1951, %v2093, %v2102
      %v2105 = vshrl.u32 %v1891, 16
      %v2107 = vrot.slane %v2105, 2
      %v2108 = vshll.u32 %v1891, 16
      %v2110 = vrot.slane %v2108, 3
      %v2111 = vor.u32 %v2107, %v2110
      %v2112 = vsel %vm1951, %v2102, %v2111
      %v2114 = vshrl.u32 %v1950, 16
      %v2116 = vrot.slane %v2114, 2
      %v2117 = vshll.u32 %v1950, 16
      %v2119 = vrot.slane %v2117, 3
      %v2120 = vor.u32 %v2116, %v2119
      %v2121 = vsel %vm1951, %v2111, %v2120
      %v2141 = vunpack.c.l.b16 %v1271
      %v2142 = vpack.c.b16 %v1838, %v2141
      %vm2143 = vcmask 1044480
      %v2144 = vrot.slane %v2142, 3
      %v2145 = vrot.slane %v1875, 3
      %v2146 = vsel %vm2143, %v2144, %v2145
      %v2147 = vrot.slane %v1876, 3
      %v2148 = vsel %vm2143, %v2145, %v2147
      %v2149 = vrot.slane %v1877, 3
      %v2150 = vsel %vm2143, %v2147, %v2149
      %v2151 = vrot.slane %v1878, 3
      %v2152 = vsel %vm2143, %v2149, %v2151
      %v2153 = vrot.slane %v1879, 3
      %v2154 = vsel %vm2143, %v2151, %v2153
      %v2155 = vrot.slane %v1880, 3
      %v2156 = vsel %vm2143, %v2153, %v2155
      %v2157 = vrot.slane %v1881, 3
      %v2158 = vsel %vm2143, %v2155, %v2157
      %v2159 = vrot.slane %v1882, 3
      %v2160 = vsel %vm2143, %v2157, %v2159
      %v2161 = vrot.slane %v1883, 3
      %v2162 = vsel %vm2143, %v2159, %v2161
      %v2163 = vrot.slane %v1884, 3
      %v2164 = vsel %vm2143, %v2161, %v2163
      %v2165 = vrot.slane %v1885, 3
      %v2166 = vsel %vm2143, %v2163, %v2165
      %v2167 = vrot.slane %v1886, 3
      %v2168 = vsel %vm2143, %v2165, %v2167
      %v2169 = vrot.slane %v1887, 3
      %v2170 = vsel %vm2143, %v2167, %v2169
      %v2171 = vrot.slane %v1888, 3
      %v2172 = vsel %vm2143, %v2169, %v2171
      %v2173 = vrot.slane %v1889, 3
      %v2174 = vsel %vm2143, %v2171, %v2173
      %v2175 = vrot.slane %v1890, 3
      %v2176 = vsel %vm2143, %v2173, %v2175
      %v2177 = vrot.slane %v1891, 3
      %v2178 = vsel %vm2143, %v2175, %v2177
      %v2179 = vrot.slane %v1950, 3
      %v2180 = vsel %vm2143, %v2177, %v2179
      %v2199 = vld [vmem:[%s4] sm:$0xf]
      %v2200 = vld [vmem:[%s4 + $0x4] sm:$0xf]
      %v2201 = vld [vmem:[%s4 + $0x8] sm:$0xf]
      %v2202 = vld [vmem:[%s4 + $0xc] sm:$0xf]
      %v2203 = vld [vmem:[%s4 + $0x10] sm:$0xf]
      %v2204 = vld [vmem:[%s4 + $0x14] sm:$0xf]
      %v2205 = vld [vmem:[%s4 + $0x18] sm:$0xf]
      %v2206 = vld [vmem:[%s4 + $0x1c] sm:$0xf]
      %v2207 = vld [vmem:[%s4 + $0x20] sm:$0xf]
      %v2208 = vld [vmem:[%s4 + $0x24] sm:$0xf]
      %v2209 = vld [vmem:[%s4 + $0x28] sm:$0xf]
      %v2210 = vld [vmem:[%s4 + $0x2c] sm:$0xf]
      %v2211 = vld [vmem:[%s4 + $0x30] sm:$0xf]
      %v2212 = vld [vmem:[%s4 + $0x34] sm:$0xf]
      %v2213 = vld [vmem:[%s4 + $0x38] sm:$0xf]
      %v2214 = vld [vmem:[%s4 + $0x3c] sm:$0xf]
      %v2215 = vld [vmem:[%s4 + $0x40] sm:$0xf]
      %v2216 = vld [vmem:[%s4 + $0x44] sm:$0xf]
      %v2217 = vld [vmem:[%s4 + $0x48] sm:$0xf]
      %v2218 = vld [vmem:[%s4 + $0x4c] sm:$0xf]
      %v2219 = vld [vmem:[%s4 + $0x50] sm:$0xf]
      %v2220 = vld [vmem:[%s4 + $0x54] sm:$0xf]
      %v2221 = vld [vmem:[%s4 + $0x58] sm:$0xf]
      %v2222 = vld [vmem:[%s4 + $0x5c] sm:$0xf]
      %v2223 = vld [vmem:[%s4 + $0x60] sm:$0xf]
      %v2224 = vld [vmem:[%s4 + $0x64] sm:$0xf]
      %v2225 = vld [vmem:[%s4 + $0x68] sm:$0xf]
      %v2226 = vld [vmem:[%s4 + $0x6c] sm:$0xf]
      %v2227 = vld [vmem:[%s4 + $0x70] sm:$0xf]
      %v2228 = vld [vmem:[%s4 + $0x74] sm:$0xf]
      %v2229 = vld [vmem:[%s4 + $0x78] sm:$0xf]
      %v2230 = vld [vmem:[%s4 + $0x7c] sm:$0xf]
      %v2231 = vld [vmem:[%s4 + $0x80] sm:$0xf]
      %v2232 = vld [vmem:[%s4 + $0x84] sm:$0xf]
      %v2233 = vld [vmem:[%s4 + $0x88] sm:$0xf]
      %v2234 = vld [vmem:[%s4 + $0x8c] sm:$0xf]
      %v2235 = vld [vmem:[%s4 + $0x90] sm:$0xf]
      %v2236 = vld [vmem:[%s4 + $0x94] sm:$0xf]
      %v2237 = vld [vmem:[%s4 + $0x98] sm:$0xf]
      %v2238 = vld [vmem:[%s4 + $0x9c] sm:$0xf]
      %v2239 = vld [vmem:[%s4 + $0xa0] sm:$0xf]
      %v2240 = vld [vmem:[%s4 + $0xa4] sm:$0xf]
      %v2241 = vld [vmem:[%s4 + $0xa8] sm:$0xf]
      %v2242 = vld [vmem:[%s4 + $0xac] sm:$0xf]
      %v2243 = vld [vmem:[%s4 + $0xb0] sm:$0xf]
      %v2244 = vld [vmem:[%s4 + $0xb4] sm:$0xf]
      %v2245 = vld [vmem:[%s4 + $0xb8] sm:$0xf]
      %v2246 = vld [vmem:[%s4 + $0xbc] sm:$0xf]
      %v2247 = vld [vmem:[%s4 + $0xc0] sm:$0xf]
      %v2248 = vld [vmem:[%s4 + $0xc4] sm:$0xf]
      %v2249 = vld [vmem:[%s4 + $0xc8] sm:$0xf]
      %v2250 = vld [vmem:[%s4 + $0xcc] sm:$0xf]
      %v2251 = vld [vmem:[%s4 + $0xd0] sm:$0xf]
      %v2252 = vld [vmem:[%s4 + $0xd4] sm:$0xf]
      %v2253 = vld [vmem:[%s4 + $0xd8] sm:$0xf]
      %v2254 = vld [vmem:[%s4 + $0xdc] sm:$0xf]
      %v2255 = vld [vmem:[%s4 + $0xe0] sm:$0xf]
      %v2256 = vld [vmem:[%s4 + $0xe4] sm:$0xf]
      %v2257 = vld [vmem:[%s4 + $0xe8] sm:$0xf]
      %v2258 = vld [vmem:[%s4 + $0xec] sm:$0xf]
      %v2259 = vld [vmem:[%s4 + $0xf0] sm:$0xf]
      %v2260 = vld [vmem:[%s4 + $0xf4] sm:$0xf]
      %v2261 = vld [vmem:[%s4 + $0xf8] sm:$0xf]
      %v2262 = vld [vmem:[%s4 + $0xfc] sm:$0xf]
      %v2263 = vld [vmem:[%s4 + $0x100] sm:$0xf]
      %v2264 = vld [vmem:[%s4 + $0x104] sm:$0xf]
      %v2265 = vld [vmem:[%s4 + $0x108] sm:$0xf]
      %v2266 = vld [vmem:[%s4 + $0x10c] sm:$0xf]
      %v2267 = vld [vmem:[%s4 + $0x110] sm:$0xf]
      %v2268 = vld [vmem:[%s4 + $0x114] sm:$0xf]
      %v2269 = vld [vmem:[%s4 + $0x118] sm:$0xf]
      %v2270 = vld [vmem:[%s4 + $0x11c] sm:$0xf]
      %v2271 = vld [vmem:[%s4 + $0x120] sm:$0xf]
      %v2272 = vld [vmem:[%s4 + $0x124] sm:$0xf]
      %v2273 = vld [vmem:[%s4 + $0x128] sm:$0xf]
      %v2274 = vld [vmem:[%s4 + $0x12c] sm:$0xf]
      %v2275 = vld [vmem:[%s4 + $0x130] sm:$0xf]
      %v2276 = vld [vmem:[%s4 + $0x134] sm:$0xf]
      %v2277 = vld [vmem:[%s4 + $0x138] sm:$0xf]
      %v2278 = vld [vmem:[%s4 + $0x13c] sm:$0xf]
      %v2279 = vld [vmem:[%s4 + $0x140] sm:$0xf]
      %v2280 = vld [vmem:[%s4 + $0x144] sm:$0xf]
      %v2281 = vld [vmem:[%s4 + $0x148] sm:$0xf]
      %v2282 = vld [vmem:[%s4 + $0x14c] sm:$0xf]
      %v2283 = vld [vmem:[%s4 + $0x150] sm:$0xf]
      %v2284 = vld [vmem:[%s4 + $0x154] sm:$0xf]
      %v2285 = vld [vmem:[%s4 + $0x158] sm:$0xf]
      %v2286 = vld [vmem:[%s4 + $0x15c] sm:$0xf]
      %v2287 = vld [vmem:[%s4 + $0x160] sm:$0xf]
      %v2288 = vld [vmem:[%s4 + $0x164] sm:$0xf]
      %v2289 = vld [vmem:[%s4 + $0x168] sm:$0xf]
      %v2290 = vld [vmem:[%s4 + $0x16c] sm:$0xf]
      %v2291 = vld [vmem:[%s4 + $0x170] sm:$0xf]
      %v2292 = vld [vmem:[%s4 + $0x174] sm:$0xf]
      %v2293 = vld [vmem:[%s4 + $0x178] sm:$0xf]
      %v2294 = vld [vmem:[%s4 + $0x17c] sm:$0xf]
      %v2295 = vld [vmem:[%s4 + $0x180] sm:$0xf]
      %v2296 = vld [vmem:[%s4 + $0x184] sm:$0xf]
      %v2297 = vld [vmem:[%s4 + $0x188] sm:$0xf]
      %v2298 = vld [vmem:[%s4 + $0x18c] sm:$0xf]
      %v2299 = vld [vmem:[%s4 + $0x190] sm:$0xf]
      %v2300 = vld [vmem:[%s4 + $0x194] sm:$0xf]
      %v2301 = vld [vmem:[%s4 + $0x198] sm:$0xf]
      %v2302 = vld [vmem:[%s4 + $0x19c] sm:$0xf]
      %v2303 = vld [vmem:[%s4 + $0x1a0] sm:$0xf]
      %v2304 = vld [vmem:[%s4 + $0x1a4] sm:$0xf]
      %v2305 = vld [vmem:[%s4 + $0x1a8] sm:$0xf]
      %v2306 = vld [vmem:[%s4 + $0x1ac] sm:$0xf]
      %v2307 = vld [vmem:[%s4 + $0x1b0] sm:$0xf]
      %v2308 = vld [vmem:[%s4 + $0x1b4] sm:$0xf]
      %v2309 = vld [vmem:[%s4 + $0x1b8] sm:$0xf]
      %v2310 = vld [vmem:[%s4 + $0x1bc] sm:$0xf]
      %v2311 = vld [vmem:[%s4 + $0x1c0] sm:$0xf]
      %v2312 = vld [vmem:[%s4 + $0x1c4] sm:$0xf]
      %v2313 = vld [vmem:[%s4 + $0x1c8] sm:$0xf]
      %v2314 = vld [vmem:[%s4 + $0x1cc] sm:$0xf]
      %v2315 = vld [vmem:[%s4 + $0x1d0] sm:$0xf]
      %v2316 = vld [vmem:[%s4 + $0x1d4] sm:$0xf]
      %v2317 = vld [vmem:[%s4 + $0x1d8] sm:$0xf]
      %v2318 = vld [vmem:[%s4 + $0x1dc] sm:$0xf]
      %v2319 = vld [vmem:[%s4 + $0x1e0] sm:$0xf]
      %v2320 = vld [vmem:[%s4 + $0x1e4] sm:$0xf]
      %v2321 = vld [vmem:[%s4 + $0x1e8] sm:$0xf]
      %v2322 = vld [vmem:[%s4 + $0x1ec] sm:$0xf]
      %v2323 = vld [vmem:[%s4 + $0x1f0] sm:$0xf]
      %v2324 = vld [vmem:[%s4 + $0x1f4] sm:$0xf]
      %v2325 = vld [vmem:[%s4 + $0x1f8] sm:$0xf]
      %v2326 = vld [vmem:[%s4 + $0x1fc] sm:$0xf]
      %v2327 = vld [vmem:[%s4 + $0x200] sm:$0xf]
      %v2328 = vld [vmem:[%s4 + $0x204] sm:$0xf]
      %v2329 = vld [vmem:[%s4 + $0x208] sm:$0xf]
      %v2330 = vld [vmem:[%s4 + $0x20c] sm:$0xf]
      %v2331 = vld [vmem:[%s4 + $0x210] sm:$0xf]
      %v2332 = vld [vmem:[%s4 + $0x214] sm:$0xf]
      %v2333 = vld [vmem:[%s4 + $0x218] sm:$0xf]
      %v2334 = vld [vmem:[%s4 + $0x21c] sm:$0xf]
      %v2335 = vld [vmem:[%s4 + $0x220] sm:$0xf]
      %v2336 = vld [vmem:[%s4 + $0x224] sm:$0xf]
      %v2337 = vld [vmem:[%s4 + $0x228] sm:$0xf]
      %v2338 = vld [vmem:[%s4 + $0x22c] sm:$0xf]
      %v2339 = vld [vmem:[%s4 + $0x230] sm:$0xf]
      %v2340 = vld [vmem:[%s4 + $0x234] sm:$0xf]
      %v2341 = vld [vmem:[%s4 + $0x238] sm:$0xf]
      %v2342 = vld [vmem:[%s4 + $0x23c] sm:$0xf]
      %v2487 = vunpack.c.l.b16 %v2199
      %v2488 = vunpack.c.l.b16 %v2200
      %v2489 = vunpack.c.l.b16 %v2201
      %v2490 = vunpack.c.l.b16 %v2202
      %v2491 = vunpack.c.l.b16 %v2203
      %v2492 = vunpack.c.l.b16 %v2204
      %v2493 = vunpack.c.l.b16 %v2205
      %v2494 = vunpack.c.l.b16 %v2206
      %v2495 = vunpack.c.l.b16 %v2207
      %v2496 = vunpack.c.l.b16 %v2208
      %v2497 = vunpack.c.l.b16 %v2209
      %v2498 = vunpack.c.l.b16 %v2210
      %v2499 = vunpack.c.l.b16 %v2211
      %v2500 = vunpack.c.l.b16 %v2212
      %v2501 = vunpack.c.l.b16 %v2213
      %v2502 = vunpack.c.l.b16 %v2214
      %v2503 = vunpack.c.l.b16 %v2215
      %v2504 = vunpack.c.l.b16 %v2216
      %v2505 = vunpack.c.l.b16 %v2217
      %v2506 = vunpack.c.l.b16 %v2218
      %v2507 = vunpack.c.l.b16 %v2219
      %v2508 = vunpack.c.l.b16 %v2220
      %v2509 = vunpack.c.l.b16 %v2221
      %v2510 = vunpack.c.l.b16 %v2222
      %v2511 = vunpack.c.l.b16 %v2223
      %v2512 = vunpack.c.l.b16 %v2224
      %v2513 = vunpack.c.l.b16 %v2225
      %v2514 = vunpack.c.l.b16 %v2226
      %v2515 = vunpack.c.l.b16 %v2227
      %v2516 = vunpack.c.l.b16 %v2228
      %v2517 = vunpack.c.l.b16 %v2229
      %v2518 = vunpack.c.l.b16 %v2230
      %v2519 = vunpack.c.l.b16 %v2231
      %v2520 = vunpack.c.l.b16 %v2232
      %v2521 = vunpack.c.l.b16 %v2233
      %v2522 = vunpack.c.l.b16 %v2234
      %v2523 = vunpack.c.l.b16 %v2235
      %v2524 = vunpack.c.l.b16 %v2236
      %v2525 = vunpack.c.l.b16 %v2237
      %v2526 = vunpack.c.l.b16 %v2238
      %v2527 = vunpack.c.l.b16 %v2239
      %v2528 = vunpack.c.l.b16 %v2240
      %v2529 = vunpack.c.l.b16 %v2241
      %v2530 = vunpack.c.l.b16 %v2242
      %v2531 = vunpack.c.l.b16 %v2243
      %v2532 = vunpack.c.l.b16 %v2244
      %v2533 = vunpack.c.l.b16 %v2245
      %v2534 = vunpack.c.l.b16 %v2246
      %v2535 = vunpack.c.l.b16 %v2247
      %v2536 = vunpack.c.l.b16 %v2248
      %v2537 = vunpack.c.l.b16 %v2249
      %v2538 = vunpack.c.l.b16 %v2250
      %v2539 = vunpack.c.l.b16 %v2251
      %v2540 = vunpack.c.l.b16 %v2252
      %v2541 = vunpack.c.l.b16 %v2253
      %v2542 = vunpack.c.l.b16 %v2254
      %v2543 = vunpack.c.l.b16 %v2255
      %v2544 = vunpack.c.l.b16 %v2256
      %v2545 = vunpack.c.l.b16 %v2257
      %v2546 = vunpack.c.l.b16 %v2258
      %v2547 = vunpack.c.l.b16 %v2259
      %v2548 = vunpack.c.l.b16 %v2260
      %v2549 = vunpack.c.l.b16 %v2261
      %v2550 = vunpack.c.l.b16 %v2262
      %v2551 = vunpack.c.l.b16 %v2263
      %v2552 = vunpack.c.l.b16 %v2264
      %v2553 = vunpack.c.l.b16 %v2265
      %v2554 = vunpack.c.l.b16 %v2266
      %v2555 = vunpack.c.l.b16 %v2267
      %v2556 = vunpack.c.l.b16 %v2268
      %v2557 = vunpack.c.l.b16 %v2269
      %v2558 = vunpack.c.l.b16 %v2270
      %v2559 = vunpack.c.l.b16 %v2271
      %v2560 = vunpack.c.l.b16 %v2272
      %v2561 = vunpack.c.l.b16 %v2273
      %v2562 = vunpack.c.l.b16 %v2274
      %v2563 = vunpack.c.l.b16 %v2275
      %v2564 = vunpack.c.l.b16 %v2276
      %v2565 = vunpack.c.l.b16 %v2277
      %v2566 = vunpack.c.l.b16 %v2278
      %v2567 = vunpack.c.l.b16 %v2279
      %v2568 = vunpack.c.l.b16 %v2280
      %v2569 = vunpack.c.l.b16 %v2281
      %v2570 = vunpack.c.l.b16 %v2282
      %v2571 = vunpack.c.l.b16 %v2283
      %v2572 = vunpack.c.l.b16 %v2284
      %v2573 = vunpack.c.l.b16 %v2285
      %v2574 = vunpack.c.l.b16 %v2286
      %v2575 = vunpack.c.l.b16 %v2287
      %v2576 = vunpack.c.l.b16 %v2288
      %v2577 = vunpack.c.l.b16 %v2289
      %v2578 = vunpack.c.l.b16 %v2290
      %v2579 = vunpack.c.l.b16 %v2291
      %v2580 = vunpack.c.l.b16 %v2292
      %v2581 = vunpack.c.l.b16 %v2293
      %v2582 = vunpack.c.l.b16 %v2294
      %v2583 = vunpack.c.l.b16 %v2295
      %v2584 = vunpack.c.l.b16 %v2296
      %v2585 = vunpack.c.l.b16 %v2297
      %v2586 = vunpack.c.l.b16 %v2298
      %v2587 = vunpack.c.l.b16 %v2299
      %v2588 = vunpack.c.l.b16 %v2300
      %v2589 = vunpack.c.l.b16 %v2301
      %v2590 = vunpack.c.l.b16 %v2302
      %v2591 = vunpack.c.l.b16 %v2303
      %v2592 = vunpack.c.l.b16 %v2304
      %v2593 = vunpack.c.l.b16 %v2305
      %v2594 = vunpack.c.l.b16 %v2306
      %v2595 = vunpack.c.l.b16 %v2307
      %v2596 = vunpack.c.l.b16 %v2308
      %v2597 = vunpack.c.l.b16 %v2309
      %v2598 = vunpack.c.l.b16 %v2310
      %v2599 = vunpack.c.l.b16 %v2311
      %v2600 = vunpack.c.l.b16 %v2312
      %v2601 = vunpack.c.l.b16 %v2313
      %v2602 = vunpack.c.l.b16 %v2314
      %v2603 = vunpack.c.l.b16 %v2315
      %v2604 = vunpack.c.l.b16 %v2316
      %v2605 = vunpack.c.l.b16 %v2317
      %v2606 = vunpack.c.l.b16 %v2318
      %v2607 = vunpack.c.l.b16 %v2319
      %v2608 = vunpack.c.l.b16 %v2320
      %v2609 = vunpack.c.l.b16 %v2321
      %v2610 = vunpack.c.l.b16 %v2322
      %v2611 = vunpack.c.l.b16 %v2323
      %v2612 = vunpack.c.l.b16 %v2324
      %v2613 = vunpack.c.l.b16 %v2325
      %v2614 = vunpack.c.l.b16 %v2326
      %v2615 = vunpack.c.l.b16 %v2327
      %v2616 = vunpack.c.l.b16 %v2328
      %v2617 = vunpack.c.l.b16 %v2329
      %v2618 = vunpack.c.l.b16 %v2330
      %v2619 = vunpack.c.l.b16 %v2331
      %v2620 = vunpack.c.l.b16 %v2332
      %v2621 = vunpack.c.l.b16 %v2333
      %v2622 = vunpack.c.l.b16 %v2334
      %v2623 = vunpack.c.l.b16 %v2335
      %v2624 = vunpack.c.l.b16 %v2336
      %v2625 = vunpack.c.l.b16 %v2337
      %v2626 = vunpack.c.l.b16 %v2338
      %v2627 = vunpack.c.l.b16 %v2339
      %v2628 = vunpack.c.l.b16 %v2340
      %v2629 = vunpack.c.l.b16 %v2341
      %v2630 = vunpack.c.l.b16 %v2342
      %v2631 = vpack.c.b16 %v2488, %v2487
      %v2632 = vpack.c.b16 %v2490, %v2489
      %v2633 = vpack.c.b16 %v2492, %v2491
      %v2634 = vpack.c.b16 %v2494, %v2493
      %v2635 = vpack.c.b16 %v2496, %v2495
      %v2636 = vpack.c.b16 %v2498, %v2497
      %v2637 = vpack.c.b16 %v2500, %v2499
      %v2638 = vpack.c.b16 %v2502, %v2501
      %v2639 = vpack.c.b16 %v2504, %v2503
      %v2640 = vpack.c.b16 %v2506, %v2505
      %v2641 = vpack.c.b16 %v2508, %v2507
      %v2642 = vpack.c.b16 %v2510, %v2509
      %v2643 = vpack.c.b16 %v2512, %v2511
      %v2644 = vpack.c.b16 %v2514, %v2513
      %v2645 = vpack.c.b16 %v2516, %v2515
      %v2646 = vpack.c.b16 %v2518, %v2517
      %v2647 = vpack.c.b16 %v2520, %v2519
      %v2648 = vpack.c.b16 %v2522, %v2521
      %v2649 = vpack.c.b16 %v2524, %v2523
      %v2650 = vpack.c.b16 %v2526, %v2525
      %v2651 = vpack.c.b16 %v2528, %v2527
      %v2652 = vpack.c.b16 %v2530, %v2529
      %v2653 = vpack.c.b16 %v2532, %v2531
      %v2654 = vpack.c.b16 %v2534, %v2533
      %v2655 = vpack.c.b16 %v2536, %v2535
      %v2656 = vpack.c.b16 %v2538, %v2537
      %v2657 = vpack.c.b16 %v2540, %v2539
      %v2658 = vpack.c.b16 %v2542, %v2541
      %v2659 = vpack.c.b16 %v2544, %v2543
      %v2660 = vpack.c.b16 %v2546, %v2545
      %v2661 = vpack.c.b16 %v2548, %v2547
      %v2662 = vpack.c.b16 %v2550, %v2549
      %v2663 = vpack.c.b16 %v2552, %v2551
      %v2664 = vpack.c.b16 %v2554, %v2553
      %v2665 = vpack.c.b16 %v2556, %v2555
      %v2666 = vpack.c.b16 %v2558, %v2557
      %v2667 = vpack.c.b16 %v2560, %v2559
      %v2668 = vpack.c.b16 %v2562, %v2561
      %v2669 = vpack.c.b16 %v2564, %v2563
      %v2670 = vpack.c.b16 %v2566, %v2565
      %v2671 = vpack.c.b16 %v2568, %v2567
      %v2672 = vpack.c.b16 %v2570, %v2569
      %v2673 = vpack.c.b16 %v2572, %v2571
      %v2674 = vpack.c.b16 %v2574, %v2573
      %v2675 = vpack.c.b16 %v2576, %v2575
      %v2676 = vpack.c.b16 %v2578, %v2577
      %v2677 = vpack.c.b16 %v2580, %v2579
      %v2678 = vpack.c.b16 %v2582, %v2581
      %v2679 = vpack.c.b16 %v2584, %v2583
      %v2680 = vpack.c.b16 %v2586, %v2585
      %v2681 = vpack.c.b16 %v2588, %v2587
      %v2682 = vpack.c.b16 %v2590, %v2589
      %v2683 = vpack.c.b16 %v2592, %v2591
      %v2684 = vpack.c.b16 %v2594, %v2593
      %v2685 = vpack.c.b16 %v2596, %v2595
      %v2686 = vpack.c.b16 %v2598, %v2597
      %v2687 = vpack.c.b16 %v2600, %v2599
      %v2688 = vpack.c.b16 %v2602, %v2601
      %v2689 = vpack.c.b16 %v2604, %v2603
      %v2690 = vpack.c.b16 %v2606, %v2605
      %v2691 = vpack.c.b16 %v2608, %v2607
      %v2692 = vpack.c.b16 %v2610, %v2609
      %v2693 = vpack.c.b16 %v2612, %v2611
      %v2694 = vpack.c.b16 %v2614, %v2613
      %v2695 = vpack.c.b16 %v2616, %v2615
      %v2696 = vpack.c.b16 %v2618, %v2617
      %v2697 = vpack.c.b16 %v2620, %v2619
      %v2698 = vpack.c.b16 %v2622, %v2621
      %v2699 = vpack.c.b16 %v2624, %v2623
      %v2700 = vpack.c.b16 %v2626, %v2625
      %v2701 = vpack.c.b16 %v2628, %v2627
      %v2702 = vpack.c.b16 %v2630, %v2629
      %2775 = vmatpush.bf16.msra.mxu0 %v2638
      %2776 = vmatpush.bf16.msra.mxu0 %v2637
      %2777 = vmatpush.bf16.msra.mxu0 %v2636
      %2778 = vmatpush.bf16.msra.mxu0 %v2635
      %2779 = vmatpush.bf16.msra.mxu0 %v2634
      %2780 = vmatpush.bf16.msra.mxu0 %v2633
      %2781 = vmatpush.bf16.msra.mxu0 %v2632
      %2782 = vmatpush.bf16.msra.mxu0 %v2631
      %2783 = vmatmul.bf16.gmra.mxu0 %v1344
      %v2784 = vpop.f32.mrf.mxu0
      %v2785 = vadd.f32 %v636, %v2784
      %v2786 = vpop.f32.mrf.mxu0
      %v2787 = vadd.f32 %v638, %v2786
      %2788 = vmatmul.bf16.gmra.mxu0 %v1345
      %v2789 = vpop.f32.mrf.mxu0
      %v2790 = vadd.f32 %v641, %v2789
      %v2791 = vpop.f32.mrf.mxu0
      %v2792 = vadd.f32 %v643, %v2791
      %2793 = vmatmul.bf16.gmra.mxu0 %v1346
      %v2794 = vpop.f32.mrf.mxu0
      %v2795 = vadd.f32 %v646, %v2794
      %v2796 = vpop.f32.mrf.mxu0
      %v2797 = vadd.f32 %v648, %v2796
      %2798 = vmatmul.bf16.gmra.mxu0 %v1347
      %v2799 = vpop.f32.mrf.mxu0
      %v2800 = vadd.f32 %v651, %v2799
      %v2801 = vpop.f32.mrf.mxu0
      %v2802 = vadd.f32 %v653, %v2801
      %2803 = vmatmul.bf16.gmra.mxu0 %v1348
      %v2804 = vpop.f32.mrf.mxu0
      %v2805 = vadd.f32 %v656, %v2804
      %v2806 = vpop.f32.mrf.mxu0
      %v2807 = vadd.f32 %v658, %v2806
      %2808 = vmatmul.bf16.gmra.mxu0 %v1349
      %v2809 = vpop.f32.mrf.mxu0
      %v2810 = vadd.f32 %v661, %v2809
      %v2811 = vpop.f32.mrf.mxu0
      %v2812 = vadd.f32 %v663, %v2811
      %2813 = vmatmul.bf16.gmra.mxu0 %v1350
      %v2814 = vpop.f32.mrf.mxu0
      %v2815 = vadd.f32 %v666, %v2814
      %v2816 = vpop.f32.mrf.mxu0
      %v2817 = vadd.f32 %v668, %v2816
      %2818 = vmatmul.bf16.gmra.mxu0 %v1351
      %v2819 = vpop.f32.mrf.mxu0
      %v2820 = vadd.f32 %v671, %v2819
      %v2821 = vpop.f32.mrf.mxu0
      %v2822 = vadd.f32 %v673, %v2821
      %2823 = vmatmul.bf16.gmra.mxu0 %v1352
      %v2824 = vpop.f32.mrf.mxu0
      %v2825 = vadd.f32 %v676, %v2824
      %v2826 = vpop.f32.mrf.mxu0
      %v2827 = vadd.f32 %v678, %v2826
      %2828 = vmatmul.bf16.gmra.mxu0 %v1353
      %v2829 = vpop.f32.mrf.mxu0
      %v2830 = vadd.f32 %v681, %v2829
      %v2831 = vpop.f32.mrf.mxu0
      %v2832 = vadd.f32 %v683, %v2831
      %2833 = vmatmul.bf16.gmra.mxu0 %v1354
      %v2834 = vpop.f32.mrf.mxu0
      %v2835 = vadd.f32 %v686, %v2834
      %v2836 = vpop.f32.mrf.mxu0
      %v2837 = vadd.f32 %v688, %v2836
      %2838 = vmatmul.bf16.gmra.mxu0 %v1355
      %v2839 = vpop.f32.mrf.mxu0
      %v2840 = vadd.f32 %v691, %v2839
      %v2841 = vpop.f32.mrf.mxu0
      %v2842 = vadd.f32 %v693, %v2841
      %2843 = vmatmul.bf16.gmra.mxu0 %v1356
      %v2844 = vpop.f32.mrf.mxu0
      %v2845 = vadd.f32 %v696, %v2844
      %v2846 = vpop.f32.mrf.mxu0
      %v2847 = vadd.f32 %v698, %v2846
      %2848 = vmatmul.bf16.gmra.mxu0 %v1357
      %v2849 = vpop.f32.mrf.mxu0
      %v2850 = vadd.f32 %v701, %v2849
      %v2851 = vpop.f32.mrf.mxu0
      %v2852 = vadd.f32 %v703, %v2851
      %2853 = vmatmul.bf16.gmra.mxu0 %v1358
      %v2854 = vpop.f32.mrf.mxu0
      %v2855 = vadd.f32 %v706, %v2854
      %v2856 = vpop.f32.mrf.mxu0
      %v2857 = vadd.f32 %v708, %v2856
      %2858 = vmatmul.bf16.gmra.mxu0 %v1359
      %v2859 = vpop.f32.mrf.mxu0
      %v2860 = vadd.f32 %v711, %v2859
      %v2861 = vpop.f32.mrf.mxu0
      %v2862 = vadd.f32 %v713, %v2861
      %2863 = vmatmul.bf16.gmra.mxu0 %v1360
      %v2864 = vpop.f32.mrf.mxu0
      %v2865 = vadd.f32 %v716, %v2864
      %v2866 = vpop.f32.mrf.mxu0
      %v2867 = vadd.f32 %v718, %v2866
      %2868 = vmatmul.bf16.gmra.mxu0 %v1361
      %v2869 = vpop.f32.mrf.mxu0
      %v2870 = vadd.f32 %v721, %v2869
      %v2871 = vpop.f32.mrf.mxu0
      %v2872 = vadd.f32 %v723, %v2871
      %2873 = vdwg.mxu0
      %2874 = vmatpush.bf16.msra.mxu0 %v2646
      %2875 = vmatpush.bf16.msra.mxu0 %v2645
      %2876 = vmatpush.bf16.msra.mxu0 %v2644
      %2877 = vmatpush.bf16.msra.mxu0 %v2643
      %2878 = vmatpush.bf16.msra.mxu0 %v2642
      %2879 = vmatpush.bf16.msra.mxu0 %v2641
      %2880 = vmatpush.bf16.msra.mxu0 %v2640
      %2881 = vmatpush.bf16.msra.mxu0 %v2639
      %2882 = vmatmul.bf16.gmra.mxu0 %v1395
      %v2883 = vpop.f32.mrf.mxu0
      %v2884 = vadd.f32 %v2785, %v2883
      %v2885 = vpop.f32.mrf.mxu0
      %v2886 = vadd.f32 %v2787, %v2885
      %2887 = vmatmul.bf16.gmra.mxu0 %v1403
      %v2888 = vpop.f32.mrf.mxu0
      %v2889 = vadd.f32 %v2790, %v2888
      %v2890 = vpop.f32.mrf.mxu0
      %v2891 = vadd.f32 %v2792, %v2890
      %2892 = vmatmul.bf16.gmra.mxu0 %v1411
      %v2893 = vpop.f32.mrf.mxu0
      %v2894 = vadd.f32 %v2795, %v2893
      %v2895 = vpop.f32.mrf.mxu0
      %v2896 = vadd.f32 %v2797, %v2895
      %2897 = vmatmul.bf16.gmra.mxu0 %v1419
      %v2898 = vpop.f32.mrf.mxu0
      %v2899 = vadd.f32 %v2800, %v2898
      %v2900 = vpop.f32.mrf.mxu0
      %v2901 = vadd.f32 %v2802, %v2900
      %2902 = vmatmul.bf16.gmra.mxu0 %v1427
      %v2903 = vpop.f32.mrf.mxu0
      %v2904 = vadd.f32 %v2805, %v2903
      %v2905 = vpop.f32.mrf.mxu0
      %v2906 = vadd.f32 %v2807, %v2905
      %2907 = vmatmul.bf16.gmra.mxu0 %v1435
      %v2908 = vpop.f32.mrf.mxu0
      %v2909 = vadd.f32 %v2810, %v2908
      %v2910 = vpop.f32.mrf.mxu0
      %v2911 = vadd.f32 %v2812, %v2910
      %2912 = vmatmul.bf16.gmra.mxu0 %v1443
      %v2913 = vpop.f32.mrf.mxu0
      %v2914 = vadd.f32 %v2815, %v2913
      %v2915 = vpop.f32.mrf.mxu0
      %v2916 = vadd.f32 %v2817, %v2915
      %2917 = vmatmul.bf16.gmra.mxu0 %v1451
      %v2918 = vpop.f32.mrf.mxu0
      %v2919 = vadd.f32 %v2820, %v2918
      %v2920 = vpop.f32.mrf.mxu0
      %v2921 = vadd.f32 %v2822, %v2920
      %2922 = vmatmul.bf16.gmra.mxu0 %v1459
      %v2923 = vpop.f32.mrf.mxu0
      %v2924 = vadd.f32 %v2825, %v2923
      %v2925 = vpop.f32.mrf.mxu0
      %v2926 = vadd.f32 %v2827, %v2925
      %2927 = vmatmul.bf16.gmra.mxu0 %v1467
      %v2928 = vpop.f32.mrf.mxu0
      %v2929 = vadd.f32 %v2830, %v2928
      %v2930 = vpop.f32.mrf.mxu0
      %v2931 = vadd.f32 %v2832, %v2930
      %2932 = vmatmul.bf16.gmra.mxu0 %v1475
      %v2933 = vpop.f32.mrf.mxu0
      %v2934 = vadd.f32 %v2835, %v2933
      %v2935 = vpop.f32.mrf.mxu0
      %v2936 = vadd.f32 %v2837, %v2935
      %2937 = vmatmul.bf16.gmra.mxu0 %v1483
      %v2938 = vpop.f32.mrf.mxu0
      %v2939 = vadd.f32 %v2840, %v2938
      %v2940 = vpop.f32.mrf.mxu0
      %v2941 = vadd.f32 %v2842, %v2940
      %2942 = vmatmul.bf16.gmra.mxu0 %v1491
      %v2943 = vpop.f32.mrf.mxu0
      %v2944 = vadd.f32 %v2845, %v2943
      %v2945 = vpop.f32.mrf.mxu0
      %v2946 = vadd.f32 %v2847, %v2945
      %2947 = vmatmul.bf16.gmra.mxu0 %v1499
      %v2948 = vpop.f32.mrf.mxu0
      %v2949 = vadd.f32 %v2850, %v2948
      %v2950 = vpop.f32.mrf.mxu0
      %v2951 = vadd.f32 %v2852, %v2950
      %2952 = vmatmul.bf16.gmra.mxu0 %v1507
      %v2953 = vpop.f32.mrf.mxu0
      %v2954 = vadd.f32 %v2855, %v2953
      %v2955 = vpop.f32.mrf.mxu0
      %v2956 = vadd.f32 %v2857, %v2955
      %2957 = vmatmul.bf16.gmra.mxu0 %v1515
      %v2958 = vpop.f32.mrf.mxu0
      %v2959 = vadd.f32 %v2860, %v2958
      %v2960 = vpop.f32.mrf.mxu0
      %v2961 = vadd.f32 %v2862, %v2960
      %2962 = vmatmul.bf16.gmra.mxu0 %v1523
      %v2963 = vpop.f32.mrf.mxu0
      %v2964 = vadd.f32 %v2865, %v2963
      %v2965 = vpop.f32.mrf.mxu0
      %v2966 = vadd.f32 %v2867, %v2965
      %2967 = vmatmul.bf16.gmra.mxu0 %v1531
      %v2968 = vpop.f32.mrf.mxu0
      %v2969 = vadd.f32 %v2870, %v2968
      %v2970 = vpop.f32.mrf.mxu0
      %v2971 = vadd.f32 %v2872, %v2970
      %2972 = vdwg.mxu0
      %2973 = vmatpush.bf16.msra.mxu0 %v2654
      %2974 = vmatpush.bf16.msra.mxu0 %v2653
      %2975 = vmatpush.bf16.msra.mxu0 %v2652
      %2976 = vmatpush.bf16.msra.mxu0 %v2651
      %2977 = vmatpush.bf16.msra.mxu0 %v2650
      %2978 = vmatpush.bf16.msra.mxu0 %v2649
      %2979 = vmatpush.bf16.msra.mxu0 %v2648
      %2980 = vmatpush.bf16.msra.mxu0 %v2647
      %2981 = vmatmul.bf16.gmra.mxu0 %v1556
      %v2982 = vpop.f32.mrf.mxu0
      %v2983 = vadd.f32 %v2884, %v2982
      %v2984 = vpop.f32.mrf.mxu0
      %v2985 = vadd.f32 %v2886, %v2984
      %2986 = vmatmul.bf16.gmra.mxu0 %v1558
      %v2987 = vpop.f32.mrf.mxu0
      %v2988 = vadd.f32 %v2889, %v2987
      %v2989 = vpop.f32.mrf.mxu0
      %v2990 = vadd.f32 %v2891, %v2989
      %2991 = vmatmul.bf16.gmra.mxu0 %v1560
      %v2992 = vpop.f32.mrf.mxu0
      %v2993 = vadd.f32 %v2894, %v2992
      %v2994 = vpop.f32.mrf.mxu0
      %v2995 = vadd.f32 %v2896, %v2994
      %2996 = vmatmul.bf16.gmra.mxu0 %v1562
      %v2997 = vpop.f32.mrf.mxu0
      %v2998 = vadd.f32 %v2899, %v2997
      %v2999 = vpop.f32.mrf.mxu0
      %v3000 = vadd.f32 %v2901, %v2999
      %3001 = vmatmul.bf16.gmra.mxu0 %v1564
      %v3002 = vpop.f32.mrf.mxu0
      %v3003 = vadd.f32 %v2904, %v3002
      %v3004 = vpop.f32.mrf.mxu0
      %v3005 = vadd.f32 %v2906, %v3004
      %3006 = vmatmul.bf16.gmra.mxu0 %v1566
      %v3007 = vpop.f32.mrf.mxu0
      %v3008 = vadd.f32 %v2909, %v3007
      %v3009 = vpop.f32.mrf.mxu0
      %v3010 = vadd.f32 %v2911, %v3009
      %3011 = vmatmul.bf16.gmra.mxu0 %v1568
      %v3012 = vpop.f32.mrf.mxu0
      %v3013 = vadd.f32 %v2914, %v3012
      %v3014 = vpop.f32.mrf.mxu0
      %v3015 = vadd.f32 %v2916, %v3014
      %3016 = vmatmul.bf16.gmra.mxu0 %v1570
      %v3017 = vpop.f32.mrf.mxu0
      %v3018 = vadd.f32 %v2919, %v3017
      %v3019 = vpop.f32.mrf.mxu0
      %v3020 = vadd.f32 %v2921, %v3019
      %3021 = vmatmul.bf16.gmra.mxu0 %v1572
      %v3022 = vpop.f32.mrf.mxu0
      %v3023 = vadd.f32 %v2924, %v3022
      %v3024 = vpop.f32.mrf.mxu0
      %v3025 = vadd.f32 %v2926, %v3024
      %3026 = vmatmul.bf16.gmra.mxu0 %v1574
      %v3027 = vpop.f32.mrf.mxu0
      %v3028 = vadd.f32 %v2929, %v3027
      %v3029 = vpop.f32.mrf.mxu0
      %v3030 = vadd.f32 %v2931, %v3029
      %3031 = vmatmul.bf16.gmra.mxu0 %v1576
      %v3032 = vpop.f32.mrf.mxu0
      %v3033 = vadd.f32 %v2934, %v3032
      %v3034 = vpop.f32.mrf.mxu0
      %v3035 = vadd.f32 %v2936, %v3034
      %3036 = vmatmul.bf16.gmra.mxu0 %v1578
      %v3037 = vpop.f32.mrf.mxu0
      %v3038 = vadd.f32 %v2939, %v3037
      %v3039 = vpop.f32.mrf.mxu0
      %v3040 = vadd.f32 %v2941, %v3039
      %3041 = vmatmul.bf16.gmra.mxu0 %v1580
      %v3042 = vpop.f32.mrf.mxu0
      %v3043 = vadd.f32 %v2944, %v3042
      %v3044 = vpop.f32.mrf.mxu0
      %v3045 = vadd.f32 %v2946, %v3044
      %3046 = vmatmul.bf16.gmra.mxu0 %v1582
      %v3047 = vpop.f32.mrf.mxu0
      %v3048 = vadd.f32 %v2949, %v3047
      %v3049 = vpop.f32.mrf.mxu0
      %v3050 = vadd.f32 %v2951, %v3049
      %3051 = vmatmul.bf16.gmra.mxu0 %v1584
      %v3052 = vpop.f32.mrf.mxu0
      %v3053 = vadd.f32 %v2954, %v3052
      %v3054 = vpop.f32.mrf.mxu0
      %v3055 = vadd.f32 %v2956, %v3054
      %3056 = vmatmul.bf16.gmra.mxu0 %v1586
      %v3057 = vpop.f32.mrf.mxu0
      %v3058 = vadd.f32 %v2959, %v3057
      %v3059 = vpop.f32.mrf.mxu0
      %v3060 = vadd.f32 %v2961, %v3059
      %3061 = vmatmul.bf16.gmra.mxu0 %v1588
      %v3062 = vpop.f32.mrf.mxu0
      %v3063 = vadd.f32 %v2964, %v3062
      %v3064 = vpop.f32.mrf.mxu0
      %v3065 = vadd.f32 %v2966, %v3064
      %3066 = vmatmul.bf16.gmra.mxu0 %v1590
      %v3067 = vpop.f32.mrf.mxu0
      %v3068 = vadd.f32 %v2969, %v3067
      %v3069 = vpop.f32.mrf.mxu0
      %v3070 = vadd.f32 %v2971, %v3069
      %3071 = vdwg.mxu0
      %3072 = vmatpush.bf16.msra.mxu0 %v2662
      %3073 = vmatpush.bf16.msra.mxu0 %v2661
      %3074 = vmatpush.bf16.msra.mxu0 %v2660
      %3075 = vmatpush.bf16.msra.mxu0 %v2659
      %3076 = vmatpush.bf16.msra.mxu0 %v2658
      %3077 = vmatpush.bf16.msra.mxu0 %v2657
      %3078 = vmatpush.bf16.msra.mxu0 %v2656
      %3079 = vmatpush.bf16.msra.mxu0 %v2655
      %3080 = vmatmul.bf16.gmra.mxu0 %v1621
      %v3081 = vpop.f32.mrf.mxu0
      %v3082 = vadd.f32 %v2983, %v3081
      %v3083 = vpop.f32.mrf.mxu0
      %v3084 = vadd.f32 %v2985, %v3083
      %3085 = vmatmul.bf16.gmra.mxu0 %v1560
      %v3086 = vpop.f32.mrf.mxu0
      %v3087 = vadd.f32 %v2988, %v3086
      %v3088 = vpop.f32.mrf.mxu0
      %v3089 = vadd.f32 %v2990, %v3088
      %3090 = vmatmul.bf16.gmra.mxu0 %v1562
      %v3091 = vpop.f32.mrf.mxu0
      %v3092 = vadd.f32 %v2993, %v3091
      %v3093 = vpop.f32.mrf.mxu0
      %v3094 = vadd.f32 %v2995, %v3093
      %3095 = vmatmul.bf16.gmra.mxu0 %v1564
      %v3096 = vpop.f32.mrf.mxu0
      %v3097 = vadd.f32 %v2998, %v3096
      %v3098 = vpop.f32.mrf.mxu0
      %v3099 = vadd.f32 %v3000, %v3098
      %3100 = vmatmul.bf16.gmra.mxu0 %v1566
      %v3101 = vpop.f32.mrf.mxu0
      %v3102 = vadd.f32 %v3003, %v3101
      %v3103 = vpop.f32.mrf.mxu0
      %v3104 = vadd.f32 %v3005, %v3103
      %3105 = vmatmul.bf16.gmra.mxu0 %v1568
      %v3106 = vpop.f32.mrf.mxu0
      %v3107 = vadd.f32 %v3008, %v3106
      %v3108 = vpop.f32.mrf.mxu0
      %v3109 = vadd.f32 %v3010, %v3108
      %3110 = vmatmul.bf16.gmra.mxu0 %v1570
      %v3111 = vpop.f32.mrf.mxu0
      %v3112 = vadd.f32 %v3013, %v3111
      %v3113 = vpop.f32.mrf.mxu0
      %v3114 = vadd.f32 %v3015, %v3113
      %3115 = vmatmul.bf16.gmra.mxu0 %v1572
      %v3116 = vpop.f32.mrf.mxu0
      %v3117 = vadd.f32 %v3018, %v3116
      %v3118 = vpop.f32.mrf.mxu0
      %v3119 = vadd.f32 %v3020, %v3118
      %3120 = vmatmul.bf16.gmra.mxu0 %v1574
      %v3121 = vpop.f32.mrf.mxu0
      %v3122 = vadd.f32 %v3023, %v3121
      %v3123 = vpop.f32.mrf.mxu0
      %v3124 = vadd.f32 %v3025, %v3123
      %3125 = vmatmul.bf16.gmra.mxu0 %v1576
      %v3126 = vpop.f32.mrf.mxu0
      %v3127 = vadd.f32 %v3028, %v3126
      %v3128 = vpop.f32.mrf.mxu0
      %v3129 = vadd.f32 %v3030, %v3128
      %3130 = vmatmul.bf16.gmra.mxu0 %v1578
      %v3131 = vpop.f32.mrf.mxu0
      %v3132 = vadd.f32 %v3033, %v3131
      %v3133 = vpop.f32.mrf.mxu0
      %v3134 = vadd.f32 %v3035, %v3133
      %3135 = vmatmul.bf16.gmra.mxu0 %v1580
      %v3136 = vpop.f32.mrf.mxu0
      %v3137 = vadd.f32 %v3038, %v3136
      %v3138 = vpop.f32.mrf.mxu0
      %v3139 = vadd.f32 %v3040, %v3138
      %3140 = vmatmul.bf16.gmra.mxu0 %v1582
      %v3141 = vpop.f32.mrf.mxu0
      %v3142 = vadd.f32 %v3043, %v3141
      %v3143 = vpop.f32.mrf.mxu0
      %v3144 = vadd.f32 %v3045, %v3143
      %3145 = vmatmul.bf16.gmra.mxu0 %v1584
      %v3146 = vpop.f32.mrf.mxu0
      %v3147 = vadd.f32 %v3048, %v3146
      %v3148 = vpop.f32.mrf.mxu0
      %v3149 = vadd.f32 %v3050, %v3148
      %3150 = vmatmul.bf16.gmra.mxu0 %v1586
      %v3151 = vpop.f32.mrf.mxu0
      %v3152 = vadd.f32 %v3053, %v3151
      %v3153 = vpop.f32.mrf.mxu0
      %v3154 = vadd.f32 %v3055, %v3153
      %3155 = vmatmul.bf16.gmra.mxu0 %v1588
      %v3156 = vpop.f32.mrf.mxu0
      %v3157 = vadd.f32 %v3058, %v3156
      %v3158 = vpop.f32.mrf.mxu0
      %v3159 = vadd.f32 %v3060, %v3158
      %3160 = vmatmul.bf16.gmra.mxu0 %v1623
      %v3161 = vpop.f32.mrf.mxu0
      %v3162 = vadd.f32 %v3063, %v3161
      %v3163 = vpop.f32.mrf.mxu0
      %v3164 = vadd.f32 %v3065, %v3163
      %3165 = vmatmul.bf16.gmra.mxu0 %v1625
      %v3166 = vpop.f32.mrf.mxu0
      %v3167 = vadd.f32 %v3068, %v3166
      %v3168 = vpop.f32.mrf.mxu0
      %v3169 = vadd.f32 %v3070, %v3168
      %3170 = vdwg.mxu0
      %3171 = vmatpush.bf16.msra.mxu0 %v2670
      %3172 = vmatpush.bf16.msra.mxu0 %v2669
      %3173 = vmatpush.bf16.msra.mxu0 %v2668
      %3174 = vmatpush.bf16.msra.mxu0 %v2667
      %3175 = vmatpush.bf16.msra.mxu0 %v2666
      %3176 = vmatpush.bf16.msra.mxu0 %v2665
      %3177 = vmatpush.bf16.msra.mxu0 %v2664
      %3178 = vmatpush.bf16.msra.mxu0 %v2663
      %3179 = vmatmul.bf16.gmra.mxu0 %v1644
      %v3180 = vpop.f32.mrf.mxu0
      %v3181 = vadd.f32 %v3082, %v3180
      %v3182 = vpop.f32.mrf.mxu0
      %v3183 = vadd.f32 %v3084, %v3182
      %3184 = vmatmul.bf16.gmra.mxu0 %v1648
      %v3185 = vpop.f32.mrf.mxu0
      %v3186 = vadd.f32 %v3087, %v3185
      %v3187 = vpop.f32.mrf.mxu0
      %v3188 = vadd.f32 %v3089, %v3187
      %3189 = vmatmul.bf16.gmra.mxu0 %v1652
      %v3190 = vpop.f32.mrf.mxu0
      %v3191 = vadd.f32 %v3092, %v3190
      %v3192 = vpop.f32.mrf.mxu0
      %v3193 = vadd.f32 %v3094, %v3192
      %3194 = vmatmul.bf16.gmra.mxu0 %v1656
      %v3195 = vpop.f32.mrf.mxu0
      %v3196 = vadd.f32 %v3097, %v3195
      %v3197 = vpop.f32.mrf.mxu0
      %v3198 = vadd.f32 %v3099, %v3197
      %3199 = vmatmul.bf16.gmra.mxu0 %v1660
      %v3200 = vpop.f32.mrf.mxu0
      %v3201 = vadd.f32 %v3102, %v3200
      %v3202 = vpop.f32.mrf.mxu0
      %v3203 = vadd.f32 %v3104, %v3202
      %3204 = vmatmul.bf16.gmra.mxu0 %v1664
      %v3205 = vpop.f32.mrf.mxu0
      %v3206 = vadd.f32 %v3107, %v3205
      %v3207 = vpop.f32.mrf.mxu0
      %v3208 = vadd.f32 %v3109, %v3207
      %3209 = vmatmul.bf16.gmra.mxu0 %v1668
      %v3210 = vpop.f32.mrf.mxu0
      %v3211 = vadd.f32 %v3112, %v3210
      %v3212 = vpop.f32.mrf.mxu0
      %v3213 = vadd.f32 %v3114, %v3212
      %3214 = vmatmul.bf16.gmra.mxu0 %v1672
      %v3215 = vpop.f32.mrf.mxu0
      %v3216 = vadd.f32 %v3117, %v3215
      %v3217 = vpop.f32.mrf.mxu0
      %v3218 = vadd.f32 %v3119, %v3217
      %3219 = vmatmul.bf16.gmra.mxu0 %v1676
      %v3220 = vpop.f32.mrf.mxu0
      %v3221 = vadd.f32 %v3122, %v3220
      %v3222 = vpop.f32.mrf.mxu0
      %v3223 = vadd.f32 %v3124, %v3222
      %3224 = vmatmul.bf16.gmra.mxu0 %v1680
      %v3225 = vpop.f32.mrf.mxu0
      %v3226 = vadd.f32 %v3127, %v3225
      %v3227 = vpop.f32.mrf.mxu0
      %v3228 = vadd.f32 %v3129, %v3227
      %3229 = vmatmul.bf16.gmra.mxu0 %v1684
      %v3230 = vpop.f32.mrf.mxu0
      %v3231 = vadd.f32 %v3132, %v3230
      %v3232 = vpop.f32.mrf.mxu0
      %v3233 = vadd.f32 %v3134, %v3232
      %3234 = vmatmul.bf16.gmra.mxu0 %v1688
      %v3235 = vpop.f32.mrf.mxu0
      %v3236 = vadd.f32 %v3137, %v3235
      %v3237 = vpop.f32.mrf.mxu0
      %v3238 = vadd.f32 %v3139, %v3237
      %3239 = vmatmul.bf16.gmra.mxu0 %v1692
      %v3240 = vpop.f32.mrf.mxu0
      %v3241 = vadd.f32 %v3142, %v3240
      %v3242 = vpop.f32.mrf.mxu0
      %v3243 = vadd.f32 %v3144, %v3242
      %3244 = vmatmul.bf16.gmra.mxu0 %v1696
      %v3245 = vpop.f32.mrf.mxu0
      %v3246 = vadd.f32 %v3147, %v3245
      %v3247 = vpop.f32.mrf.mxu0
      %v3248 = vadd.f32 %v3149, %v3247
      %3249 = vmatmul.bf16.gmra.mxu0 %v1700
      %v3250 = vpop.f32.mrf.mxu0
      %v3251 = vadd.f32 %v3152, %v3250
      %v3252 = vpop.f32.mrf.mxu0
      %v3253 = vadd.f32 %v3154, %v3252
      %3254 = vmatmul.bf16.gmra.mxu0 %v1704
      %v3255 = vpop.f32.mrf.mxu0
      %v3256 = vadd.f32 %v3157, %v3255
      %v3257 = vpop.f32.mrf.mxu0
      %v3258 = vadd.f32 %v3159, %v3257
      %3259 = vmatmul.bf16.gmra.mxu0 %v1713
      %v3260 = vpop.f32.mrf.mxu0
      %v3261 = vadd.f32 %v3162, %v3260
      %v3262 = vpop.f32.mrf.mxu0
      %v3263 = vadd.f32 %v3164, %v3262
      %3264 = vmatmul.bf16.gmra.mxu0 %v1722
      %v3265 = vpop.f32.mrf.mxu0
      %v3266 = vadd.f32 %v3167, %v3265
      %v3267 = vpop.f32.mrf.mxu0
      %v3268 = vadd.f32 %v3169, %v3267
      %3269 = vdwg.mxu0
      %3270 = vmatpush.bf16.msra.mxu0 %v2678
      %3271 = vmatpush.bf16.msra.mxu0 %v2677
      %3272 = vmatpush.bf16.msra.mxu0 %v2676
      %3273 = vmatpush.bf16.msra.mxu0 %v2675
      %3274 = vmatpush.bf16.msra.mxu0 %v2674
      %3275 = vmatpush.bf16.msra.mxu0 %v2673
      %3276 = vmatpush.bf16.msra.mxu0 %v2672
      %3277 = vmatpush.bf16.msra.mxu0 %v2671
      %3278 = vmatmul.bf16.gmra.mxu0 %v1747
      %v3279 = vpop.f32.mrf.mxu0
      %v3280 = vadd.f32 %v3181, %v3279
      %v3281 = vpop.f32.mrf.mxu0
      %v3282 = vadd.f32 %v3183, %v3281
      %3283 = vmatmul.bf16.gmra.mxu0 %v1749
      %v3284 = vpop.f32.mrf.mxu0
      %v3285 = vadd.f32 %v3186, %v3284
      %v3286 = vpop.f32.mrf.mxu0
      %v3287 = vadd.f32 %v3188, %v3286
      %3288 = vmatmul.bf16.gmra.mxu0 %v1751
      %v3289 = vpop.f32.mrf.mxu0
      %v3290 = vadd.f32 %v3191, %v3289
      %v3291 = vpop.f32.mrf.mxu0
      %v3292 = vadd.f32 %v3193, %v3291
      %3293 = vmatmul.bf16.gmra.mxu0 %v1753
      %v3294 = vpop.f32.mrf.mxu0
      %v3295 = vadd.f32 %v3196, %v3294
      %v3296 = vpop.f32.mrf.mxu0
      %v3297 = vadd.f32 %v3198, %v3296
      %3298 = vmatmul.bf16.gmra.mxu0 %v1755
      %v3299 = vpop.f32.mrf.mxu0
      %v3300 = vadd.f32 %v3201, %v3299
      %v3301 = vpop.f32.mrf.mxu0
      %v3302 = vadd.f32 %v3203, %v3301
      %3303 = vmatmul.bf16.gmra.mxu0 %v1757
      %v3304 = vpop.f32.mrf.mxu0
      %v3305 = vadd.f32 %v3206, %v3304
      %v3306 = vpop.f32.mrf.mxu0
      %v3307 = vadd.f32 %v3208, %v3306
      %3308 = vmatmul.bf16.gmra.mxu0 %v1759
      %v3309 = vpop.f32.mrf.mxu0
      %v3310 = vadd.f32 %v3211, %v3309
      %v3311 = vpop.f32.mrf.mxu0
      %v3312 = vadd.f32 %v3213, %v3311
      %3313 = vmatmul.bf16.gmra.mxu0 %v1761
      %v3314 = vpop.f32.mrf.mxu0
      %v3315 = vadd.f32 %v3216, %v3314
      %v3316 = vpop.f32.mrf.mxu0
      %v3317 = vadd.f32 %v3218, %v3316
      %3318 = vmatmul.bf16.gmra.mxu0 %v1763
      %v3319 = vpop.f32.mrf.mxu0
      %v3320 = vadd.f32 %v3221, %v3319
      %v3321 = vpop.f32.mrf.mxu0
      %v3322 = vadd.f32 %v3223, %v3321
      %3323 = vmatmul.bf16.gmra.mxu0 %v1765
      %v3324 = vpop.f32.mrf.mxu0
      %v3325 = vadd.f32 %v3226, %v3324
      %v3326 = vpop.f32.mrf.mxu0
      %v3327 = vadd.f32 %v3228, %v3326
      %3328 = vmatmul.bf16.gmra.mxu0 %v1767
      %v3329 = vpop.f32.mrf.mxu0
      %v3330 = vadd.f32 %v3231, %v3329
      %v3331 = vpop.f32.mrf.mxu0
      %v3332 = vadd.f32 %v3233, %v3331
      %3333 = vmatmul.bf16.gmra.mxu0 %v1769
      %v3334 = vpop.f32.mrf.mxu0
      %v3335 = vadd.f32 %v3236, %v3334
      %v3336 = vpop.f32.mrf.mxu0
      %v3337 = vadd.f32 %v3238, %v3336
      %3338 = vmatmul.bf16.gmra.mxu0 %v1771
      %v3339 = vpop.f32.mrf.mxu0
      %v3340 = vadd.f32 %v3241, %v3339
      %v3341 = vpop.f32.mrf.mxu0
      %v3342 = vadd.f32 %v3243, %v3341
      %3343 = vmatmul.bf16.gmra.mxu0 %v1773
      %v3344 = vpop.f32.mrf.mxu0
      %v3345 = vadd.f32 %v3246, %v3344
      %v3346 = vpop.f32.mrf.mxu0
      %v3347 = vadd.f32 %v3248, %v3346
      %3348 = vmatmul.bf16.gmra.mxu0 %v1775
      %v3349 = vpop.f32.mrf.mxu0
      %v3350 = vadd.f32 %v3251, %v3349
      %v3351 = vpop.f32.mrf.mxu0
      %v3352 = vadd.f32 %v3253, %v3351
      %3353 = vmatmul.bf16.gmra.mxu0 %v1777
      %v3354 = vpop.f32.mrf.mxu0
      %v3355 = vadd.f32 %v3256, %v3354
      %v3356 = vpop.f32.mrf.mxu0
      %v3357 = vadd.f32 %v3258, %v3356
      %3358 = vmatmul.bf16.gmra.mxu0 %v1779
      %v3359 = vpop.f32.mrf.mxu0
      %v3360 = vadd.f32 %v3261, %v3359
      %v3361 = vpop.f32.mrf.mxu0
      %v3362 = vadd.f32 %v3263, %v3361
      %3363 = vmatmul.bf16.gmra.mxu0 %v1781
      %v3364 = vpop.f32.mrf.mxu0
      %v3365 = vadd.f32 %v3266, %v3364
      %v3366 = vpop.f32.mrf.mxu0
      %v3367 = vadd.f32 %v3268, %v3366
      %3368 = vdwg.mxu0
      %3369 = vmatpush.bf16.msra.mxu0 %v2686
      %3370 = vmatpush.bf16.msra.mxu0 %v2685
      %3371 = vmatpush.bf16.msra.mxu0 %v2684
      %3372 = vmatpush.bf16.msra.mxu0 %v2683
      %3373 = vmatpush.bf16.msra.mxu0 %v2682
      %3374 = vmatpush.bf16.msra.mxu0 %v2681
      %3375 = vmatpush.bf16.msra.mxu0 %v2680
      %3376 = vmatpush.bf16.msra.mxu0 %v2679
      %3377 = vmatmul.bf16.gmra.mxu0 %v1895
      %v3378 = vpop.f32.mrf.mxu0
      %v3379 = vadd.f32 %v3280, %v3378
      %v3380 = vpop.f32.mrf.mxu0
      %v3381 = vadd.f32 %v3282, %v3380
      %3382 = vmatmul.bf16.gmra.mxu0 %v1897
      %v3383 = vpop.f32.mrf.mxu0
      %v3384 = vadd.f32 %v3285, %v3383
      %v3385 = vpop.f32.mrf.mxu0
      %v3386 = vadd.f32 %v3287, %v3385
      %3387 = vmatmul.bf16.gmra.mxu0 %v1899
      %v3388 = vpop.f32.mrf.mxu0
      %v3389 = vadd.f32 %v3290, %v3388
      %v3390 = vpop.f32.mrf.mxu0
      %v3391 = vadd.f32 %v3292, %v3390
      %3392 = vmatmul.bf16.gmra.mxu0 %v1901
      %v3393 = vpop.f32.mrf.mxu0
      %v3394 = vadd.f32 %v3295, %v3393
      %v3395 = vpop.f32.mrf.mxu0
      %v3396 = vadd.f32 %v3297, %v3395
      %3397 = vmatmul.bf16.gmra.mxu0 %v1903
      %v3398 = vpop.f32.mrf.mxu0
      %v3399 = vadd.f32 %v3300, %v3398
      %v3400 = vpop.f32.mrf.mxu0
      %v3401 = vadd.f32 %v3302, %v3400
      %3402 = vmatmul.bf16.gmra.mxu0 %v1905
      %v3403 = vpop.f32.mrf.mxu0
      %v3404 = vadd.f32 %v3305, %v3403
      %v3405 = vpop.f32.mrf.mxu0
      %v3406 = vadd.f32 %v3307, %v3405
      %3407 = vmatmul.bf16.gmra.mxu0 %v1907
      %v3408 = vpop.f32.mrf.mxu0
      %v3409 = vadd.f32 %v3310, %v3408
      %v3410 = vpop.f32.mrf.mxu0
      %v3411 = vadd.f32 %v3312, %v3410
      %3412 = vmatmul.bf16.gmra.mxu0 %v1909
      %v3413 = vpop.f32.mrf.mxu0
      %v3414 = vadd.f32 %v3315, %v3413
      %v3415 = vpop.f32.mrf.mxu0
      %v3416 = vadd.f32 %v3317, %v3415
      %3417 = vmatmul.bf16.gmra.mxu0 %v1911
      %v3418 = vpop.f32.mrf.mxu0
      %v3419 = vadd.f32 %v3320, %v3418
      %v3420 = vpop.f32.mrf.mxu0
      %v3421 = vadd.f32 %v3322, %v3420
      %3422 = vmatmul.bf16.gmra.mxu0 %v1913
      %v3423 = vpop.f32.mrf.mxu0
      %v3424 = vadd.f32 %v3325, %v3423
      %v3425 = vpop.f32.mrf.mxu0
      %v3426 = vadd.f32 %v3327, %v3425
      %3427 = vmatmul.bf16.gmra.mxu0 %v1915
      %v3428 = vpop.f32.mrf.mxu0
      %v3429 = vadd.f32 %v3330, %v3428
      %v3430 = vpop.f32.mrf.mxu0
      %v3431 = vadd.f32 %v3332, %v3430
      %3432 = vmatmul.bf16.gmra.mxu0 %v1917
      %v3433 = vpop.f32.mrf.mxu0
      %v3434 = vadd.f32 %v3335, %v3433
      %v3435 = vpop.f32.mrf.mxu0
      %v3436 = vadd.f32 %v3337, %v3435
      %3437 = vmatmul.bf16.gmra.mxu0 %v1919
      %v3438 = vpop.f32.mrf.mxu0
      %v3439 = vadd.f32 %v3340, %v3438
      %v3440 = vpop.f32.mrf.mxu0
      %v3441 = vadd.f32 %v3342, %v3440
      %3442 = vmatmul.bf16.gmra.mxu0 %v1921
      %v3443 = vpop.f32.mrf.mxu0
      %v3444 = vadd.f32 %v3345, %v3443
      %v3445 = vpop.f32.mrf.mxu0
      %v3446 = vadd.f32 %v3347, %v3445
      %3447 = vmatmul.bf16.gmra.mxu0 %v1923
      %v3448 = vpop.f32.mrf.mxu0
      %v3449 = vadd.f32 %v3350, %v3448
      %v3450 = vpop.f32.mrf.mxu0
      %v3451 = vadd.f32 %v3352, %v3450
      %3452 = vmatmul.bf16.gmra.mxu0 %v1925
      %v3453 = vpop.f32.mrf.mxu0
      %v3454 = vadd.f32 %v3355, %v3453
      %v3455 = vpop.f32.mrf.mxu0
      %v3456 = vadd.f32 %v3357, %v3455
      %3457 = vmatmul.bf16.gmra.mxu0 %v1927
      %v3458 = vpop.f32.mrf.mxu0
      %v3459 = vadd.f32 %v3360, %v3458
      %v3460 = vpop.f32.mrf.mxu0
      %v3461 = vadd.f32 %v3362, %v3460
      %3462 = vmatmul.bf16.gmra.mxu0 %v1929
      %v3463 = vpop.f32.mrf.mxu0
      %v3464 = vadd.f32 %v3365, %v3463
      %v3465 = vpop.f32.mrf.mxu0
      %v3466 = vadd.f32 %v3367, %v3465
      %3467 = vdwg.mxu0
      %3468 = vmatpush.bf16.msra.mxu0 %v2694
      %3469 = vmatpush.bf16.msra.mxu0 %v2693
      %3470 = vmatpush.bf16.msra.mxu0 %v2692
      %3471 = vmatpush.bf16.msra.mxu0 %v2691
      %3472 = vmatpush.bf16.msra.mxu0 %v2690
      %3473 = vmatpush.bf16.msra.mxu0 %v2689
      %3474 = vmatpush.bf16.msra.mxu0 %v2688
      %3475 = vmatpush.bf16.msra.mxu0 %v2687
      %3476 = vmatmul.bf16.gmra.mxu0 %v1968
      %v3477 = vpop.f32.mrf.mxu0
      %v3478 = vadd.f32 %v3379, %v3477
      %v3479 = vpop.f32.mrf.mxu0
      %v3480 = vadd.f32 %v3381, %v3479
      %3481 = vmatmul.bf16.gmra.mxu0 %v1977
      %v3482 = vpop.f32.mrf.mxu0
      %v3483 = vadd.f32 %v3384, %v3482
      %v3484 = vpop.f32.mrf.mxu0
      %v3485 = vadd.f32 %v3386, %v3484
      %3486 = vmatmul.bf16.gmra.mxu0 %v1986
      %v3487 = vpop.f32.mrf.mxu0
      %v3488 = vadd.f32 %v3389, %v3487
      %v3489 = vpop.f32.mrf.mxu0
      %v3490 = vadd.f32 %v3391, %v3489
      %3491 = vmatmul.bf16.gmra.mxu0 %v1995
      %v3492 = vpop.f32.mrf.mxu0
      %v3493 = vadd.f32 %v3394, %v3492
      %v3494 = vpop.f32.mrf.mxu0
      %v3495 = vadd.f32 %v3396, %v3494
      %3496 = vmatmul.bf16.gmra.mxu0 %v2004
      %v3497 = vpop.f32.mrf.mxu0
      %v3498 = vadd.f32 %v3399, %v3497
      %v3499 = vpop.f32.mrf.mxu0
      %v3500 = vadd.f32 %v3401, %v3499
      %3501 = vmatmul.bf16.gmra.mxu0 %v2013
      %v3502 = vpop.f32.mrf.mxu0
      %v3503 = vadd.f32 %v3404, %v3502
      %v3504 = vpop.f32.mrf.mxu0
      %v3505 = vadd.f32 %v3406, %v3504
      %3506 = vmatmul.bf16.gmra.mxu0 %v2022
      %v3507 = vpop.f32.mrf.mxu0
      %v3508 = vadd.f32 %v3409, %v3507
      %v3509 = vpop.f32.mrf.mxu0
      %v3510 = vadd.f32 %v3411, %v3509
      %3511 = vmatmul.bf16.gmra.mxu0 %v2031
      %v3512 = vpop.f32.mrf.mxu0
      %v3513 = vadd.f32 %v3414, %v3512
      %v3514 = vpop.f32.mrf.mxu0
      %v3515 = vadd.f32 %v3416, %v3514
      %3516 = vmatmul.bf16.gmra.mxu0 %v2040
      %v3517 = vpop.f32.mrf.mxu0
      %v3518 = vadd.f32 %v3419, %v3517
      %v3519 = vpop.f32.mrf.mxu0
      %v3520 = vadd.f32 %v3421, %v3519
      %3521 = vmatmul.bf16.gmra.mxu0 %v2049
      %v3522 = vpop.f32.mrf.mxu0
      %v3523 = vadd.f32 %v3424, %v3522
      %v3524 = vpop.f32.mrf.mxu0
      %v3525 = vadd.f32 %v3426, %v3524
      %3526 = vmatmul.bf16.gmra.mxu0 %v2058
      %v3527 = vpop.f32.mrf.mxu0
      %v3528 = vadd.f32 %v3429, %v3527
      %v3529 = vpop.f32.mrf.mxu0
      %v3530 = vadd.f32 %v3431, %v3529
      %3531 = vmatmul.bf16.gmra.mxu0 %v2067
      %v3532 = vpop.f32.mrf.mxu0
      %v3533 = vadd.f32 %v3434, %v3532
      %v3534 = vpop.f32.mrf.mxu0
      %v3535 = vadd.f32 %v3436, %v3534
      %3536 = vmatmul.bf16.gmra.mxu0 %v2076
      %v3537 = vpop.f32.mrf.mxu0
      %v3538 = vadd.f32 %v3439, %v3537
      %v3539 = vpop.f32.mrf.mxu0
      %v3540 = vadd.f32 %v3441, %v3539
      %3541 = vmatmul.bf16.gmra.mxu0 %v2085
      %v3542 = vpop.f32.mrf.mxu0
      %v3543 = vadd.f32 %v3444, %v3542
      %v3544 = vpop.f32.mrf.mxu0
      %v3545 = vadd.f32 %v3446, %v3544
      %3546 = vmatmul.bf16.gmra.mxu0 %v2094
      %v3547 = vpop.f32.mrf.mxu0
      %v3548 = vadd.f32 %v3449, %v3547
      %v3549 = vpop.f32.mrf.mxu0
      %v3550 = vadd.f32 %v3451, %v3549
      %3551 = vmatmul.bf16.gmra.mxu0 %v2103
      %v3552 = vpop.f32.mrf.mxu0
      %v3553 = vadd.f32 %v3454, %v3552
      %v3554 = vpop.f32.mrf.mxu0
      %v3555 = vadd.f32 %v3456, %v3554
      %3556 = vmatmul.bf16.gmra.mxu0 %v2112
      %v3557 = vpop.f32.mrf.mxu0
      %v3558 = vadd.f32 %v3459, %v3557
      %v3559 = vpop.f32.mrf.mxu0
      %v3560 = vadd.f32 %v3461, %v3559
      %3561 = vmatmul.bf16.gmra.mxu0 %v2121
      %v3562 = vpop.f32.mrf.mxu0
      %v3563 = vadd.f32 %v3464, %v3562
      %v3564 = vpop.f32.mrf.mxu0
      %v3565 = vadd.f32 %v3466, %v3564
      %3566 = vdwg.mxu0
      %3567 = vmatpush.bf16.msra.mxu0 %v2702
      %3568 = vmatpush.bf16.msra.mxu0 %v2701
      %3569 = vmatpush.bf16.msra.mxu0 %v2700
      %3570 = vmatpush.bf16.msra.mxu0 %v2699
      %3571 = vmatpush.bf16.msra.mxu0 %v2698
      %3572 = vmatpush.bf16.msra.mxu0 %v2697
      %3573 = vmatpush.bf16.msra.mxu0 %v2696
      %3574 = vmatpush.bf16.msra.mxu0 %v2695
      %3575 = vmatmul.bf16.gmra.mxu0 %v2146
      %v3576 = vpop.f32.mrf.mxu0
      %v3577 = vadd.f32 %v3478, %v3576
      %v3578 = vpop.f32.mrf.mxu0
      %v3579 = vadd.f32 %v3480, %v3578
      %3580 = vmatmul.bf16.gmra.mxu0 %v2148
      %v3581 = vpop.f32.mrf.mxu0
      %v3582 = vadd.f32 %v3483, %v3581
      %v3583 = vpop.f32.mrf.mxu0
      %v3584 = vadd.f32 %v3485, %v3583
      %3585 = vmatmul.bf16.gmra.mxu0 %v2150
      %v3586 = vpop.f32.mrf.mxu0
      %v3587 = vadd.f32 %v3488, %v3586
      %v3588 = vpop.f32.mrf.mxu0
      %v3589 = vadd.f32 %v3490, %v3588
      %3590 = vmatmul.bf16.gmra.mxu0 %v2152
      %v3591 = vpop.f32.mrf.mxu0
      %v3592 = vadd.f32 %v3493, %v3591
      %v3593 = vpop.f32.mrf.mxu0
      %v3594 = vadd.f32 %v3495, %v3593
      %3595 = vmatmul.bf16.gmra.mxu0 %v2154
      %v3596 = vpop.f32.mrf.mxu0
      %v3597 = vadd.f32 %v3498, %v3596
      %v3598 = vpop.f32.mrf.mxu0
      %v3599 = vadd.f32 %v3500, %v3598
      %3600 = vmatmul.bf16.gmra.mxu0 %v2156
      %v3601 = vpop.f32.mrf.mxu0
      %v3602 = vadd.f32 %v3503, %v3601
      %v3603 = vpop.f32.mrf.mxu0
      %v3604 = vadd.f32 %v3505, %v3603
      %3605 = vmatmul.bf16.gmra.mxu0 %v2158
      %v3606 = vpop.f32.mrf.mxu0
      %v3607 = vadd.f32 %v3508, %v3606
      %v3608 = vpop.f32.mrf.mxu0
      %v3609 = vadd.f32 %v3510, %v3608
      %3610 = vmatmul.bf16.gmra.mxu0 %v2160
      %v3611 = vpop.f32.mrf.mxu0
      %v3612 = vadd.f32 %v3513, %v3611
      %v3613 = vpop.f32.mrf.mxu0
      %v3614 = vadd.f32 %v3515, %v3613
      %3615 = vmatmul.bf16.gmra.mxu0 %v2162
      %v3616 = vpop.f32.mrf.mxu0
      %v3617 = vadd.f32 %v3518, %v3616
      %v3618 = vpop.f32.mrf.mxu0
      %v3619 = vadd.f32 %v3520, %v3618
      %3620 = vmatmul.bf16.gmra.mxu0 %v2164
      %v3621 = vpop.f32.mrf.mxu0
      %v3622 = vadd.f32 %v3523, %v3621
      %v3623 = vpop.f32.mrf.mxu0
      %v3624 = vadd.f32 %v3525, %v3623
      %3625 = vmatmul.bf16.gmra.mxu0 %v2166
      %v3626 = vpop.f32.mrf.mxu0
      %v3627 = vadd.f32 %v3528, %v3626
      %v3628 = vpop.f32.mrf.mxu0
      %v3629 = vadd.f32 %v3530, %v3628
      %3630 = vmatmul.bf16.gmra.mxu0 %v2168
      %v3631 = vpop.f32.mrf.mxu0
      %v3632 = vadd.f32 %v3533, %v3631
      %v3633 = vpop.f32.mrf.mxu0
      %v3634 = vadd.f32 %v3535, %v3633
      %3635 = vmatmul.bf16.gmra.mxu0 %v2170
      %v3636 = vpop.f32.mrf.mxu0
      %v3637 = vadd.f32 %v3538, %v3636
      %v3638 = vpop.f32.mrf.mxu0
      %v3639 = vadd.f32 %v3540, %v3638
      %3640 = vmatmul.bf16.gmra.mxu0 %v2172
      %v3641 = vpop.f32.mrf.mxu0
      %v3642 = vadd.f32 %v3543, %v3641
      %v3643 = vpop.f32.mrf.mxu0
      %v3644 = vadd.f32 %v3545, %v3643
      %3645 = vmatmul.bf16.gmra.mxu0 %v2174
      %v3646 = vpop.f32.mrf.mxu0
      %v3647 = vadd.f32 %v3548, %v3646
      %v3648 = vpop.f32.mrf.mxu0
      %v3649 = vadd.f32 %v3550, %v3648
      %3650 = vmatmul.bf16.gmra.mxu0 %v2176
      %v3651 = vpop.f32.mrf.mxu0
      %v3652 = vadd.f32 %v3553, %v3651
      %v3653 = vpop.f32.mrf.mxu0
      %v3654 = vadd.f32 %v3555, %v3653
      %3655 = vmatmul.bf16.gmra.mxu0 %v2178
      %v3656 = vpop.f32.mrf.mxu0
      %v3657 = vadd.f32 %v3558, %v3656
      %v3658 = vpop.f32.mrf.mxu0
      %v3659 = vadd.f32 %v3560, %v3658
      %3660 = vmatmul.bf16.gmra.mxu0 %v2180
      %v3661 = vpop.f32.mrf.mxu0
      %v3662 = vadd.f32 %v3563, %v3661
      %v3663 = vpop.f32.mrf.mxu0
      %v3664 = vadd.f32 %v3565, %v3663
      %3665 = vdwg.mxu0
      %v3666 = vld [vmem:[%s3] sm:$0x1]
      %v3668 = vperm.slane %v3666, 0
      %v3670 = vadd.f32 %v3577, %v3668
      %v3671 = vadd.f32 %v3579, %v3668
      %v3672 = vadd.f32 %v3582, %v3668
      %v3673 = vadd.f32 %v3584, %v3668
      %v3674 = vadd.f32 %v3587, %v3668
      %v3675 = vadd.f32 %v3589, %v3668
      %v3676 = vadd.f32 %v3592, %v3668
      %v3677 = vadd.f32 %v3594, %v3668
      %v3678 = vadd.f32 %v3597, %v3668
      %v3679 = vadd.f32 %v3599, %v3668
      %v3680 = vadd.f32 %v3602, %v3668
      %v3681 = vadd.f32 %v3604, %v3668
      %v3682 = vadd.f32 %v3607, %v3668
      %v3683 = vadd.f32 %v3609, %v3668
      %v3684 = vadd.f32 %v3612, %v3668
      %v3685 = vadd.f32 %v3614, %v3668
      %v3686 = vadd.f32 %v3617, %v3668
      %v3687 = vadd.f32 %v3619, %v3668
      %v3688 = vadd.f32 %v3622, %v3668
      %v3689 = vadd.f32 %v3624, %v3668
      %v3690 = vadd.f32 %v3627, %v3668
      %v3691 = vadd.f32 %v3629, %v3668
      %v3692 = vadd.f32 %v3632, %v3668
      %v3693 = vadd.f32 %v3634, %v3668
      %v3694 = vadd.f32 %v3637, %v3668
      %v3695 = vadd.f32 %v3639, %v3668
      %v3696 = vadd.f32 %v3642, %v3668
      %v3697 = vadd.f32 %v3644, %v3668
      %v3698 = vadd.f32 %v3647, %v3668
      %v3699 = vadd.f32 %v3649, %v3668
      %v3700 = vadd.f32 %v3652, %v3668
      %v3701 = vadd.f32 %v3654, %v3668
      %v3702 = vadd.f32 %v3657, %v3668
      %v3703 = vadd.f32 %v3659, %v3668
      %v3704 = vadd.f32 %v3662, %v3668
      %v3705 = vadd.f32 %v3664, %v3668
      %v3706 = vmax.f32 %v3670, 0.0
      %v3707 = vmax.f32 %v3671, 0.0
      %v3708 = vmax.f32 %v3672, 0.0
      %v3709 = vmax.f32 %v3673, 0.0
      %v3710 = vmax.f32 %v3674, 0.0
      %v3711 = vmax.f32 %v3675, 0.0
      %v3712 = vmax.f32 %v3676, 0.0
      %v3713 = vmax.f32 %v3677, 0.0
      %v3714 = vmax.f32 %v3678, 0.0
      %v3715 = vmax.f32 %v3679, 0.0
      %v3716 = vmax.f32 %v3680, 0.0
      %v3717 = vmax.f32 %v3681, 0.0
      %v3718 = vmax.f32 %v3682, 0.0
      %v3719 = vmax.f32 %v3683, 0.0
      %v3720 = vmax.f32 %v3684, 0.0
      %v3721 = vmax.f32 %v3685, 0.0
      %v3722 = vmax.f32 %v3686, 0.0
      %v3723 = vmax.f32 %v3687, 0.0
      %v3724 = vmax.f32 %v3688, 0.0
      %v3725 = vmax.f32 %v3689, 0.0
      %v3726 = vmax.f32 %v3690, 0.0
      %v3727 = vmax.f32 %v3691, 0.0
      %v3728 = vmax.f32 %v3692, 0.0
      %v3729 = vmax.f32 %v3693, 0.0
      %v3730 = vmax.f32 %v3694, 0.0
      %v3731 = vmax.f32 %v3695, 0.0
      %v3732 = vmax.f32 %v3696, 0.0
      %v3733 = vmax.f32 %v3697, 0.0
      %v3734 = vmax.f32 %v3698, 0.0
      %v3735 = vmax.f32 %v3699, 0.0
      %v3736 = vmax.f32 %v3700, 0.0
      %v3737 = vmax.f32 %v3701, 0.0
      %v3738 = vmax.f32 %v3702, 0.0
      %v3739 = vmax.f32 %v3703, 0.0
      %v3740 = vmax.f32 %v3704, 0.0
      %v3741 = vmax.f32 %v3705, 0.0
      %3742 = vst [vmem:[%s251] sm:$0xff] %v3706
      %3743 = vst [vmem:[%s251 + $0x8] sm:$0xff] %v3707
      %3744 = vst [vmem:[%s251 + $0x10] sm:$0xff] %v3708
      %3745 = vst [vmem:[%s251 + $0x18] sm:$0xff] %v3709
      %3746 = vst [vmem:[%s251 + $0x20] sm:$0xff] %v3710
      %3747 = vst [vmem:[%s251 + $0x28] sm:$0xff] %v3711
      %3748 = vst [vmem:[%s251 + $0x30] sm:$0xff] %v3712
      %3749 = vst [vmem:[%s251 + $0x38] sm:$0xff] %v3713
      %3750 = vst [vmem:[%s251 + $0x40] sm:$0xff] %v3714
      %3751 = vst [vmem:[%s251 + $0x48] sm:$0xff] %v3715
      %3752 = vst [vmem:[%s251 + $0x50] sm:$0xff] %v3716
      %3753 = vst [vmem:[%s251 + $0x58] sm:$0xff] %v3717
      %3754 = vst [vmem:[%s251 + $0x60] sm:$0xff] %v3718
      %3755 = vst [vmem:[%s251 + $0x68] sm:$0xff] %v3719
      %3756 = vst [vmem:[%s251 + $0x70] sm:$0xff] %v3720
      %3757 = vst [vmem:[%s251 + $0x78] sm:$0xff] %v3721
      %3758 = vst [vmem:[%s251 + $0x80] sm:$0xff] %v3722
      %3759 = vst [vmem:[%s251 + $0x88] sm:$0xff] %v3723
      %3760 = vst [vmem:[%s251 + $0x90] sm:$0xff] %v3724
      %3761 = vst [vmem:[%s251 + $0x98] sm:$0xff] %v3725
      %3762 = vst [vmem:[%s251 + $0xa0] sm:$0xff] %v3726
      %3763 = vst [vmem:[%s251 + $0xa8] sm:$0xff] %v3727
      %3764 = vst [vmem:[%s251 + $0xb0] sm:$0xff] %v3728
      %3765 = vst [vmem:[%s251 + $0xb8] sm:$0xff] %v3729
      %3766 = vst [vmem:[%s251 + $0xc0] sm:$0xff] %v3730
      %3767 = vst [vmem:[%s251 + $0xc8] sm:$0xff] %v3731
      %3768 = vst [vmem:[%s251 + $0xd0] sm:$0xff] %v3732
      %3769 = vst [vmem:[%s251 + $0xd8] sm:$0xff] %v3733
      %3770 = vst [vmem:[%s251 + $0xe0] sm:$0xff] %v3734
      %3771 = vst [vmem:[%s251 + $0xe8] sm:$0xff] %v3735
      %3772 = vst [vmem:[%s251 + $0xf0] sm:$0xff] %v3736
      %3773 = vst [vmem:[%s251 + $0xf8] sm:$0xff] %v3737
      %3774 = vst [vmem:[%s251 + $0x100] sm:$0xff] %v3738
      %3775 = vst [vmem:[%s251 + $0x108] sm:$0xff] %v3739
      %3776 = vst [vmem:[%s251 + $0x110] sm:$0xff] %v3740
      %3777 = vst [vmem:[%s251 + $0x118] sm:$0xff] %v3741
      %p3778 = scmp.lt.s32.totalorder %s17, 1
      %s3779 = scalar_select %p3778, %s17, 1
      %s3780 = smul.addr %s3779, 36
      %s3781 = smul.addr %s3780, 8
      %s3782 = scalar_lea.vmem %s6, %s3781
      // Predicated region
      $region45: #{_lambda_.1} parent=43 // pred_check
        %p3783 = pneg %p166
      $region46: #{_lambda_.1} parent=43 // pred_check_branch
        %3785 = sbr.rel (%p3783) target = $region48
      $region47: #{_lambda_.1} parent=43 // pred_region
        _
      $region48: #{_lambda_.1} parent=43 // pred_fallthru
        _
    $region44: #{_lambda_.1} parent=5 // pred_fallthru
      _
    %p3786 = scmp.le.s32.totalorder 2, %s12
    // Predicated region
    $region49: #{_lambda_.1} parent=5 // pred_check
      %p3787 = pneg %p3786
    $region50: #{_lambda_.1} parent=5 // pred_check_branch
      %3789 = sbr.rel (%p3787) target = $region52
    $region51: #{_lambda_.1} parent=5 // pred_region
      %s3790 = ssub.s32 %s12, 2
      // Predicated region
      $region53: #{_lambda_.1} parent=51 // pred_check
        %p3791 = pneg %p172
      $region54: #{_lambda_.1} parent=51 // pred_check_branch
        %3793 = sbr.rel (%p3791) target = $region56
      $region55: #{_lambda_.1} parent=51 // pred_region
        %p3794 = scmp.lt.s32.totalorder %s18, 1
        %s3795 = scalar_select %p3794, %s18, 1
        %s3796 = smul.addr %s3795, 36
        %s3797 = smul.addr %s3796, 8
        %s3798 = scalar_lea.vmem %s6, %s3797
      $region56: #{_lambda_.1} parent=51 // pred_fallthru
        _
    $region52: #{_lambda_.1} parent=5 // pred_fallthru
      _
  $region6: #{_lambda_.1} parent=0 // loop_footer
    %s16 = sadd.s32 1, %s12
  $region7: #{_lambda_.1} parent=0 // loop_footer_branch
    %11 = sbr.rel target = $region3
  $region8: #{_lambda_.1} parent=0 // loop_exit
    _

</llo_original>
